<compile_context>
chip_gen: v5e
topology: v5e:2x2
jax: 0.10.0
libtpu: 0.0.40
codegen_flags: <defaults>
</compile_context>

<pallas_src>
import functools
import math

import jax
import jax.numpy as jnp
from jax.experimental import pallas as pl
from jax.experimental.pallas import tpu as pltpu


def mha_kernel(q_ref, k_ref, v_ref, *rest, num_heads, d_k, scale, has_mask):
    if has_mask:
        bias_ref = rest[0]
        (wq_ref, bq_ref, wk_ref, bk_ref, wv_ref, bv_ref,
         wo_ref, bo_ref, o_ref, ctx_ref) = rest[1:]
    else:
        bias_ref = None
        (wq_ref, bq_ref, wk_ref, bk_ref, wv_ref, bv_ref,
         wo_ref, bo_ref, o_ref, ctx_ref) = rest

    cdt = ctx_ref.dtype                 # compute dtype (bf16 in production)

    q = q_ref[0]                        # (block_q, D)
    k = k_ref[0]                        # (Skv, D)
    v = v_ref[0]                        # (Skv, D)

    # Projections: f32 accumulation on the MXU, then cast back to the compute
    # dtype so the attention-phase matmuls run at the bf16 MXU rate.
    qp = jnp.dot(q, wq_ref[...], preferred_element_type=jnp.float32) + bq_ref[...]
    qp = (qp * scale).astype(cdt)       # fold 1/sqrt(d_k) in once (incl. bias)
    kp = (jnp.dot(k, wk_ref[...], preferred_element_type=jnp.float32)
          + bk_ref[...]).astype(cdt)
    vp = (jnp.dot(v, wv_ref[...], preferred_element_type=jnp.float32)
          + bv_ref[...]).astype(cdt)

    if has_mask:
        # Additive bias (0 / -1e9), hoisted out of the per-head loop.
        bias = bias_ref[0].astype(jnp.float32)      # (block_q, Skv)

    for h in range(num_heads):          # static unroll; num_heads is small
        sl = slice(h * d_k, (h + 1) * d_k)
        qh = qp[:, sl]                  # (block_q, d_k)
        kh = kp[:, sl]                  # (Skv, d_k)
        vh = vp[:, sl]                  # (Skv, d_k)
        s = jnp.einsum("qd,kd->qk", qh, kh,
                       preferred_element_type=jnp.float32)   # (block_q, Skv)
        if has_mask:
            s = s + bias
        m = jnp.max(s, axis=-1, keepdims=True)
        p = jnp.exp(s - m)
        inv_l = pl.reciprocal(jnp.sum(p, axis=-1, keepdims=True), approx=True)
        attn = (p * inv_l).astype(cdt)
        ctx_ref[:, sl] = jnp.dot(attn, vh,
                                 preferred_element_type=jnp.float32).astype(cdt)

    out = (jnp.dot(ctx_ref[...], wo_ref[...], preferred_element_type=jnp.float32)
           + bo_ref[...])
    o_ref[0] = out.astype(o_ref.dtype)


def _pick_block_q(sq):
    if sq <= 512:
        return sq
    for cand in (512, 256, 128, 64, 32, 16, 8):
        if sq % cand == 0:
            return cand
    return sq


def _vmem_limit_bytes():
    try:
        cap = int(pltpu.get_tpu_info().vmem_capacity_bytes)
    except Exception:
        cap = 128 * 1024 * 1024
    if cap <= 64 * 1024 * 1024:          # v7x-class: leave compiler headroom
        return 36 * 1024 * 1024
    return 80 * 1024 * 1024              # v5e/v6e: allow large Sq tiles


def multi_head_attention(q, k, v, params, *, num_heads, mask=None, block_q=None):
    """q: (B, Sq, D), k/v: (B, Skv, D) -> (B, Sq, D)."""
    wq, bq, wk, bk, wv, bv, wo, bo = params
    B, Sq, D = q.shape
    Skv = k.shape[1]
    assert v.shape == (B, Skv, D)
    assert D % num_heads == 0
    d_k = D // num_heads

    if block_q is None:
        block_q = _pick_block_q(Sq)
    assert Sq % block_q == 0
    nq = Sq // block_q
    dtype = q.dtype

    bq2, bk2, bv2, bo2 = (b.reshape(1, D) for b in (bq, bk, bv, bo))

    has_mask = mask is not None
    if has_mask:
        m = jnp.asarray(mask)
        if m.ndim == 2:
            m = m[None]
        assert m.shape[1:] == (Sq, Skv) and m.shape[0] in (1, B)
        # Additive bias in the activation dtype (matches masked_fill(-1e9)).
        bias = jnp.where(m == 0, jnp.asarray(-1e9, dtype), jnp.asarray(0, dtype))
        bias_shared = bias.shape[0] == 1
    else:
        bias = None
        bias_shared = False

    kernel = functools.partial(mha_kernel, num_heads=num_heads, d_k=d_k,
                               scale=1.0 / math.sqrt(d_k), has_mask=has_mask)

    q_spec = pl.BlockSpec((1, block_q, D), lambda b, i: (b, i, 0))
    kv_spec = pl.BlockSpec((1, Skv, D), lambda b, i: (b, 0, 0))

    itemsize = jnp.dtype(dtype).itemsize
    mask_bytes = (bias.size * itemsize) if has_mask else 0
    cost = pl.CostEstimate(
        flops=B * (4 * D * D * (Sq + Skv) + 4 * Sq * Skv * D),
        transcendentals=B * num_heads * Sq * Skv,
        bytes_accessed=itemsize * (2 * B * Sq * D + 2 * B * Skv * D
                                   + 4 * D * D + 4 * D) + mask_bytes,
    )

    def _build(single_buffer_weights):
        extra = {"pipeline_mode": pl.Buffered(1)} if single_buffer_weights else {}
        w_spec = pl.BlockSpec((D, D), lambda b, i: (0, 0), **extra)
        b_spec = pl.BlockSpec((1, D), lambda b, i: (0, 0), **extra)

        in_specs = [q_spec, kv_spec, kv_spec]
        if has_mask:
            if bias_shared:
                in_specs.append(pl.BlockSpec((1, block_q, Skv),
                                             lambda b, i: (0, i, 0)))
            else:
                in_specs.append(pl.BlockSpec((1, block_q, Skv),
                                             lambda b, i: (b, i, 0)))
        in_specs += [w_spec, b_spec, w_spec, b_spec, w_spec, b_spec, w_spec, b_spec]

        return pl.pallas_call(
            kernel,
            out_shape=jax.ShapeDtypeStruct((B, Sq, D), dtype),
            grid_spec=pltpu.PrefetchScalarGridSpec(
                num_scalar_prefetch=0,
                grid=(B, nq),
                in_specs=in_specs,
                out_specs=q_spec,
                scratch_shapes=[pltpu.VMEM((block_q, D), dtype)],
            ),
            compiler_params=pltpu.CompilerParams(
                dimension_semantics=("parallel", "parallel"),
                vmem_limit_bytes=_vmem_limit_bytes(),
            ),
            cost_estimate=cost,
        )

    args = [q, k, v]
    if has_mask:
        args.append(bias)
    args += [wq, bq2, wk, bk2, wv, bv2, wo, bo2]

    try:
        return _build(True)(*args)
    except Exception:
        # Fallback if this jax build rejects pipeline_mode=pl.Buffered(1).
        return _build(False)(*args)


def init_params(key, d_model, dtype=jnp.float32):
    """Deterministic init matching nn.Linear's U(-1/sqrt(in), 1/sqrt(in))."""
    ks = jax.random.split(key, 8)
    bound = 1.0 / math.sqrt(d_model)

    def lin(kw, kb):
        w = jax.random.uniform(kw, (d_model, d_model), dtype, -bound, bound)
        b = jax.random.uniform(kb, (d_model,), dtype, -bound, bound)
        return w, b

    wq, bq = lin(ks[0], ks[1])
    wk, bk = lin(ks[2], ks[3])
    wv, bv = lin(ks[4], ks[5])
    wo, bo = lin(ks[6], ks[7])
    return (wq, bq, wk, bk, wv, bv, wo, bo)


def mha_ref(q, k, v, params, *, num_heads, mask=None):
    """Plain-JAX reference mirroring the PyTorch forward."""
    wq, bq, wk, bk, wv, bv, wo, bo = params
    B, Sq, D = q.shape
    Skv = k.shape[1]
    d_k = D // num_heads

    def split(x, s):
        return x.reshape(B, s, num_heads, d_k).transpose(0, 2, 1, 3)

    qh = split(q @ wq + bq, Sq)
    kh = split(k @ wk + bk, Skv)
    vh = split(v @ wv + bv, Skv)
    scores = jnp.einsum("bhqd,bhkd->bhqk", qh, kh) / math.sqrt(d_k)
    if mask is not None:
        m = jnp.asarray(mask)
        if m.ndim == 2:
            m = m[None]
        scores = jnp.where(m[:, None, :, :] == 0, -1e9, scores)
    attn = jax.nn.softmax(scores, axis=-1)
    ctx = jnp.einsum("bhqk,bhkd->bhqd", attn, vh)
    ctx = ctx.transpose(0, 2, 1, 3).reshape(B, Sq, D)
    return ctx @ wo + bo


if __name__ == "__main__":
    batch, seq, d_model, num_heads = 2, 16, 128, 4

    key = jax.random.PRNGKey(0)
    kq, kk, kv_, kp = jax.random.split(key, 4)
    q = jax.random.normal(kq, (batch, seq, d_model), jnp.float32)
    k = jax.random.normal(kk, (batch, seq, d_model), jnp.float32)
    v = jax.random.normal(kv_, (batch, seq, d_model), jnp.float32)
    params = init_params(kp, d_model)

    # no-mask path (mask=None, module default) -- no mask tensor is built
    out = jax.block_until_ready(
        multi_head_attention(q, k, v, params, num_heads=num_heads))
    ref = mha_ref(q, k, v, params, num_heads=num_heads)
    assert out.shape == (batch, seq, d_model)
    # tolerance accommodates the approx EUP reciprocal in the softmax
    assert jnp.allclose(out, ref, atol=1e-2, rtol=1e-2), \
        float(jnp.max(jnp.abs(out - ref)))

    # masked (causal) path; mask shared across batch -> constant index_map
    causal = jnp.tril(jnp.ones((seq, seq), jnp.float32))[None]    # (1, S, S)
    out_m = jax.block_until_ready(
        multi_head_attention(q, k, v, params, num_heads=num_heads, mask=causal))
    ref_m = mha_ref(q, k, v, params, num_heads=num_heads, mask=causal)
    assert jnp.allclose(out_m, ref_m, atol=1e-2, rtol=1e-2), \
        float(jnp.max(jnp.abs(out_m - ref_m)))

    # bf16 smoke test exercising the mixed-precision (bf16 MXU operand) path
    q16, k16, v16 = (x.astype(jnp.bfloat16) for x in (q, k, v))
    params16 = tuple(p.astype(jnp.bfloat16) for p in params)
    out16 = jax.block_until_ready(
        multi_head_attention(q16, k16, v16, params16,
                             num_heads=num_heads, mask=causal))
    assert out16.shape == (batch, seq, d_model)
    assert bool(jnp.all(jnp.isfinite(out16.astype(jnp.float32))))

    print("KERNEL_OK")
</pallas_src>

<mosaic_0001>
module attributes {stable_mosaic.version = 11 : i64} {
  func.func @mha_kernel(%arg0: i32, %arg1: i32, %arg2: memref<1x16x128xf32, #tpu.memory_space<vmem>>, %arg3: memref<1x16x128xf32, #tpu.memory_space<vmem>>, %arg4: memref<1x16x128xf32, #tpu.memory_space<vmem>>, %arg5: memref<128x128xf32, #tpu.memory_space<vmem>>, %arg6: memref<1x128xf32, #tpu.memory_space<vmem>>, %arg7: memref<128x128xf32, #tpu.memory_space<vmem>>, %arg8: memref<1x128xf32, #tpu.memory_space<vmem>>, %arg9: memref<128x128xf32, #tpu.memory_space<vmem>>, %arg10: memref<1x128xf32, #tpu.memory_space<vmem>>, %arg11: memref<128x128xf32, #tpu.memory_space<vmem>>, %arg12: memref<1x128xf32, #tpu.memory_space<vmem>>, %arg13: memref<1x16x128xf32, #tpu.memory_space<vmem>>, %arg14: memref<16x128xf32, #tpu.memory_space<vmem>>) attributes {dimension_semantics = [#tpu.dimension_semantics<parallel>, #tpu.dimension_semantics<parallel>], iteration_bounds = array<i64: 2, 1>, scalar_prefetch = 0 : i64, scratch_operands = 1 : i64, tpu.core_type = #tpu.core_type<tc>, window_params = [{transform_indices = @transform_0, window_bounds = array<i64: 1, 16, 128>}, {transform_indices = @transform_1, window_bounds = array<i64: 1, 16, 128>}, {transform_indices = @transform_2, window_bounds = array<i64: 1, 16, 128>}, {pipeline_mode = #tpu.pipeline_mode<synchronous>, transform_indices = @transform_3, window_bounds = array<i64: 128, 128>}, {pipeline_mode = #tpu.pipeline_mode<synchronous>, transform_indices = @transform_4, window_bounds = array<i64: 1, 128>}, {pipeline_mode = #tpu.pipeline_mode<synchronous>, transform_indices = @transform_5, window_bounds = array<i64: 128, 128>}, {pipeline_mode = #tpu.pipeline_mode<synchronous>, transform_indices = @transform_6, window_bounds = array<i64: 1, 128>}, {pipeline_mode = #tpu.pipeline_mode<synchronous>, transform_indices = @transform_7, window_bounds = array<i64: 128, 128>}, {pipeline_mode = #tpu.pipeline_mode<synchronous>, transform_indices = @transform_8, window_bounds = array<i64: 1, 128>}, {pipeline_mode = #tpu.pipeline_mode<synchronous>, transform_indices = @transform_9, window_bounds = array<i64: 128, 128>}, {pipeline_mode = #tpu.pipeline_mode<synchronous>, transform_indices = @transform_10, window_bounds = array<i64: 1, 128>}, {transform_indices = @transform_11, window_bounds = array<i64: 1, 16, 128>}]} {
    %c0 = arith.constant 0 : index
    %c0_0 = arith.constant 0 : index
    %c0_1 = arith.constant 0 : index
    %0 = vector.load %arg2[%c0, %c0_0, %c0_1] : memref<1x16x128xf32, #tpu.memory_space<vmem>>, vector<1x16x128xf32>
    %1 = vector.shape_cast %0 : vector<1x16x128xf32> to vector<16x128xf32>
    %c0_2 = arith.constant 0 : index
    %c0_3 = arith.constant 0 : index
    %c0_4 = arith.constant 0 : index
    %2 = vector.load %arg3[%c0_2, %c0_3, %c0_4] : memref<1x16x128xf32, #tpu.memory_space<vmem>>, vector<1x16x128xf32>
    %3 = vector.shape_cast %2 : vector<1x16x128xf32> to vector<16x128xf32>
    %c0_5 = arith.constant 0 : index
    %c0_6 = arith.constant 0 : index
    %c0_7 = arith.constant 0 : index
    %4 = vector.load %arg4[%c0_5, %c0_6, %c0_7] : memref<1x16x128xf32, #tpu.memory_space<vmem>>, vector<1x16x128xf32>
    %5 = vector.shape_cast %4 : vector<1x16x128xf32> to vector<16x128xf32>
    %c0_8 = arith.constant 0 : index
    %c0_9 = arith.constant 0 : index
    %6 = vector.load %arg5[%c0_8, %c0_9] : memref<128x128xf32, #tpu.memory_space<vmem>>, vector<128x128xf32>
    %cst = arith.constant dense<0.000000e+00> : vector<16x128xf32>
    %7 = tpu.matmul %1, %6, %cst {dimension_numbers = #tpu.dot_dimension_numbers<[1], [0], [0], [1], [0, 0, 1, 1], [], []>} : vector<16x128xf32>, vector<128x128xf32>, vector<16x128xf32> -> vector<16x128xf32>
    %c0_10 = arith.constant 0 : index
    %c0_11 = arith.constant 0 : index
    %8 = vector.load %arg6[%c0_10, %c0_11] : memref<1x128xf32, #tpu.memory_space<vmem>>, vector<1x128xf32>
    %9 = vector.broadcast %8 : vector<1x128xf32> to vector<16x128xf32>
    %10 = arith.addf %7, %9 : vector<16x128xf32>
    %cst_12 = arith.constant 0.176776692 : f32
    %11 = vector.broadcast %cst_12 : f32 to vector<16x128xf32>
    %12 = arith.mulf %10, %11 : vector<16x128xf32>
    %c0_13 = arith.constant 0 : index
    %c0_14 = arith.constant 0 : index
    %13 = vector.load %arg7[%c0_13, %c0_14] : memref<128x128xf32, #tpu.memory_space<vmem>>, vector<128x128xf32>
    %cst_15 = arith.constant dense<0.000000e+00> : vector<16x128xf32>
    %14 = tpu.matmul %3, %13, %cst_15 {dimension_numbers = #tpu.dot_dimension_numbers<[1], [0], [0], [1], [0, 0, 1, 1], [], []>} : vector<16x128xf32>, vector<128x128xf32>, vector<16x128xf32> -> vector<16x128xf32>
    %c0_16 = arith.constant 0 : index
    %c0_17 = arith.constant 0 : index
    %15 = vector.load %arg8[%c0_16, %c0_17] : memref<1x128xf32, #tpu.memory_space<vmem>>, vector<1x128xf32>
    %16 = vector.broadcast %15 : vector<1x128xf32> to vector<16x128xf32>
    %17 = arith.addf %14, %16 : vector<16x128xf32>
    %c0_18 = arith.constant 0 : index
    %c0_19 = arith.constant 0 : index
    %18 = vector.load %arg9[%c0_18, %c0_19] : memref<128x128xf32, #tpu.memory_space<vmem>>, vector<128x128xf32>
    %cst_20 = arith.constant dense<0.000000e+00> : vector<16x128xf32>
    %19 = tpu.matmul %5, %18, %cst_20 {dimension_numbers = #tpu.dot_dimension_numbers<[1], [0], [0], [1], [0, 0, 1, 1], [], []>} : vector<16x128xf32>, vector<128x128xf32>, vector<16x128xf32> -> vector<16x128xf32>
    %c0_21 = arith.constant 0 : index
    %c0_22 = arith.constant 0 : index
    %20 = vector.load %arg10[%c0_21, %c0_22] : memref<1x128xf32, #tpu.memory_space<vmem>>, vector<1x128xf32>
    %21 = vector.broadcast %20 : vector<1x128xf32> to vector<16x128xf32>
    %22 = arith.addf %19, %21 : vector<16x128xf32>
    %23 = vector.extract_strided_slice %12 {offsets = [0, 0], sizes = [16, 32], strides = [1, 1]} : vector<16x128xf32> to vector<16x32xf32>
    %24 = vector.extract_strided_slice %17 {offsets = [0, 0], sizes = [16, 32], strides = [1, 1]} : vector<16x128xf32> to vector<16x32xf32>
    %25 = vector.extract_strided_slice %22 {offsets = [0, 0], sizes = [16, 32], strides = [1, 1]} : vector<16x128xf32> to vector<16x32xf32>
    "tpu.trace_start"() <{level = 10 : i32, message = "qd,kd->qk"}> : () -> ()
    %cst_23 = arith.constant dense<0.000000e+00> : vector<16x16xf32>
    %26 = tpu.matmul %23, %24, %cst_23 {dimension_numbers = #tpu.dot_dimension_numbers<[1], [1], [0], [0], [0, 0, 1, 0], [], []>} : vector<16x32xf32>, vector<16x32xf32>, vector<16x16xf32> -> vector<16x16xf32>
    "tpu.trace_stop"() : () -> ()
    %cst_24 = arith.constant dense<0xFF800000> : vector<16xf32>
    %27 = vector.multi_reduction <maximumf>, %26, %cst_24 [1] : vector<16x16xf32> to vector<16xf32>
    %28 = vector.shape_cast %27 : vector<16xf32> to vector<16x1xf32>
    %29 = vector.broadcast %28 : vector<16x1xf32> to vector<16x16xf32>
    %30 = arith.subf %26, %29 : vector<16x16xf32>
    %31 = math.exp %30 : vector<16x16xf32>
    %cst_25 = arith.constant dense<0.000000e+00> : vector<16xf32>
    %32 = vector.multi_reduction <add>, %31, %cst_25 [1] : vector<16x16xf32> to vector<16xf32>
    %33 = vector.shape_cast %32 : vector<16xf32> to vector<16x1xf32>
    %34 = tpu.reciprocal %33 {approx = true} : vector<16x1xf32> -> vector<16x1xf32>
    %35 = vector.broadcast %34 : vector<16x1xf32> to vector<16x16xf32>
    %36 = arith.mulf %31, %35 : vector<16x16xf32>
    %cst_26 = arith.constant dense<0.000000e+00> : vector<16x32xf32>
    %37 = tpu.matmul %36, %25, %cst_26 {dimension_numbers = #tpu.dot_dimension_numbers<[1], [0], [0], [1], [0, 0, 1, 1], [], []>} : vector<16x16xf32>, vector<16x32xf32>, vector<16x32xf32> -> vector<16x32xf32>
    %c0_27 = arith.constant 0 : index
    %c0_28 = arith.constant 0 : index
    %38 = vector.load %arg14[%c0_27, %c0_28] : memref<16x128xf32, #tpu.memory_space<vmem>>, vector<16x32xf32>
    tpu.vector_store %arg14[%c0_27, %c0_28], %37 {strides = array<i32>} : memref<16x128xf32, #tpu.memory_space<vmem>>, vector<16x32xf32>,
    %39 = vector.extract_strided_slice %12 {offsets = [0, 32], sizes = [16, 32], strides = [1, 1]} : vector<16x128xf32> to vector<16x32xf32>
    %40 = vector.extract_strided_slice %17 {offsets = [0, 32], sizes = [16, 32], strides = [1, 1]} : vector<16x128xf32> to vector<16x32xf32>
    %41 = vector.extract_strided_slice %22 {offsets = [0, 32], sizes = [16, 32], strides = [1, 1]} : vector<16x128xf32> to vector<16x32xf32>
    "tpu.trace_start"() <{level = 10 : i32, message = "qd,kd->qk"}> : () -> ()
    %cst_29 = arith.constant dense<0.000000e+00> : vector<16x16xf32>
    %42 = tpu.matmul %39, %40, %cst_29 {dimension_numbers = #tpu.dot_dimension_numbers<[1], [1], [0], [0], [0, 0, 1, 0], [], []>} : vector<16x32xf32>, vector<16x32xf32>, vector<16x16xf32> -> vector<16x16xf32>
    "tpu.trace_stop"() : () -> ()
    %cst_30 = arith.constant dense<0xFF800000> : vector<16xf32>
    %43 = vector.multi_reduction <maximumf>, %42, %cst_30 [1] : vector<16x16xf32> to vector<16xf32>
    %44 = vector.shape_cast %43 : vector<16xf32> to vector<16x1xf32>
    %45 = vector.broadcast %44 : vector<16x1xf32> to vector<16x16xf32>
    %46 = arith.subf %42, %45 : vector<16x16xf32>
    %47 = math.exp %46 : vector<16x16xf32>
    %cst_31 = arith.constant dense<0.000000e+00> : vector<16xf32>
    %48 = vector.multi_reduction <add>, %47, %cst_31 [1] : vector<16x16xf32> to vector<16xf32>
    %49 = vector.shape_cast %48 : vector<16xf32> to vector<16x1xf32>
    %50 = tpu.reciprocal %49 {approx = true} : vector<16x1xf32> -> vector<16x1xf32>
    %51 = vector.broadcast %50 : vector<16x1xf32> to vector<16x16xf32>
    %52 = arith.mulf %47, %51 : vector<16x16xf32>
    %cst_32 = arith.constant dense<0.000000e+00> : vector<16x32xf32>
    %53 = tpu.matmul %52, %41, %cst_32 {dimension_numbers = #tpu.dot_dimension_numbers<[1], [0], [0], [1], [0, 0, 1, 1], [], []>} : vector<16x16xf32>, vector<16x32xf32>, vector<16x32xf32> -> vector<16x32xf32>
    %c0_33 = arith.constant 0 : index
    %c32 = arith.constant 32 : index
    %54 = vector.load %arg14[%c0_33, %c32] : memref<16x128xf32, #tpu.memory_space<vmem>>, vector<16x32xf32>
    tpu.vector_store %arg14[%c0_33, %c32], %53 {strides = array<i32>} : memref<16x128xf32, #tpu.memory_space<vmem>>, vector<16x32xf32>,
    %55 = vector.extract_strided_slice %12 {offsets = [0, 64], sizes = [16, 32], strides = [1, 1]} : vector<16x128xf32> to vector<16x32xf32>
    %56 = vector.extract_strided_slice %17 {offsets = [0, 64], sizes = [16, 32], strides = [1, 1]} : vector<16x128xf32> to vector<16x32xf32>
    %57 = vector.extract_strided_slice %22 {offsets = [0, 64], sizes = [16, 32], strides = [1, 1]} : vector<16x128xf32> to vector<16x32xf32>
    "tpu.trace_start"() <{level = 10 : i32, message = "qd,kd->qk"}> : () -> ()
    %cst_34 = arith.constant dense<0.000000e+00> : vector<16x16xf32>
    %58 = tpu.matmul %55, %56, %cst_34 {dimension_numbers = #tpu.dot_dimension_numbers<[1], [1], [0], [0], [0, 0, 1, 0], [], []>} : vector<16x32xf32>, vector<16x32xf32>, vector<16x16xf32> -> vector<16x16xf32>
    "tpu.trace_stop"() : () -> ()
    %cst_35 = arith.constant dense<0xFF800000> : vector<16xf32>
    %59 = vector.multi_reduction <maximumf>, %58, %cst_35 [1] : vector<16x16xf32> to vector<16xf32>
    %60 = vector.shape_cast %59 : vector<16xf32> to vector<16x1xf32>
    %61 = vector.broadcast %60 : vector<16x1xf32> to vector<16x16xf32>
    %62 = arith.subf %58, %61 : vector<16x16xf32>
    %63 = math.exp %62 : vector<16x16xf32>
    %cst_36 = arith.constant dense<0.000000e+00> : vector<16xf32>
    %64 = vector.multi_reduction <add>, %63, %cst_36 [1] : vector<16x16xf32> to vector<16xf32>
    %65 = vector.shape_cast %64 : vector<16xf32> to vector<16x1xf32>
    %66 = tpu.reciprocal %65 {approx = true} : vector<16x1xf32> -> vector<16x1xf32>
    %67 = vector.broadcast %66 : vector<16x1xf32> to vector<16x16xf32>
    %68 = arith.mulf %63, %67 : vector<16x16xf32>
    %cst_37 = arith.constant dense<0.000000e+00> : vector<16x32xf32>
    %69 = tpu.matmul %68, %57, %cst_37 {dimension_numbers = #tpu.dot_dimension_numbers<[1], [0], [0], [1], [0, 0, 1, 1], [], []>} : vector<16x16xf32>, vector<16x32xf32>, vector<16x32xf32> -> vector<16x32xf32>
    %c0_38 = arith.constant 0 : index
    %c64 = arith.constant 64 : index
    %70 = vector.load %arg14[%c0_38, %c64] : memref<16x128xf32, #tpu.memory_space<vmem>>, vector<16x32xf32>
    tpu.vector_store %arg14[%c0_38, %c64], %69 {strides = array<i32>} : memref<16x128xf32, #tpu.memory_space<vmem>>, vector<16x32xf32>,
    %71 = vector.extract_strided_slice %12 {offsets = [0, 96], sizes = [16, 32], strides = [1, 1]} : vector<16x128xf32> to vector<16x32xf32>
    %72 = vector.extract_strided_slice %17 {offsets = [0, 96], sizes = [16, 32], strides = [1, 1]} : vector<16x128xf32> to vector<16x32xf32>
    %73 = vector.extract_strided_slice %22 {offsets = [0, 96], sizes = [16, 32], strides = [1, 1]} : vector<16x128xf32> to vector<16x32xf32>
    "tpu.trace_start"() <{level = 10 : i32, message = "qd,kd->qk"}> : () -> ()
    %cst_39 = arith.constant dense<0.000000e+00> : vector<16x16xf32>
    %74 = tpu.matmul %71, %72, %cst_39 {dimension_numbers = #tpu.dot_dimension_numbers<[1], [1], [0], [0], [0, 0, 1, 0], [], []>} : vector<16x32xf32>, vector<16x32xf32>, vector<16x16xf32> -> vector<16x16xf32>
    "tpu.trace_stop"() : () -> ()
    %cst_40 = arith.constant dense<0xFF800000> : vector<16xf32>
    %75 = vector.multi_reduction <maximumf>, %74, %cst_40 [1] : vector<16x16xf32> to vector<16xf32>
    %76 = vector.shape_cast %75 : vector<16xf32> to vector<16x1xf32>
    %77 = vector.broadcast %76 : vector<16x1xf32> to vector<16x16xf32>
    %78 = arith.subf %74, %77 : vector<16x16xf32>
    %79 = math.exp %78 : vector<16x16xf32>
    %cst_41 = arith.constant dense<0.000000e+00> : vector<16xf32>
    %80 = vector.multi_reduction <add>, %79, %cst_41 [1] : vector<16x16xf32> to vector<16xf32>
    %81 = vector.shape_cast %80 : vector<16xf32> to vector<16x1xf32>
    %82 = tpu.reciprocal %81 {approx = true} : vector<16x1xf32> -> vector<16x1xf32>
    %83 = vector.broadcast %82 : vector<16x1xf32> to vector<16x16xf32>
    %84 = arith.mulf %79, %83 : vector<16x16xf32>
    %cst_42 = arith.constant dense<0.000000e+00> : vector<16x32xf32>
    %85 = tpu.matmul %84, %73, %cst_42 {dimension_numbers = #tpu.dot_dimension_numbers<[1], [0], [0], [1], [0, 0, 1, 1], [], []>} : vector<16x16xf32>, vector<16x32xf32>, vector<16x32xf32> -> vector<16x32xf32>
    %c0_43 = arith.constant 0 : index
    %c96 = arith.constant 96 : index
    %86 = vector.load %arg14[%c0_43, %c96] : memref<16x128xf32, #tpu.memory_space<vmem>>, vector<16x32xf32>
    tpu.vector_store %arg14[%c0_43, %c96], %85 {strides = array<i32>} : memref<16x128xf32, #tpu.memory_space<vmem>>, vector<16x32xf32>,
    %c0_44 = arith.constant 0 : index
    %c0_45 = arith.constant 0 : index
    %87 = vector.load %arg14[%c0_44, %c0_45] : memref<16x128xf32, #tpu.memory_space<vmem>>, vector<16x128xf32>
    %c0_46 = arith.constant 0 : index
    %c0_47 = arith.constant 0 : index
    %88 = vector.load %arg11[%c0_46, %c0_47] : memref<128x128xf32, #tpu.memory_space<vmem>>, vector<128x128xf32>
    %cst_48 = arith.constant dense<0.000000e+00> : vector<16x128xf32>
    %89 = tpu.matmul %87, %88, %cst_48 {dimension_numbers = #tpu.dot_dimension_numbers<[1], [0], [0], [1], [0, 0, 1, 1], [], []>} : vector<16x128xf32>, vector<128x128xf32>, vector<16x128xf32> -> vector<16x128xf32>
    %c0_49 = arith.constant 0 : index
    %c0_50 = arith.constant 0 : index
    %90 = vector.load %arg12[%c0_49, %c0_50] : memref<1x128xf32, #tpu.memory_space<vmem>>, vector<1x128xf32>
    %91 = vector.broadcast %90 : vector<1x128xf32> to vector<16x128xf32>
    %92 = arith.addf %89, %91 : vector<16x128xf32>
    %c0_51 = arith.constant 0 : index
    %c0_52 = arith.constant 0 : index
    %c0_53 = arith.constant 0 : index
    %93 = vector.load %arg13[%c0_51, %c0_52, %c0_53] : memref<1x16x128xf32, #tpu.memory_space<vmem>>, vector<1x16x128xf32>
    %94 = vector.shape_cast %93 : vector<1x16x128xf32> to vector<16x128xf32>
    %95 = vector.shape_cast %92 : vector<16x128xf32> to vector<1x16x128xf32>
    tpu.vector_store %arg13[%c0_51, %c0_52, %c0_53], %95 {strides = array<i32>} : memref<1x16x128xf32, #tpu.memory_space<vmem>>, vector<1x16x128xf32>,
    return
  }
  func.func @transform_0(%arg0: i32, %arg1: i32) -> (i32, i32, i32) {
    %c0_i32 = arith.constant 0 : i32
    %c0_i32_0 = arith.constant 0 : i32
    return %arg0, %arg1, %c0_i32 : i32, i32, i32
  }
  func.func @transform_1(%arg0: i32, %arg1: i32) -> (i32, i32, i32) {
    %c0_i32 = arith.constant 0 : i32
    %c0_i32_0 = arith.constant 0 : i32
    %c0_i32_1 = arith.constant 0 : i32
    return %arg0, %c0_i32, %c0_i32_0 : i32, i32, i32
  }
  func.func @transform_2(%arg0: i32, %arg1: i32) -> (i32, i32, i32) {
    %c0_i32 = arith.constant 0 : i32
    %c0_i32_0 = arith.constant 0 : i32
    %c0_i32_1 = arith.constant 0 : i32
    return %arg0, %c0_i32, %c0_i32_0 : i32, i32, i32
  }
  func.func @transform_3(%arg0: i32, %arg1: i32) -> (i32, i32) {
    %c0_i32 = arith.constant 0 : i32
    %c0_i32_0 = arith.constant 0 : i32
    %c0_i32_1 = arith.constant 0 : i32
    return %c0_i32, %c0_i32_0 : i32, i32
  }
  func.func @transform_4(%arg0: i32, %arg1: i32) -> (i32, i32) {
    %c0_i32 = arith.constant 0 : i32
    %c0_i32_0 = arith.constant 0 : i32
    %c0_i32_1 = arith.constant 0 : i32
    return %c0_i32, %c0_i32_0 : i32, i32
  }
  func.func @transform_5(%arg0: i32, %arg1: i32) -> (i32, i32) {
    %c0_i32 = arith.constant 0 : i32
    %c0_i32_0 = arith.constant 0 : i32
    %c0_i32_1 = arith.constant 0 : i32
    return %c0_i32, %c0_i32_0 : i32, i32
  }
  func.func @transform_6(%arg0: i32, %arg1: i32) -> (i32, i32) {
    %c0_i32 = arith.constant 0 : i32
    %c0_i32_0 = arith.constant 0 : i32
    %c0_i32_1 = arith.constant 0 : i32
    return %c0_i32, %c0_i32_0 : i32, i32
  }
  func.func @transform_7(%arg0: i32, %arg1: i32) -> (i32, i32) {
    %c0_i32 = arith.constant 0 : i32
    %c0_i32_0 = arith.constant 0 : i32
    %c0_i32_1 = arith.constant 0 : i32
    return %c0_i32, %c0_i32_0 : i32, i32
  }
  func.func @transform_8(%arg0: i32, %arg1: i32) -> (i32, i32) {
    %c0_i32 = arith.constant 0 : i32
    %c0_i32_0 = arith.constant 0 : i32
    %c0_i32_1 = arith.constant 0 : i32
    return %c0_i32, %c0_i32_0 : i32, i32
  }
  func.func @transform_9(%arg0: i32, %arg1: i32) -> (i32, i32) {
    %c0_i32 = arith.constant 0 : i32
    %c0_i32_0 = arith.constant 0 : i32
    %c0_i32_1 = arith.constant 0 : i32
    return %c0_i32, %c0_i32_0 : i32, i32
  }
  func.func @transform_10(%arg0: i32, %arg1: i32) -> (i32, i32) {
    %c0_i32 = arith.constant 0 : i32
    %c0_i32_0 = arith.constant 0 : i32
    %c0_i32_1 = arith.constant 0 : i32
    return %c0_i32, %c0_i32_0 : i32, i32
  }
  func.func @transform_11(%arg0: i32, %arg1: i32) -> (i32, i32, i32) {
    %c0_i32 = arith.constant 0 : i32
    %c0_i32_0 = arith.constant 0 : i32
    return %arg0, %arg1, %c0_i32 : i32, i32, i32
  }
}

module attributes {stable_mosaic.version = 11 : i64} {
  func.func @mha_kernel(%arg0: i32, %arg1: i32, %arg2: memref<1x16x128xf32, #tpu.memory_space<vmem>>, %arg3: memref<1x16x128xf32, #tpu.memory_space<vmem>>, %arg4: memref<1x16x128xf32, #tpu.memory_space<vmem>>, %arg5: memref<128x128xf32, #tpu.memory_space<vmem>>, %arg6: memref<1x128xf32, #tpu.memory_space<vmem>>, %arg7: memref<128x128xf32, #tpu.memory_space<vmem>>, %arg8: memref<1x128xf32, #tpu.memory_space<vmem>>, %arg9: memref<128x128xf32, #tpu.memory_space<vmem>>, %arg10: memref<1x128xf32, #tpu.memory_space<vmem>>, %arg11: memref<128x128xf32, #tpu.memory_space<vmem>>, %arg12: memref<1x128xf32, #tpu.memory_space<vmem>>, %arg13: memref<1x16x128xf32, #tpu.memory_space<vmem>>, %arg14: memref<16x128xf32, #tpu.memory_space<vmem>>) attributes {dimension_semantics = [#tpu.dimension_semantics<parallel>, #tpu.dimension_semantics<parallel>], iteration_bounds = array<i64: 2, 1>, scalar_prefetch = 0 : i64, scratch_operands = 1 : i64, tpu.core_type = #tpu.core_type<tc>, window_params = [{transform_indices = @transform_0, window_bounds = array<i64: 1, 16, 128>}, {transform_indices = @transform_1, window_bounds = array<i64: 1, 16, 128>}, {transform_indices = @transform_2, window_bounds = array<i64: 1, 16, 128>}, {pipeline_mode = #tpu.pipeline_mode<synchronous>, transform_indices = @transform_3, window_bounds = array<i64: 128, 128>}, {pipeline_mode = #tpu.pipeline_mode<synchronous>, transform_indices = @transform_4, window_bounds = array<i64: 1, 128>}, {pipeline_mode = #tpu.pipeline_mode<synchronous>, transform_indices = @transform_5, window_bounds = array<i64: 128, 128>}, {pipeline_mode = #tpu.pipeline_mode<synchronous>, transform_indices = @transform_6, window_bounds = array<i64: 1, 128>}, {pipeline_mode = #tpu.pipeline_mode<synchronous>, transform_indices = @transform_7, window_bounds = array<i64: 128, 128>}, {pipeline_mode = #tpu.pipeline_mode<synchronous>, transform_indices = @transform_8, window_bounds = array<i64: 1, 128>}, {pipeline_mode = #tpu.pipeline_mode<synchronous>, transform_indices = @transform_9, window_bounds = array<i64: 128, 128>}, {pipeline_mode = #tpu.pipeline_mode<synchronous>, transform_indices = @transform_10, window_bounds = array<i64: 1, 128>}, {transform_indices = @transform_11, window_bounds = array<i64: 1, 16, 128>}]} {
    %c0 = arith.constant 0 : index
    %c0_0 = arith.constant 0 : index
    %c0_1 = arith.constant 0 : index
    %0 = vector.load %arg2[%c0, %c0_0, %c0_1] : memref<1x16x128xf32, #tpu.memory_space<vmem>>, vector<1x16x128xf32>
    %1 = vector.shape_cast %0 : vector<1x16x128xf32> to vector<16x128xf32>
    %c0_2 = arith.constant 0 : index
    %c0_3 = arith.constant 0 : index
    %c0_4 = arith.constant 0 : index
    %2 = vector.load %arg3[%c0_2, %c0_3, %c0_4] : memref<1x16x128xf32, #tpu.memory_space<vmem>>, vector<1x16x128xf32>
    %3 = vector.shape_cast %2 : vector<1x16x128xf32> to vector<16x128xf32>
    %c0_5 = arith.constant 0 : index
    %c0_6 = arith.constant 0 : index
    %c0_7 = arith.constant 0 : index
    %4 = vector.load %arg4[%c0_5, %c0_6, %c0_7] : memref<1x16x128xf32, #tpu.memory_space<vmem>>, vector<1x16x128xf32>
    %5 = vector.shape_cast %4 : vector<1x16x128xf32> to vector<16x128xf32>
    %c0_8 = arith.constant 0 : index
    %c0_9 = arith.constant 0 : index
    %6 = vector.load %arg5[%c0_8, %c0_9] : memref<128x128xf32, #tpu.memory_space<vmem>>, vector<128x128xf32>
    %cst = arith.constant dense<0.000000e+00> : vector<16x128xf32>
    %7 = tpu.matmul %1, %6, %cst {dimension_numbers = #tpu.dot_dimension_numbers<[1], [0], [0], [1], [0, 0, 1, 1], [], []>} : vector<16x128xf32>, vector<128x128xf32>, vector<16x128xf32> -> vector<16x128xf32>
    %c0_10 = arith.constant 0 : index
    %c0_11 = arith.constant 0 : index
    %8 = vector.load %arg6[%c0_10, %c0_11] : memref<1x128xf32, #tpu.memory_space<vmem>>, vector<1x128xf32>
    %9 = vector.broadcast %8 : vector<1x128xf32> to vector<16x128xf32>
    %10 = arith.addf %7, %9 : vector<16x128xf32>
    %cst_12 = arith.constant 0.176776692 : f32
    %11 = vector.broadcast %cst_12 : f32 to vector<16x128xf32>
    %12 = arith.mulf %10, %11 : vector<16x128xf32>
    %c0_13 = arith.constant 0 : index
    %c0_14 = arith.constant 0 : index
    %13 = vector.load %arg7[%c0_13, %c0_14] : memref<128x128xf32, #tpu.memory_space<vmem>>, vector<128x128xf32>
    %cst_15 = arith.constant dense<0.000000e+00> : vector<16x128xf32>
    %14 = tpu.matmul %3, %13, %cst_15 {dimension_numbers = #tpu.dot_dimension_numbers<[1], [0], [0], [1], [0, 0, 1, 1], [], []>} : vector<16x128xf32>, vector<128x128xf32>, vector<16x128xf32> -> vector<16x128xf32>
    %c0_16 = arith.constant 0 : index
    %c0_17 = arith.constant 0 : index
    %15 = vector.load %arg8[%c0_16, %c0_17] : memref<1x128xf32, #tpu.memory_space<vmem>>, vector<1x128xf32>
    %16 = vector.broadcast %15 : vector<1x128xf32> to vector<16x128xf32>
    %17 = arith.addf %14, %16 : vector<16x128xf32>
    %c0_18 = arith.constant 0 : index
    %c0_19 = arith.constant 0 : index
    %18 = vector.load %arg9[%c0_18, %c0_19] : memref<128x128xf32, #tpu.memory_space<vmem>>, vector<128x128xf32>
    %cst_20 = arith.constant dense<0.000000e+00> : vector<16x128xf32>
    %19 = tpu.matmul %5, %18, %cst_20 {dimension_numbers = #tpu.dot_dimension_numbers<[1], [0], [0], [1], [0, 0, 1, 1], [], []>} : vector<16x128xf32>, vector<128x128xf32>, vector<16x128xf32> -> vector<16x128xf32>
    %c0_21 = arith.constant 0 : index
    %c0_22 = arith.constant 0 : index
    %20 = vector.load %arg10[%c0_21, %c0_22] : memref<1x128xf32, #tpu.memory_space<vmem>>, vector<1x128xf32>
    %21 = vector.broadcast %20 : vector<1x128xf32> to vector<16x128xf32>
    %22 = arith.addf %19, %21 : vector<16x128xf32>
    %23 = vector.extract_strided_slice %12 {offsets = [0, 0], sizes = [16, 32], strides = [1, 1]} : vector<16x128xf32> to vector<16x32xf32>
    %24 = vector.extract_strided_slice %17 {offsets = [0, 0], sizes = [16, 32], strides = [1, 1]} : vector<16x128xf32> to vector<16x32xf32>
    %25 = vector.extract_strided_slice %22 {offsets = [0, 0], sizes = [16, 32], strides = [1, 1]} : vector<16x128xf32> to vector<16x32xf32>
    "tpu.trace_start"() <{level = 10 : i32, message = "qd,kd->qk"}> : () -> ()
    %cst_23 = arith.constant dense<0.000000e+00> : vector<16x16xf32>
    %26 = tpu.matmul %23, %24, %cst_23 {dimension_numbers = #tpu.dot_dimension_numbers<[1], [1], [0], [0], [0, 0, 1, 0], [], []>} : vector<16x32xf32>, vector<16x32xf32>, vector<16x16xf32> -> vector<16x16xf32>
    "tpu.trace_stop"() : () -> ()
    %cst_24 = arith.constant dense<0xFF800000> : vector<16xf32>
    %27 = vector.multi_reduction <maximumf>, %26, %cst_24 [1] : vector<16x16xf32> to vector<16xf32>
    %28 = vector.shape_cast %27 : vector<16xf32> to vector<16x1xf32>
    %29 = vector.broadcast %28 : vector<16x1xf32> to vector<16x16xf32>
    %30 = arith.subf %26, %29 : vector<16x16xf32>
    %31 = math.exp %30 : vector<16x16xf32>
    %cst_25 = arith.constant dense<0.000000e+00> : vector<16xf32>
    %32 = vector.multi_reduction <add>, %31, %cst_25 [1] : vector<16x16xf32> to vector<16xf32>
    %33 = vector.shape_cast %32 : vector<16xf32> to vector<16x1xf32>
    %34 = tpu.reciprocal %33 {approx = true} : vector<16x1xf32> -> vector<16x1xf32>
    %35 = vector.broadcast %34 : vector<16x1xf32> to vector<16x16xf32>
    %36 = arith.mulf %31, %35 : vector<16x16xf32>
    %cst_26 = arith.constant dense<0.000000e+00> : vector<16x32xf32>
    %37 = tpu.matmul %36, %25, %cst_26 {dimension_numbers = #tpu.dot_dimension_numbers<[1], [0], [0], [1], [0, 0, 1, 1], [], []>} : vector<16x16xf32>, vector<16x32xf32>, vector<16x32xf32> -> vector<16x32xf32>
    %c0_27 = arith.constant 0 : index
    %c0_28 = arith.constant 0 : index
    %38 = vector.load %arg14[%c0_27, %c0_28] : memref<16x128xf32, #tpu.memory_space<vmem>>, vector<16x32xf32>
    tpu.vector_store %arg14[%c0_27, %c0_28], %37 {strides = array<i32>} : memref<16x128xf32, #tpu.memory_space<vmem>>, vector<16x32xf32>,
    %39 = vector.extract_strided_slice %12 {offsets = [0, 32], sizes = [16, 32], strides = [1, 1]} : vector<16x128xf32> to vector<16x32xf32>
    %40 = vector.extract_strided_slice %17 {offsets = [0, 32], sizes = [16, 32], strides = [1, 1]} : vector<16x128xf32> to vector<16x32xf32>
    %41 = vector.extract_strided_slice %22 {offsets = [0, 32], sizes = [16, 32], strides = [1, 1]} : vector<16x128xf32> to vector<16x32xf32>
    "tpu.trace_start"() <{level = 10 : i32, message = "qd,kd->qk"}> : () -> ()
    %cst_29 = arith.constant dense<0.000000e+00> : vector<16x16xf32>
    %42 = tpu.matmul %39, %40, %cst_29 {dimension_numbers = #tpu.dot_dimension_numbers<[1], [1], [0], [0], [0, 0, 1, 0], [], []>} : vector<16x32xf32>, vector<16x32xf32>, vector<16x16xf32> -> vector<16x16xf32>
    "tpu.trace_stop"() : () -> ()
    %cst_30 = arith.constant dense<0xFF800000> : vector<16xf32>
    %43 = vector.multi_reduction <maximumf>, %42, %cst_30 [1] : vector<16x16xf32> to vector<16xf32>
    %44 = vector.shape_cast %43 : vector<16xf32> to vector<16x1xf32>
    %45 = vector.broadcast %44 : vector<16x1xf32> to vector<16x16xf32>
    %46 = arith.subf %42, %45 : vector<16x16xf32>
    %47 = math.exp %46 : vector<16x16xf32>
    %cst_31 = arith.constant dense<0.000000e+00> : vector<16xf32>
    %48 = vector.multi_reduction <add>, %47, %cst_31 [1] : vector<16x16xf32> to vector<16xf32>
    %49 = vector.shape_cast %48 : vector<16xf32> to vector<16x1xf32>
    %50 = tpu.reciprocal %49 {approx = true} : vector<16x1xf32> -> vector<16x1xf32>
    %51 = vector.broadcast %50 : vector<16x1xf32> to vector<16x16xf32>
    %52 = arith.mulf %47, %51 : vector<16x16xf32>
    %cst_32 = arith.constant dense<0.000000e+00> : vector<16x32xf32>
    %53 = tpu.matmul %52, %41, %cst_32 {dimension_numbers = #tpu.dot_dimension_numbers<[1], [0], [0], [1], [0, 0, 1, 1], [], []>} : vector<16x16xf32>, vector<16x32xf32>, vector<16x32xf32> -> vector<16x32xf32>
    %c0_33 = arith.constant 0 : index
    %c32 = arith.constant 32 : index
    %54 = vector.load %arg14[%c0_33, %c32] : memref<16x128xf32, #tpu.memory_space<vmem>>, vector<16x32xf32>
    tpu.vector_store %arg14[%c0_33, %c32], %53 {strides = array<i32>} : memref<16x128xf32, #tpu.memory_space<vmem>>, vector<16x32xf32>,
    %55 = vector.extract_strided_slice %12 {offsets = [0, 64], sizes = [16, 32], strides = [1, 1]} : vector<16x128xf32> to vector<16x32xf32>
    %56 = vector.extract_strided_slice %17 {offsets = [0, 64], sizes = [16, 32], strides = [1, 1]} : vector<16x128xf32> to vector<16x32xf32>
    %57 = vector.extract_strided_slice %22 {offsets = [0, 64], sizes = [16, 32], strides = [1, 1]} : vector<16x128xf32> to vector<16x32xf32>
    "tpu.trace_start"() <{level = 10 : i32, message = "qd,kd->qk"}> : () -> ()
    %cst_34 = arith.constant dense<0.000000e+00> : vector<16x16xf32>
    %58 = tpu.matmul %55, %56, %cst_34 {dimension_numbers = #tpu.dot_dimension_numbers<[1], [1], [0], [0], [0, 0, 1, 0], [], []>} : vector<16x32xf32>, vector<16x32xf32>, vector<16x16xf32> -> vector<16x16xf32>
    "tpu.trace_stop"() : () -> ()
    %cst_35 = arith.constant dense<0xFF800000> : vector<16xf32>
    %59 = vector.multi_reduction <maximumf>, %58, %cst_35 [1] : vector<16x16xf32> to vector<16xf32>
    %60 = vector.shape_cast %59 : vector<16xf32> to vector<16x1xf32>
    %61 = vector.broadcast %60 : vector<16x1xf32> to vector<16x16xf32>
    %62 = arith.subf %58, %61 : vector<16x16xf32>
    %63 = math.exp %62 : vector<16x16xf32>
    %cst_36 = arith.constant dense<0.000000e+00> : vector<16xf32>
    %64 = vector.multi_reduction <add>, %63, %cst_36 [1] : vector<16x16xf32> to vector<16xf32>
    %65 = vector.shape_cast %64 : vector<16xf32> to vector<16x1xf32>
    %66 = tpu.reciprocal %65 {approx = true} : vector<16x1xf32> -> vector<16x1xf32>
    %67 = vector.broadcast %66 : vector<16x1xf32> to vector<16x16xf32>
    %68 = arith.mulf %63, %67 : vector<16x16xf32>
    %cst_37 = arith.constant dense<0.000000e+00> : vector<16x32xf32>
    %69 = tpu.matmul %68, %57, %cst_37 {dimension_numbers = #tpu.dot_dimension_numbers<[1], [0], [0], [1], [0, 0, 1, 1], [], []>} : vector<16x16xf32>, vector<16x32xf32>, vector<16x32xf32> -> vector<16x32xf32>
    %c0_38 = arith.constant 0 : index
    %c64 = arith.constant 64 : index
    %70 = vector.load %arg14[%c0_38, %c64] : memref<16x128xf32, #tpu.memory_space<vmem>>, vector<16x32xf32>
    tpu.vector_store %arg14[%c0_38, %c64], %69 {strides = array<i32>} : memref<16x128xf32, #tpu.memory_space<vmem>>, vector<16x32xf32>,
    %71 = vector.extract_strided_slice %12 {offsets = [0, 96], sizes = [16, 32], strides = [1, 1]} : vector<16x128xf32> to vector<16x32xf32>
    %72 = vector.extract_strided_slice %17 {offsets = [0, 96], sizes = [16, 32], strides = [1, 1]} : vector<16x128xf32> to vector<16x32xf32>
    %73 = vector.extract_strided_slice %22 {offsets = [0, 96], sizes = [16, 32], strides = [1, 1]} : vector<16x128xf32> to vector<16x32xf32>
    "tpu.trace_start"() <{level = 10 : i32, message = "qd,kd->qk"}> : () -> ()
    %cst_39 = arith.constant dense<0.000000e+00> : vector<16x16xf32>
    %74 = tpu.matmul %71, %72, %cst_39 {dimension_numbers = #tpu.dot_dimension_numbers<[1], [1], [0], [0], [0, 0, 1, 0], [], []>} : vector<16x32xf32>, vector<16x32xf32>, vector<16x16xf32> -> vector<16x16xf32>
    "tpu.trace_stop"() : () -> ()
    %cst_40 = arith.constant dense<0xFF800000> : vector<16xf32>
    %75 = vector.multi_reduction <maximumf>, %74, %cst_40 [1] : vector<16x16xf32> to vector<16xf32>
    %76 = vector.shape_cast %75 : vector<16xf32> to vector<16x1xf32>
    %77 = vector.broadcast %76 : vector<16x1xf32> to vector<16x16xf32>
    %78 = arith.subf %74, %77 : vector<16x16xf32>
    %79 = math.exp %78 : vector<16x16xf32>
    %cst_41 = arith.constant dense<0.000000e+00> : vector<16xf32>
    %80 = vector.multi_reduction <add>, %79, %cst_41 [1] : vector<16x16xf32> to vector<16xf32>
    %81 = vector.shape_cast %80 : vector<16xf32> to vector<16x1xf32>
    %82 = tpu.reciprocal %81 {approx = true} : vector<16x1xf32> -> vector<16x1xf32>
    %83 = vector.broadcast %82 : vector<16x1xf32> to vector<16x16xf32>
    %84 = arith.mulf %79, %83 : vector<16x16xf32>
    %cst_42 = arith.constant dense<0.000000e+00> : vector<16x32xf32>
    %85 = tpu.matmul %84, %73, %cst_42 {dimension_numbers = #tpu.dot_dimension_numbers<[1], [0], [0], [1], [0, 0, 1, 1], [], []>} : vector<16x16xf32>, vector<16x32xf32>, vector<16x32xf32> -> vector<16x32xf32>
    %c0_43 = arith.constant 0 : index
    %c96 = arith.constant 96 : index
    %86 = vector.load %arg14[%c0_43, %c96] : memref<16x128xf32, #tpu.memory_space<vmem>>, vector<16x32xf32>
    tpu.vector_store %arg14[%c0_43, %c96], %85 {strides = array<i32>} : memref<16x128xf32, #tpu.memory_space<vmem>>, vector<16x32xf32>,
    %c0_44 = arith.constant 0 : index
    %c0_45 = arith.constant 0 : index
    %87 = vector.load %arg14[%c0_44, %c0_45] : memref<16x128xf32, #tpu.memory_space<vmem>>, vector<16x128xf32>
    %c0_46 = arith.constant 0 : index
    %c0_47 = arith.constant 0 : index
    %88 = vector.load %arg11[%c0_46, %c0_47] : memref<128x128xf32, #tpu.memory_space<vmem>>, vector<128x128xf32>
    %cst_48 = arith.constant dense<0.000000e+00> : vector<16x128xf32>
    %89 = tpu.matmul %87, %88, %cst_48 {dimension_numbers = #tpu.dot_dimension_numbers<[1], [0], [0], [1], [0, 0, 1, 1], [], []>} : vector<16x128xf32>, vector<128x128xf32>, vector<16x128xf32> -> vector<16x128xf32>
    %c0_49 = arith.constant 0 : index
    %c0_50 = arith.constant 0 : index
    %90 = vector.load %arg12[%c0_49, %c0_50] : memref<1x128xf32, #tpu.memory_space<vmem>>, vector<1x128xf32>
    %91 = vector.broadcast %90 : vector<1x128xf32> to vector<16x128xf32>
    %92 = arith.addf %89, %91 : vector<16x128xf32>
    %c0_51 = arith.constant 0 : index
    %c0_52 = arith.constant 0 : index
    %c0_53 = arith.constant 0 : index
    %93 = vector.load %arg13[%c0_51, %c0_52, %c0_53] : memref<1x16x128xf32, #tpu.memory_space<vmem>>, vector<1x16x128xf32>
    %94 = vector.shape_cast %93 : vector<1x16x128xf32> to vector<16x128xf32>
    %95 = vector.shape_cast %92 : vector<16x128xf32> to vector<1x16x128xf32>
    tpu.vector_store %arg13[%c0_51, %c0_52, %c0_53], %95 {strides = array<i32>} : memref<1x16x128xf32, #tpu.memory_space<vmem>>, vector<1x16x128xf32>,
    return
  }
  func.func @transform_0(%arg0: i32, %arg1: i32) -> (i32, i32, i32) {
    %c0_i32 = arith.constant 0 : i32
    %c0_i32_0 = arith.constant 0 : i32
    return %arg0, %arg1, %c0_i32 : i32, i32, i32
  }
  func.func @transform_1(%arg0: i32, %arg1: i32) -> (i32, i32, i32) {
    %c0_i32 = arith.constant 0 : i32
    %c0_i32_0 = arith.constant 0 : i32
    %c0_i32_1 = arith.constant 0 : i32
    return %arg0, %c0_i32, %c0_i32_0 : i32, i32, i32
  }
  func.func @transform_2(%arg0: i32, %arg1: i32) -> (i32, i32, i32) {
    %c0_i32 = arith.constant 0 : i32
    %c0_i32_0 = arith.constant 0 : i32
    %c0_i32_1 = arith.constant 0 : i32
    return %arg0, %c0_i32, %c0_i32_0 : i32, i32, i32
  }
  func.func @transform_3(%arg0: i32, %arg1: i32) -> (i32, i32) {
    %c0_i32 = arith.constant 0 : i32
    %c0_i32_0 = arith.constant 0 : i32
    %c0_i32_1 = arith.constant 0 : i32
    return %c0_i32, %c0_i32_0 : i32, i32
  }
  func.func @transform_4(%arg0: i32, %arg1: i32) -> (i32, i32) {
    %c0_i32 = arith.constant 0 : i32
    %c0_i32_0 = arith.constant 0 : i32
    %c0_i32_1 = arith.constant 0 : i32
    return %c0_i32, %c0_i32_0 : i32, i32
  }
  func.func @transform_5(%arg0: i32, %arg1: i32) -> (i32, i32) {
    %c0_i32 = arith.constant 0 : i32
    %c0_i32_0 = arith.constant 0 : i32
    %c0_i32_1 = arith.constant 0 : i32
    return %c0_i32, %c0_i32_0 : i32, i32
  }
  func.func @transform_6(%arg0: i32, %arg1: i32) -> (i32, i32) {
    %c0_i32 = arith.constant 0 : i32
    %c0_i32_0 = arith.constant 0 : i32
    %c0_i32_1 = arith.constant 0 : i32
    return %c0_i32, %c0_i32_0 : i32, i32
  }
  func.func @transform_7(%arg0: i32, %arg1: i32) -> (i32, i32) {
    %c0_i32 = arith.constant 0 : i32
    %c0_i32_0 = arith.constant 0 : i32
    %c0_i32_1 = arith.constant 0 : i32
    return %c0_i32, %c0_i32_0 : i32, i32
  }
  func.func @transform_8(%arg0: i32, %arg1: i32) -> (i32, i32) {
    %c0_i32 = arith.constant 0 : i32
    %c0_i32_0 = arith.constant 0 : i32
    %c0_i32_1 = arith.constant 0 : i32
    return %c0_i32, %c0_i32_0 : i32, i32
  }
  func.func @transform_9(%arg0: i32, %arg1: i32) -> (i32, i32) {
    %c0_i32 = arith.constant 0 : i32
    %c0_i32_0 = arith.constant 0 : i32
    %c0_i32_1 = arith.constant 0 : i32
    return %c0_i32, %c0_i32_0 : i32, i32
  }
  func.func @transform_10(%arg0: i32, %arg1: i32) -> (i32, i32) {
    %c0_i32 = arith.constant 0 : i32
    %c0_i32_0 = arith.constant 0 : i32
    %c0_i32_1 = arith.constant 0 : i32
    return %c0_i32, %c0_i32_0 : i32, i32
  }
  func.func @transform_11(%arg0: i32, %arg1: i32) -> (i32, i32, i32) {
    %c0_i32 = arith.constant 0 : i32
    %c0_i32_0 = arith.constant 0 : i32
    return %arg0, %arg1, %c0_i32 : i32, i32, i32
  }
}

</mosaic_0001>

<llo_original>
// kernel: tpu_custom_call.1
$region0: #{tpu_custom_call.1}
  #allocation0 [shape = 'u32[]', space=smem, size = 0x4, offset = 0x4, fixed_abs, tag = 'smem constant byte address 0x4 - core index']
  #allocation1 [shape = 'u32[72,128]{1,0:T(1,128)}', space=vmem, size = 0x9000, scoped, tag = 'internal scratch']
  #allocation2 [shape = 'f32[16,128]{1,0:T(8,128)}', space=vmem, size = 0x2000, scoped, tag = 'scratch operand']
  %s0 = inlined_call_operand.hbm [shape: f32[2,16,128], index: 0, kind: input, shape index: {}]
  %s1 = inlined_call_operand.hbm [shape: f32[2,16,128], index: 1, kind: input, shape index: {}]
  %s2 = inlined_call_operand.hbm [shape: f32[2,16,128], index: 2, kind: input, shape index: {}]
  %s3 = inlined_call_operand.hbm [shape: f32[128,128], index: 3, kind: input, shape index: {}]
  %s4 = inlined_call_operand.vmem [shape: f32[1,128], index: 4, kind: input, shape index: {}]
  %s5 = inlined_call_operand.hbm [shape: f32[128,128], index: 5, kind: input, shape index: {}]
  %s6 = inlined_call_operand.vmem [shape: f32[1,128], index: 6, kind: input, shape index: {}]
  %s7 = inlined_call_operand.hbm [shape: f32[128,128], index: 7, kind: input, shape index: {}]
  %s8 = inlined_call_operand.vmem [shape: f32[1,128], index: 8, kind: input, shape index: {}]
  %s9 = inlined_call_operand.hbm [shape: f32[128,128], index: 9, kind: input, shape index: {}]
  %s10 = inlined_call_operand.vmem [shape: f32[1,128], index: 10, kind: input, shape index: {}]
  %s11 = inlined_call_operand.hbm [shape: f32[2,16,128], index: 11, kind: output, shape index: {}]
  %s12 = sld [smem:[#allocation0]]
  $region105: #{tpu_custom_call.1} parent=0
    _
  %s14 = ssub.s32 1, %s12
  %s15 = scalar_select 0, %s14, %s12
  $region1: #{tpu_custom_call.1} parent=0
    #allocation3 [shape = 'u8[16384]{0}', space=vmem, size = 0x4000, scoped, tag = 'input window, operand 0']
    #allocation4 [shape = 's32[2]{0}', space=sflag, size = 0x8, scoped, tag = 'scoped memory for tpu_custom_call.1']
    #allocation5 [shape = 's32[2]{0}', space=sflag, size = 0x8, scoped, tag = 'scoped memory for tpu_custom_call.1']
    #allocation6 [shape = 'u8[16384]{0}', space=vmem, size = 0x4000, scoped, tag = 'input window, operand 1']
    #allocation7 [shape = 's32[2]{0}', space=sflag, size = 0x8, scoped, tag = 'scoped memory for tpu_custom_call.1']
    #allocation8 [shape = 'u8[16384]{0}', space=vmem, size = 0x4000, scoped, tag = 'input window, operand 2']
    #allocation9 [shape = 'u8[65536]{0}', space=vmem, size = 0x10000, scoped, tag = 'input window, operand 3, single buffered']
    #allocation10 [shape = 's32[1]{0}', space=sflag, size = 0x4, scoped, tag = 'scoped memory for tpu_custom_call.1']
    #allocation11 [shape = 'u8[65536]{0}', space=vmem, size = 0x10000, scoped, tag = 'input window, operand 5, single buffered']
    #allocation12 [shape = 'u8[65536]{0}', space=vmem, size = 0x10000, scoped, tag = 'input window, operand 7, single buffered']
    #allocation13 [shape = 's32[1]{0}', space=sflag, size = 0x4, scoped, tag = 'scoped memory for tpu_custom_call.1']
    #allocation14 [shape = 'u8[65536]{0}', space=vmem, size = 0x10000, scoped, tag = 'input window, operand 9, single buffered']
    #allocation15 [shape = 'u8[16384]{0}', space=vmem, size = 0x4000, scoped, tag = 'output window, operand 0']
    %16 = vsyncpa [#allocation4], 0
    %s17 = scalar_lea.sflag [#allocation4], 1
    %18 = vsyncpa %s17, 0
    %19 = vsyncpa [#allocation7], 0
    %s20 = scalar_lea.sflag [#allocation7], 1
    %21 = vsyncpa %s20, 0
    %22 = vsyncpa [#allocation10], 0
    %23 = vsyncpa [#allocation13], 0
    %24 = vsyncpa [#allocation5], 0
    %s25 = scalar_lea.sflag [#allocation5], 1
    %26 = vsyncpa %s25, 0
    loop: start=0, step=1, limit=4
    $region2: #{tpu_custom_call.1} parent=1 // loop_pre_header
      _
    $region3: #{tpu_custom_call.1} parent=1 // loop_header
      %s28 = sphi 0, %s32
      %p29 = scmp.ge.s32.totalorder %s28, 4
      %s35 = sphi 0, %s47
      %s36 = sphi 0, %s43
      %s37 = sphi 0, %s35
      %s38 = sphi 0, %s36
      %s39 = sphi 0, %s37
      %s40 = sphi 0, %s38
      %s52 = sphi 0, %s54
      %s55 = sphi 0, %s52
      %s56 = sphi 0, %s55
      %s72 = sphi 0, %s56
      %s78 = sphi 0, %s80
      %s81 = sphi 0, %s78
      %s82 = sphi 0, %s81
      %s98 = sphi 0, %s82
      %s104 = sphi 0, %s106
      %s107 = sphi 0, %s104
      %s108 = sphi 0, %s107
      %s124 = sphi 0, %s108
      %s128 = sphi 0, %s128
      %s130 = sphi 0, %s128
      %s131 = sphi 0, %s130
      %s145 = sphi 0, %s131
      %s149 = sphi 0, %s149
      %s151 = sphi 0, %s149
      %s152 = sphi 0, %s151
      %s166 = sphi 0, %s152
      %s170 = sphi 0, %s170
      %s172 = sphi 0, %s170
      %s173 = sphi 0, %s172
      %s187 = sphi 0, %s173
      %s191 = sphi 0, %s191
      %s193 = sphi 0, %s191
      %s194 = sphi 0, %s193
      %s208 = sphi 0, %s194
      %s212 = sphi 0, %s212
      %s214 = sphi 0, %s212
      %s215 = sphi 0, %s214
      %s229 = sphi 0, %s215
      %s233 = sphi 0, %s233
      %s235 = sphi 0, %s233
      %s236 = sphi 0, %s235
      %s250 = sphi 0, %s236
      %s254 = sphi 0, %s254
      %s256 = sphi 0, %s254
      %s257 = sphi 0, %s256
      %s271 = sphi 0, %s257
      %s275 = sphi 0, %s275
      %s277 = sphi 0, %s275
      %s278 = sphi 0, %s277
      %s292 = sphi 0, %s278
      %s300 = sphi 0, %s302
      %s303 = sphi 0, %s300
      %s304 = sphi 0, %s303
      %s320 = sphi 0, %s304
    $region4: #{tpu_custom_call.1} parent=1 // loop_header_branch
      %31 = sbr.rel (%p29) target = $region8
    $region5: #{tpu_custom_call.1} parent=1 // loop_body
      %s33 = ssub.s32 %s28, 1
      %s34 = ssub.s32 %s28, 2
      %s41 = sadd.s32 1, %s36
      %p42 = scmp.ge.s32.totalorder %s41, 1
      %s43 = scalar_select %p42, 0, %s41
      %s44 = sadd.s32 1, %s35
      %s45 = scalar_select %p42, %s44, %s35
      %p46 = scmp.ge.s32.totalorder %s45, 2
      %s47 = scalar_select %p46, 0, %s45
      %s48 = ssub.s32 %s35, %s47
      %s49 = ssub.s32 %s36, %s43
      %s50 = sor.u32 %s48, %s49
      %p51 = scmp.eq.s32.totalorder %s50, 0
      %s53 = sadd.s32 %s52, 1
      %s54 = scalar_select %p51, %s52, %s53
      %p57 = pneg %p51
      %p58 = scmp.eq.s32.totalorder %s28, 1
      %p59 = por %p57, %p58
      %p60 = scmp.ne.s32.totalorder %s52, %s55
      %p61 = scmp.eq.s32.totalorder %s28, 0
      %p62 = por %p60, %p61
      %p63 = scmp.ne.s32.totalorder %s52, %s55
      %p64 = scmp.eq.s32.totalorder %s33, 1
      %p65 = por %p63, %p64
      %p66 = scmp.ne.s32.totalorder %s55, %s56
      %p67 = scmp.eq.s32.totalorder %s33, 0
      %p68 = por %p66, %p67
      %p69 = scmp.ne.s32.totalorder %s55, %s56
      %p70 = scmp.eq.s32.totalorder %s34, 1
      %p71 = por %p69, %p70
      %p73 = scmp.ne.s32.totalorder %s56, %s72
      %p74 = scmp.eq.s32.totalorder %s34, 0
      %p75 = por %p73, %p74
      %s76 = ssub.s32 %s35, %s47
      %p77 = scmp.eq.s32.totalorder %s76, 0
      %s79 = sadd.s32 %s78, 1
      %s80 = scalar_select %p77, %s78, %s79
      %p83 = pneg %p77
      %p84 = scmp.eq.s32.totalorder %s28, 1
      %p85 = por %p83, %p84
      %p86 = scmp.ne.s32.totalorder %s78, %s81
      %p87 = scmp.eq.s32.totalorder %s28, 0
      %p88 = por %p86, %p87
      %p89 = scmp.ne.s32.totalorder %s78, %s81
      %p90 = scmp.eq.s32.totalorder %s33, 1
      %p91 = por %p89, %p90
      %p92 = scmp.ne.s32.totalorder %s81, %s82
      %p93 = scmp.eq.s32.totalorder %s33, 0
      %p94 = por %p92, %p93
      %p95 = scmp.ne.s32.totalorder %s81, %s82
      %p96 = scmp.eq.s32.totalorder %s34, 1
      %p97 = por %p95, %p96
      %p99 = scmp.ne.s32.totalorder %s82, %s98
      %p100 = scmp.eq.s32.totalorder %s34, 0
      %p101 = por %p99, %p100
      %s102 = ssub.s32 %s35, %s47
      %p103 = scmp.eq.s32.totalorder %s102, 0
      %s105 = sadd.s32 %s104, 1
      %s106 = scalar_select %p103, %s104, %s105
      %p109 = pneg %p103
      %p110 = scmp.eq.s32.totalorder %s28, 1
      %p111 = por %p109, %p110
      %p112 = scmp.ne.s32.totalorder %s104, %s107
      %p113 = scmp.eq.s32.totalorder %s28, 0
      %p114 = por %p112, %p113
      %p115 = scmp.ne.s32.totalorder %s104, %s107
      %p116 = scmp.eq.s32.totalorder %s33, 1
      %p117 = por %p115, %p116
      %p118 = scmp.ne.s32.totalorder %s107, %s108
      %p119 = scmp.eq.s32.totalorder %s33, 0
      %p120 = por %p118, %p119
      %p121 = scmp.ne.s32.totalorder %s107, %s108
      %p122 = scmp.eq.s32.totalorder %s34, 1
      %p123 = por %p121, %p122
      %p125 = scmp.ne.s32.totalorder %s108, %s124
      %p126 = scmp.eq.s32.totalorder %s34, 0
      %p127 = por %p125, %p126
      %s129 = sadd.s32 %s128, 1
      %p132 = scmp.eq.s32.totalorder %s28, 1
      %p133 = scmp.ne.s32.totalorder %s128, %s130
      %p134 = scmp.eq.s32.totalorder %s28, 0
      %p135 = por %p133, %p134
      %p136 = scmp.ne.s32.totalorder %s128, %s130
      %p137 = scmp.eq.s32.totalorder %s33, 1
      %p138 = por %p136, %p137
      %p139 = scmp.ne.s32.totalorder %s130, %s131
      %p140 = scmp.eq.s32.totalorder %s33, 0
      %p141 = por %p139, %p140
      %p142 = scmp.ne.s32.totalorder %s130, %s131
      %p143 = scmp.eq.s32.totalorder %s34, 1
      %p144 = por %p142, %p143
      %p146 = scmp.ne.s32.totalorder %s131, %s145
      %p147 = scmp.eq.s32.totalorder %s34, 0
      %p148 = por %p146, %p147
      %s150 = sadd.s32 %s149, 1
      %p153 = scmp.eq.s32.totalorder %s28, 1
      %p154 = scmp.ne.s32.totalorder %s149, %s151
      %p155 = scmp.eq.s32.totalorder %s28, 0
      %p156 = por %p154, %p155
      %p157 = scmp.ne.s32.totalorder %s149, %s151
      %p158 = scmp.eq.s32.totalorder %s33, 1
      %p159 = por %p157, %p158
      %p160 = scmp.ne.s32.totalorder %s151, %s152
      %p161 = scmp.eq.s32.totalorder %s33, 0
      %p162 = por %p160, %p161
      %p163 = scmp.ne.s32.totalorder %s151, %s152
      %p164 = scmp.eq.s32.totalorder %s34, 1
      %p165 = por %p163, %p164
      %p167 = scmp.ne.s32.totalorder %s152, %s166
      %p168 = scmp.eq.s32.totalorder %s34, 0
      %p169 = por %p167, %p168
      %s171 = sadd.s32 %s170, 1
      %p174 = scmp.eq.s32.totalorder %s28, 1
      %p175 = scmp.ne.s32.totalorder %s170, %s172
      %p176 = scmp.eq.s32.totalorder %s28, 0
      %p177 = por %p175, %p176
      %p178 = scmp.ne.s32.totalorder %s170, %s172
      %p179 = scmp.eq.s32.totalorder %s33, 1
      %p180 = por %p178, %p179
      %p181 = scmp.ne.s32.totalorder %s172, %s173
      %p182 = scmp.eq.s32.totalorder %s33, 0
      %p183 = por %p181, %p182
      %p184 = scmp.ne.s32.totalorder %s172, %s173
      %p185 = scmp.eq.s32.totalorder %s34, 1
      %p186 = por %p184, %p185
      %p188 = scmp.ne.s32.totalorder %s173, %s187
      %p189 = scmp.eq.s32.totalorder %s34, 0
      %p190 = por %p188, %p189
      %s192 = sadd.s32 %s191, 1
      %p195 = scmp.eq.s32.totalorder %s28, 1
      %p196 = scmp.ne.s32.totalorder %s191, %s193
      %p197 = scmp.eq.s32.totalorder %s28, 0
      %p198 = por %p196, %p197
      %p199 = scmp.ne.s32.totalorder %s191, %s193
      %p200 = scmp.eq.s32.totalorder %s33, 1
      %p201 = por %p199, %p200
      %p202 = scmp.ne.s32.totalorder %s193, %s194
      %p203 = scmp.eq.s32.totalorder %s33, 0
      %p204 = por %p202, %p203
      %p205 = scmp.ne.s32.totalorder %s193, %s194
      %p206 = scmp.eq.s32.totalorder %s34, 1
      %p207 = por %p205, %p206
      %p209 = scmp.ne.s32.totalorder %s194, %s208
      %p210 = scmp.eq.s32.totalorder %s34, 0
      %p211 = por %p209, %p210
      %s213 = sadd.s32 %s212, 1
      %p216 = scmp.eq.s32.totalorder %s28, 1
      %p217 = scmp.ne.s32.totalorder %s212, %s214
      %p218 = scmp.eq.s32.totalorder %s28, 0
      %p219 = por %p217, %p218
      %p220 = scmp.ne.s32.totalorder %s212, %s214
      %p221 = scmp.eq.s32.totalorder %s33, 1
      %p222 = por %p220, %p221
      %p223 = scmp.ne.s32.totalorder %s214, %s215
      %p224 = scmp.eq.s32.totalorder %s33, 0
      %p225 = por %p223, %p224
      %p226 = scmp.ne.s32.totalorder %s214, %s215
      %p227 = scmp.eq.s32.totalorder %s34, 1
      %p228 = por %p226, %p227
      %p230 = scmp.ne.s32.totalorder %s215, %s229
      %p231 = scmp.eq.s32.totalorder %s34, 0
      %p232 = por %p230, %p231
      %s234 = sadd.s32 %s233, 1
      %p237 = scmp.eq.s32.totalorder %s28, 1
      %p238 = scmp.ne.s32.totalorder %s233, %s235
      %p239 = scmp.eq.s32.totalorder %s28, 0
      %p240 = por %p238, %p239
      %p241 = scmp.ne.s32.totalorder %s233, %s235
      %p242 = scmp.eq.s32.totalorder %s33, 1
      %p243 = por %p241, %p242
      %p244 = scmp.ne.s32.totalorder %s235, %s236
      %p245 = scmp.eq.s32.totalorder %s33, 0
      %p246 = por %p244, %p245
      %p247 = scmp.ne.s32.totalorder %s235, %s236
      %p248 = scmp.eq.s32.totalorder %s34, 1
      %p249 = por %p247, %p248
      %p251 = scmp.ne.s32.totalorder %s236, %s250
      %p252 = scmp.eq.s32.totalorder %s34, 0
      %p253 = por %p251, %p252
      %s255 = sadd.s32 %s254, 1
      %p258 = scmp.eq.s32.totalorder %s28, 1
      %p259 = scmp.ne.s32.totalorder %s254, %s256
      %p260 = scmp.eq.s32.totalorder %s28, 0
      %p261 = por %p259, %p260
      %p262 = scmp.ne.s32.totalorder %s254, %s256
      %p263 = scmp.eq.s32.totalorder %s33, 1
      %p264 = por %p262, %p263
      %p265 = scmp.ne.s32.totalorder %s256, %s257
      %p266 = scmp.eq.s32.totalorder %s33, 0
      %p267 = por %p265, %p266
      %p268 = scmp.ne.s32.totalorder %s256, %s257
      %p269 = scmp.eq.s32.totalorder %s34, 1
      %p270 = por %p268, %p269
      %p272 = scmp.ne.s32.totalorder %s257, %s271
      %p273 = scmp.eq.s32.totalorder %s34, 0
      %p274 = por %p272, %p273
      %s276 = sadd.s32 %s275, 1
      %p279 = scmp.eq.s32.totalorder %s28, 1
      %p280 = scmp.ne.s32.totalorder %s275, %s277
      %p281 = scmp.eq.s32.totalorder %s28, 0
      %p282 = por %p280, %p281
      %p283 = scmp.ne.s32.totalorder %s275, %s277
      %p284 = scmp.eq.s32.totalorder %s33, 1
      %p285 = por %p283, %p284
      %p286 = scmp.ne.s32.totalorder %s277, %s278
      %p287 = scmp.eq.s32.totalorder %s33, 0
      %p288 = por %p286, %p287
      %p289 = scmp.ne.s32.totalorder %s277, %s278
      %p290 = scmp.eq.s32.totalorder %s34, 1
      %p291 = por %p289, %p290
      %p293 = scmp.ne.s32.totalorder %s278, %s292
      %p294 = scmp.eq.s32.totalorder %s34, 0
      %p295 = por %p293, %p294
      %s296 = ssub.s32 %s35, %s47
      %s297 = ssub.s32 %s36, %s43
      %s298 = sor.u32 %s296, %s297
      %p299 = scmp.eq.s32.totalorder %s298, 0
      %s301 = sadd.s32 %s300, 1
      %s302 = scalar_select %p299, %s300, %s301
      %p305 = pneg %p299
      %p306 = scmp.eq.s32.totalorder %s28, 1
      %p307 = por %p305, %p306
      %p308 = scmp.ne.s32.totalorder %s300, %s303
      %p309 = scmp.eq.s32.totalorder %s28, 0
      %p310 = por %p308, %p309
      %p311 = scmp.ne.s32.totalorder %s300, %s303
      %p312 = scmp.eq.s32.totalorder %s33, 1
      %p313 = por %p311, %p312
      %p314 = scmp.ne.s32.totalorder %s303, %s304
      %p315 = scmp.eq.s32.totalorder %s33, 0
      %p316 = por %p314, %p315
      %p317 = scmp.ne.s32.totalorder %s303, %s304
      %p318 = scmp.eq.s32.totalorder %s34, 1
      %p319 = por %p317, %p318
      %p321 = scmp.ne.s32.totalorder %s304, %s320
      %p322 = scmp.eq.s32.totalorder %s34, 0
      %p323 = por %p321, %p322
      %p324 = scmp.le.s32.totalorder 1, %s28
      %p325 = scmp.lt.s32.totalorder %s28, 3
      %p326 = pnand %p324, %p325
      %p327 = pneg %p326
      // Predicated region
      $region9: #{tpu_custom_call.1} parent=5 // pred_check
        _
      $region10: #{tpu_custom_call.1} parent=5 // pred_check_branch
        %329 = sbr.rel (%p326) target = $region12
      $region11: #{tpu_custom_call.1} parent=5 // pred_region
        %s330 = ssub.s32 %s28, 1
        // Predicated region
        $region13: #{tpu_custom_call.1} parent=11 // pred_check
          %p331 = pneg %p141
        $region14: #{tpu_custom_call.1} parent=11 // pred_check_branch
          %333 = sbr.rel (%p331) target = $region16
        $region15: #{tpu_custom_call.1} parent=11 // pred_region
          %335 = vsyncadd [#allocation10], 0
          %s336 = sshll.u32 %s3, 4
          %s337 = int_to_ptr.hbm [resolvable:$true] %s336
          %s338 = sshll.u32 [#allocation9], 4
          %s339 = int_to_ptr.vmem [resolvable:$true] %s338
          %344 = dma.hbm_to_vmem [thread:$0]  %s337, 2048, %s339, [#allocation10], 128, 128, 8
        $region16: #{tpu_custom_call.1} parent=11 // pred_fallthru
          _
        // Predicated region
        $region17: #{tpu_custom_call.1} parent=11 // pred_check
          %p345 = pneg %p162
        $region18: #{tpu_custom_call.1} parent=11 // pred_check_branch
          %347 = sbr.rel (%p345) target = $region20
        $region19: #{tpu_custom_call.1} parent=11 // pred_region
          _
        $region20: #{tpu_custom_call.1} parent=11 // pred_fallthru
          _
        // Predicated region
        $region21: #{tpu_custom_call.1} parent=11 // pred_check
          %p348 = pneg %p183
        $region22: #{tpu_custom_call.1} parent=11 // pred_check_branch
          %350 = sbr.rel (%p348) target = $region24
        $region23: #{tpu_custom_call.1} parent=11 // pred_region
          %352 = vsyncadd [#allocation10], 0
          %s353 = sshll.u32 %s5, 4
          %s354 = int_to_ptr.hbm [resolvable:$true] %s353
          %s355 = sshll.u32 [#allocation11], 4
          %s356 = int_to_ptr.vmem [resolvable:$true] %s355
          %361 = dma.hbm_to_vmem [thread:$0]  %s354, 2048, %s356, [#allocation10], 128, 128, 8
        $region24: #{tpu_custom_call.1} parent=11 // pred_fallthru
          _
        // Predicated region
        $region25: #{tpu_custom_call.1} parent=11 // pred_check
          %p362 = pneg %p204
        $region26: #{tpu_custom_call.1} parent=11 // pred_check_branch
          %364 = sbr.rel (%p362) target = $region28
        $region27: #{tpu_custom_call.1} parent=11 // pred_region
          _
        $region28: #{tpu_custom_call.1} parent=11 // pred_fallthru
          _
        // Predicated region
        $region29: #{tpu_custom_call.1} parent=11 // pred_check
          %p365 = pneg %p225
        $region30: #{tpu_custom_call.1} parent=11 // pred_check_branch
          %367 = sbr.rel (%p365) target = $region32
        $region31: #{tpu_custom_call.1} parent=11 // pred_region
          %369 = vsyncadd [#allocation13], 0
          %s370 = sshll.u32 %s7, 4
          %s371 = int_to_ptr.hbm [resolvable:$true] %s370
          %s372 = sshll.u32 [#allocation12], 4
          %s373 = int_to_ptr.vmem [resolvable:$true] %s372
          %378 = dma.hbm_to_vmem [thread:$0]  %s371, 2048, %s373, [#allocation13], 128, 128, 8
        $region32: #{tpu_custom_call.1} parent=11 // pred_fallthru
          _
        // Predicated region
        $region33: #{tpu_custom_call.1} parent=11 // pred_check
          %p379 = pneg %p246
        $region34: #{tpu_custom_call.1} parent=11 // pred_check_branch
          %381 = sbr.rel (%p379) target = $region36
        $region35: #{tpu_custom_call.1} parent=11 // pred_region
          _
        $region36: #{tpu_custom_call.1} parent=11 // pred_fallthru
          _
        // Predicated region
        $region37: #{tpu_custom_call.1} parent=11 // pred_check
          %p382 = pneg %p267
        $region38: #{tpu_custom_call.1} parent=11 // pred_check_branch
          %384 = sbr.rel (%p382) target = $region40
        $region39: #{tpu_custom_call.1} parent=11 // pred_region
          %386 = vsyncadd [#allocation13], 0
          %s387 = sshll.u32 %s9, 4
          %s388 = int_to_ptr.hbm [resolvable:$true] %s387
          %s389 = sshll.u32 [#allocation14], 4
          %s390 = int_to_ptr.vmem [resolvable:$true] %s389
          %395 = dma.hbm_to_vmem [thread:$0]  %s388, 2048, %s390, [#allocation13], 128, 128, 8
        $region40: #{tpu_custom_call.1} parent=11 // pred_fallthru
          _
        // Predicated region
        $region41: #{tpu_custom_call.1} parent=11 // pred_check
          %p396 = pneg %p288
        $region42: #{tpu_custom_call.1} parent=11 // pred_check_branch
          %398 = sbr.rel (%p396) target = $region44
        $region43: #{tpu_custom_call.1} parent=11 // pred_region
          _
        $region44: #{tpu_custom_call.1} parent=11 // pred_fallthru
          _
      $region12: #{tpu_custom_call.1} parent=5 // pred_fallthru
        _
      %p399 = scmp.lt.s32.totalorder %s28, 2
      // Predicated region
      $region45: #{tpu_custom_call.1} parent=5 // pred_check
        %p400 = pneg %p399
      $region46: #{tpu_custom_call.1} parent=5 // pred_check_branch
        %402 = sbr.rel (%p400) target = $region48
      $region47: #{tpu_custom_call.1} parent=5 // pred_region
        // Predicated region
        $region49: #{tpu_custom_call.1} parent=47 // pred_check
          %p403 = pneg %p62
        $region50: #{tpu_custom_call.1} parent=47 // pred_check_branch
          %405 = sbr.rel (%p403) target = $region52
        $region51: #{tpu_custom_call.1} parent=47 // pred_region
          %s406 = sand.u32 %s52, 1
          %s407 = scalar_lea.sflag [#allocation4], %s406
          %s408 = sand.u32 %s52, 1
          %s409 = smul.addr %s408, 16
          %s410 = scalar_lea.vmem [#allocation3], %s409
          %s411 = smul.u32 2, %s36
          %413 = vsyncadd %s407, 0
          %s414 = smul.addr %s35, 2
          %s415 = sadd.s32 %s411, %s414
          %s416 = smul.addr %s415, 8
          %s417 = scalar_lea.hbm %s0, %s416
          %s418 = sshll.u32 %s417, 4
          %s419 = int_to_ptr.hbm [resolvable:$true] %s418
          %s420 = sshll.u32 %s410, 4
          %s421 = int_to_ptr.vmem [resolvable:$true] %s420
          %426 = dma.hbm_to_vmem [thread:$0]  %s419, 256, %s421, %s407, 128, 128, 8
        $region52: #{tpu_custom_call.1} parent=47 // pred_fallthru
          _
        // Predicated region
        $region53: #{tpu_custom_call.1} parent=47 // pred_check
          %p427 = pneg %p88
        $region54: #{tpu_custom_call.1} parent=47 // pred_check_branch
          %429 = sbr.rel (%p427) target = $region56
        $region55: #{tpu_custom_call.1} parent=47 // pred_region
          %s430 = sand.u32 %s28, 1
          %s431 = scalar_lea.sflag [#allocation7], %s430
          %s432 = sand.u32 %s78, 1
          %s433 = smul.addr %s432, 16
          %s434 = scalar_lea.vmem [#allocation6], %s433
          %436 = vsyncadd %s431, 0
          %s437 = smul.addr %s35, 2
          %s438 = smul.addr %s437, 8
          %s439 = scalar_lea.hbm %s1, %s438
          %s440 = sshll.u32 %s439, 4
          %s441 = int_to_ptr.hbm [resolvable:$true] %s440
          %s442 = sshll.u32 %s434, 4
          %s443 = int_to_ptr.vmem [resolvable:$true] %s442
          %448 = dma.hbm_to_vmem [thread:$0]  %s441, 256, %s443, %s431, 128, 128, 8
        $region56: #{tpu_custom_call.1} parent=47 // pred_fallthru
          _
        // Predicated region
        $region57: #{tpu_custom_call.1} parent=47 // pred_check
          %p449 = pneg %p114
        $region58: #{tpu_custom_call.1} parent=47 // pred_check_branch
          %451 = sbr.rel (%p449) target = $region60
        $region59: #{tpu_custom_call.1} parent=47 // pred_region
          %s452 = sand.u32 %s28, 1
          %s453 = scalar_lea.sflag [#allocation7], %s452
          %s454 = sand.u32 %s104, 1
          %s455 = smul.addr %s454, 16
          %s456 = scalar_lea.vmem [#allocation8], %s455
          %458 = vsyncadd %s453, 0
          %s459 = smul.addr %s35, 2
          %s460 = smul.addr %s459, 8
          %s461 = scalar_lea.hbm %s2, %s460
          %s462 = sshll.u32 %s461, 4
          %s463 = int_to_ptr.hbm [resolvable:$true] %s462
          %s464 = sshll.u32 %s456, 4
          %s465 = int_to_ptr.vmem [resolvable:$true] %s464
          %470 = dma.hbm_to_vmem [thread:$0]  %s463, 256, %s465, %s453, 128, 128, 8
        $region60: #{tpu_custom_call.1} parent=47 // pred_fallthru
          _
      $region48: #{tpu_custom_call.1} parent=5 // pred_fallthru
        _
      %p471 = scmp.le.s32.totalorder 1, %s28
      %p472 = scmp.lt.s32.totalorder %s28, 3
      %p473 = pnand %p471, %p472
      %p474 = pneg %p473
      // Predicated region
      $region61: #{tpu_custom_call.1} parent=5 // pred_check
        _
      $region62: #{tpu_custom_call.1} parent=5 // pred_check_branch
        %476 = sbr.rel (%p473) target = $region64
      $region63: #{tpu_custom_call.1} parent=5 // pred_region
        %s477 = ssub.s32 %s28, 1
        %s478 = sand.u32 %s55, 1
        %s479 = scalar_lea.sflag [#allocation4], %s478
        %s480 = sand.u32 %s55, 1
        %s481 = smul.addr %s480, 16
        %s482 = scalar_lea.vmem [#allocation3], %s481
        // Predicated region
        $region65: #{tpu_custom_call.1} parent=63 // pred_check
          %p483 = pneg %p68
        $region66: #{tpu_custom_call.1} parent=63 // pred_check_branch
          %485 = sbr.rel (%p483) target = $region68
        $region67: #{tpu_custom_call.1} parent=63 // pred_region
          %487 = dma.done %s479, 256
        $region68: #{tpu_custom_call.1} parent=63 // pred_fallthru
          _
        %s488 = sand.u32 %s33, 1
        %s489 = scalar_lea.sflag [#allocation7], %s488
        %s490 = sand.u32 %s81, 1
        %s491 = smul.addr %s490, 16
        %s492 = scalar_lea.vmem [#allocation6], %s491
        // Predicated region
        $region69: #{tpu_custom_call.1} parent=63 // pred_check
          %p493 = pneg %p94
        $region70: #{tpu_custom_call.1} parent=63 // pred_check_branch
          %495 = sbr.rel (%p493) target = $region72
        $region71: #{tpu_custom_call.1} parent=63 // pred_region
          %497 = dma.done %s489, 256
        $region72: #{tpu_custom_call.1} parent=63 // pred_fallthru
          _
        %s498 = sand.u32 %s33, 1
        %s499 = scalar_lea.sflag [#allocation7], %s498
        %s500 = sand.u32 %s107, 1
        %s501 = smul.addr %s500, 16
        %s502 = scalar_lea.vmem [#allocation8], %s501
        // Predicated region
        $region73: #{tpu_custom_call.1} parent=63 // pred_check
          %p503 = pneg %p120
        $region74: #{tpu_custom_call.1} parent=63 // pred_check_branch
          %505 = sbr.rel (%p503) target = $region76
        $region75: #{tpu_custom_call.1} parent=63 // pred_region
          %507 = dma.done %s499, 256
        $region76: #{tpu_custom_call.1} parent=63 // pred_fallthru
          _
        // Predicated region
        $region77: #{tpu_custom_call.1} parent=63 // pred_check
          %p508 = pneg %p141
        $region78: #{tpu_custom_call.1} parent=63 // pred_check_branch
          %510 = sbr.rel (%p508) target = $region80
        $region79: #{tpu_custom_call.1} parent=63 // pred_region
          %512 = dma.done [#allocation10], 2048
        $region80: #{tpu_custom_call.1} parent=63 // pred_fallthru
          _
        // Predicated region
        $region81: #{tpu_custom_call.1} parent=63 // pred_check
          %p513 = pneg %p183
        $region82: #{tpu_custom_call.1} parent=63 // pred_check_branch
          %515 = sbr.rel (%p513) target = $region84
        $region83: #{tpu_custom_call.1} parent=63 // pred_region
          %517 = dma.done [#allocation10], 2048
        $region84: #{tpu_custom_call.1} parent=63 // pred_fallthru
          _
        // Predicated region
        $region85: #{tpu_custom_call.1} parent=63 // pred_check
          %p518 = pneg %p225
        $region86: #{tpu_custom_call.1} parent=63 // pred_check_branch
          %520 = sbr.rel (%p518) target = $region88
        $region87: #{tpu_custom_call.1} parent=63 // pred_region
          %522 = dma.done [#allocation13], 2048
        $region88: #{tpu_custom_call.1} parent=63 // pred_fallthru
          _
        // Predicated region
        $region89: #{tpu_custom_call.1} parent=63 // pred_check
          %p523 = pneg %p267
        $region90: #{tpu_custom_call.1} parent=63 // pred_check_branch
          %525 = sbr.rel (%p523) target = $region92
        $region91: #{tpu_custom_call.1} parent=63 // pred_region
          %527 = dma.done [#allocation13], 2048
        $region92: #{tpu_custom_call.1} parent=63 // pred_fallthru
          _
        %s528 = sand.u32 %s55, 1
        %s529 = scalar_lea.sflag [#allocation4], %s528
        %s530 = sand.u32 %s55, 1
        %s531 = smul.addr %s530, 16
        %s532 = scalar_lea.vmem [#allocation3], %s531
        %p533 = pneg %p68
        %p534 = pneg %p65
        %s535 = sand.u32 %s33, 1
        %s536 = scalar_lea.sflag [#allocation7], %s535
        %s537 = sand.u32 %s81, 1
        %s538 = smul.addr %s537, 16
        %s539 = scalar_lea.vmem [#allocation6], %s538
        %p540 = pneg %p94
        %p541 = pneg %p91
        %s542 = sand.u32 %s33, 1
        %s543 = scalar_lea.sflag [#allocation7], %s542
        %s544 = sand.u32 %s107, 1
        %s545 = smul.addr %s544, 16
        %s546 = scalar_lea.vmem [#allocation8], %s545
        %p547 = pneg %p120
        %p548 = pneg %p117
        %p549 = pneg %p141
        %p550 = pneg %p138
        %p551 = pneg %p162
        %p552 = pneg %p159
        %p553 = pneg %p183
        %p554 = pneg %p180
        %p555 = pneg %p204
        %p556 = pneg %p201
        %p557 = pneg %p225
        %p558 = pneg %p222
        %p559 = pneg %p246
        %p560 = pneg %p243
        %p561 = pneg %p267
        %p562 = pneg %p264
        %p563 = pneg %p288
        %p564 = pneg %p285
        %p565 = pneg %p316
        %p566 = pneg %p313
        %s567 = sand.u32 %s303, 1
        %s568 = scalar_lea.sflag [#allocation5], %s567
        %s569 = sand.u32 %s303, 1
        %s570 = smul.addr %s569, 16
        %s571 = scalar_lea.vmem [#allocation15], %s570
        %s572 = smul.u32 2, %s38
        %s573 = smul.u32 2, %s38
        %v574 = vld [vmem:[%s482] sm:$0xff]
        %v575 = vld [vmem:[%s482 + $0x8] sm:$0xff]
        %v576 = vld [vmem:[%s492] sm:$0xff]
        %v577 = vld [vmem:[%s492 + $0x8] sm:$0xff]
        %v578 = vld [vmem:[%s502] sm:$0xff]
        %v579 = vld [vmem:[%s502 + $0x8] sm:$0xff]
        %v580 = vld [vmem:[#allocation9] sm:$0xff]
        %v581 = vld [vmem:[#allocation9 + $0x8] sm:$0xff]
        %v582 = vld [vmem:[#allocation9 + $0x10] sm:$0xff]
        %v583 = vld [vmem:[#allocation9 + $0x18] sm:$0xff]
        %v584 = vld [vmem:[#allocation9 + $0x20] sm:$0xff]
        %v585 = vld [vmem:[#allocation9 + $0x28] sm:$0xff]
        %v586 = vld [vmem:[#allocation9 + $0x30] sm:$0xff]
        %v587 = vld [vmem:[#allocation9 + $0x38] sm:$0xff]
        %v588 = vld [vmem:[#allocation9 + $0x40] sm:$0xff]
        %v589 = vld [vmem:[#allocation9 + $0x48] sm:$0xff]
        %v590 = vld [vmem:[#allocation9 + $0x50] sm:$0xff]
        %v591 = vld [vmem:[#allocation9 + $0x58] sm:$0xff]
        %v592 = vld [vmem:[#allocation9 + $0x60] sm:$0xff]
        %v593 = vld [vmem:[#allocation9 + $0x68] sm:$0xff]
        %v594 = vld [vmem:[#allocation9 + $0x70] sm:$0xff]
        %v595 = vld [vmem:[#allocation9 + $0x78] sm:$0xff]
        %v596 = vld [vmem:[%s4] sm:$0x1]
        %v598 = vperm.slane %v596, 0
        %600 = vmatpush.msra.mxu0 %v595
        %601 = vmatpush.msra.mxu0 %v594
        %602 = vmatpush.msra.mxu0 %v593
        %603 = vmatpush.msra.mxu0 %v592
        %604 = vmatpush.msra.mxu0 %v591
        %605 = vmatpush.msra.mxu0 %v590
        %606 = vmatpush.msra.mxu0 %v589
        %607 = vmatpush.msra.mxu0 %v588
        %608 = vmatpush.msra.mxu0 %v587
        %609 = vmatpush.msra.mxu0 %v586
        %610 = vmatpush.msra.mxu0 %v585
        %611 = vmatpush.msra.mxu0 %v584
        %612 = vmatpush.msra.mxu0 %v583
        %613 = vmatpush.msra.mxu0 %v582
        %614 = vmatpush.msra.mxu0 %v581
        %615 = vmatpush.msra.mxu0 %v580
        %616 = vmatmul.f32.gmra.mxu0 %v574
        %v617 = vpop.f32.mrf.mxu0
        %v618 = vadd.f32 %v598, %v617
        %619 = vmatmul.f32.gmra.mxu0 %v575
        %v620 = vpop.f32.mrf.mxu0
        %v621 = vadd.f32 %v598, %v620
        %622 = vdwg.mxu0
        %v623 = vmul.f32 %v618, 0.17677669
        %v624 = vmul.f32 %v621, 0.17677669
        %v625 = vld [vmem:[#allocation11] sm:$0xff]
        %v626 = vld [vmem:[#allocation11 + $0x8] sm:$0xff]
        %v627 = vld [vmem:[#allocation11 + $0x10] sm:$0xff]
        %v628 = vld [vmem:[#allocation11 + $0x18] sm:$0xff]
        %v629 = vld [vmem:[#allocation11 + $0x20] sm:$0xff]
        %v630 = vld [vmem:[#allocation11 + $0x28] sm:$0xff]
        %v631 = vld [vmem:[#allocation11 + $0x30] sm:$0xff]
        %v632 = vld [vmem:[#allocation11 + $0x38] sm:$0xff]
        %v633 = vld [vmem:[#allocation11 + $0x40] sm:$0xff]
        %v634 = vld [vmem:[#allocation11 + $0x48] sm:$0xff]
        %v635 = vld [vmem:[#allocation11 + $0x50] sm:$0xff]
        %v636 = vld [vmem:[#allocation11 + $0x58] sm:$0xff]
        %v637 = vld [vmem:[#allocation11 + $0x60] sm:$0xff]
        %v638 = vld [vmem:[#allocation11 + $0x68] sm:$0xff]
        %v639 = vld [vmem:[#allocation11 + $0x70] sm:$0xff]
        %v640 = vld [vmem:[#allocation11 + $0x78] sm:$0xff]
        %v641 = vld [vmem:[%s6] sm:$0x1]
        %v643 = vperm.slane %v641, 0
        %645 = vmatpush.msra.mxu0 %v640
        %646 = vmatpush.msra.mxu0 %v639
        %647 = vmatpush.msra.mxu0 %v638
        %648 = vmatpush.msra.mxu0 %v637
        %649 = vmatpush.msra.mxu0 %v636
        %650 = vmatpush.msra.mxu0 %v635
        %651 = vmatpush.msra.mxu0 %v634
        %652 = vmatpush.msra.mxu0 %v633
        %653 = vmatpush.msra.mxu0 %v632
        %654 = vmatpush.msra.mxu0 %v631
        %655 = vmatpush.msra.mxu0 %v630
        %656 = vmatpush.msra.mxu0 %v629
        %657 = vmatpush.msra.mxu0 %v628
        %658 = vmatpush.msra.mxu0 %v627
        %659 = vmatpush.msra.mxu0 %v626
        %660 = vmatpush.msra.mxu0 %v625
        %661 = vmatmul.f32.gmra.mxu0 %v576
        %v662 = vpop.f32.mrf.mxu0
        %v663 = vadd.f32 %v643, %v662
        %664 = vmatmul.f32.gmra.mxu0 %v577
        %v665 = vpop.f32.mrf.mxu0
        %v666 = vadd.f32 %v643, %v665
        %667 = vdwg.mxu0
        %v668 = vld [vmem:[#allocation12] sm:$0xff]
        %v669 = vld [vmem:[#allocation12 + $0x8] sm:$0xff]
        %v670 = vld [vmem:[#allocation12 + $0x10] sm:$0xff]
        %v671 = vld [vmem:[#allocation12 + $0x18] sm:$0xff]
        %v672 = vld [vmem:[#allocation12 + $0x20] sm:$0xff]
        %v673 = vld [vmem:[#allocation12 + $0x28] sm:$0xff]
        %v674 = vld [vmem:[#allocation12 + $0x30] sm:$0xff]
        %v675 = vld [vmem:[#allocation12 + $0x38] sm:$0xff]
        %v676 = vld [vmem:[#allocation12 + $0x40] sm:$0xff]
        %v677 = vld [vmem:[#allocation12 + $0x48] sm:$0xff]
        %v678 = vld [vmem:[#allocation12 + $0x50] sm:$0xff]
        %v679 = vld [vmem:[#allocation12 + $0x58] sm:$0xff]
        %v680 = vld [vmem:[#allocation12 + $0x60] sm:$0xff]
        %v681 = vld [vmem:[#allocation12 + $0x68] sm:$0xff]
        %v682 = vld [vmem:[#allocation12 + $0x70] sm:$0xff]
        %v683 = vld [vmem:[#allocation12 + $0x78] sm:$0xff]
        %v684 = vld [vmem:[%s8] sm:$0x1]
        %v686 = vperm.slane %v684, 0
        %688 = vmatpush.msra.mxu0 %v683
        %689 = vmatpush.msra.mxu0 %v682
        %690 = vmatpush.msra.mxu0 %v681
        %691 = vmatpush.msra.mxu0 %v680
        %692 = vmatpush.msra.mxu0 %v679
        %693 = vmatpush.msra.mxu0 %v678
        %694 = vmatpush.msra.mxu0 %v677
        %695 = vmatpush.msra.mxu0 %v676
        %696 = vmatpush.msra.mxu0 %v675
        %697 = vmatpush.msra.mxu0 %v674
        %698 = vmatpush.msra.mxu0 %v673
        %699 = vmatpush.msra.mxu0 %v672
        %700 = vmatpush.msra.mxu0 %v671
        %701 = vmatpush.msra.mxu0 %v670
        %702 = vmatpush.msra.mxu0 %v669
        %703 = vmatpush.msra.mxu0 %v668
        %704 = vmatmul.f32.gmra.mxu0 %v578
        %v705 = vpop.f32.mrf.mxu0
        %v706 = vadd.f32 %v686, %v705
        %707 = vmatmul.f32.gmra.mxu0 %v579
        %v708 = vpop.f32.mrf.mxu0
        %v709 = vadd.f32 %v686, %v708
        %710 = vdwg.mxu0
        %vm711 = vcmask 261120
        %v713 = vsel %vm711, %v623, 0
        %v716 = vsel %vm711, %v624, 0
        %v719 = vsel %vm711, %v663, 0
        %v722 = vsel %vm711, %v666, 0
        %724 = vmatpush.xpose.msra.mxu0 0.0
        %725 = vmatpush.xpose.msra.mxu0 0.0
        %726 = vmatpush.xpose.msra.mxu0 0.0
        %727 = vmatpush.xpose.msra.mxu0 0.0
        %728 = vmatpush.xpose.msra.mxu0 0.0
        %729 = vmatpush.xpose.msra.mxu0 0.0
        %730 = vmatpush.xpose.msra.mxu0 0.0
        %731 = vmatpush.xpose.msra.mxu0 0.0
        %732 = vmatpush.xpose.msra.mxu0 0.0
        %733 = vmatpush.xpose.msra.mxu0 0.0
        %734 = vmatpush.xpose.msra.mxu0 0.0
        %735 = vmatpush.xpose.msra.mxu0 0.0
        %736 = vmatpush.xpose.msra.mxu0 0.0
        %737 = vmatpush.xpose.msra.mxu0 0.0
        %738 = vmatpush.xpose.msra.mxu0 %v722
        %739 = vmatpush.xpose.msra.mxu0 %v719
        %740 = vmatmul.f32.gmra.mxu0 %v713
        %v741 = vpop.f32.mrf.mxu0
        %v742 = vadd.f32 0.0, %v741
        %743 = vmatmul.f32.gmra.mxu0 %v716
        %v744 = vpop.f32.mrf.mxu0
        %v745 = vadd.f32 0.0, %v744
        %746 = vdwg.mxu0
        %vm747 = vcmask 130048
        %v748 = vsel %vm747, %v742, -inf
        %749 = vmax.xlane.f32.xlu0 %v748
        %v750 = vpop.xlane.xlu0 %749
        %v751 = vsel %vm747, %v745, -inf
        %752 = vmax.xlane.f32.xlu0 %v751
        %v753 = vpop.xlane.xlu0 %752
        %v754 = vsub.f32 %v742, %v750
        %v755 = vsub.f32 %v745, %v753
        %v756 = vmul.f32 %v754, 1.442695
        %v757 = vpow.pop %v756
        %v758 = vmul.f32 %v755, 1.442695
        %v759 = vpow.pop %v758
        %v760 = vsel %vm747, %v757, 0.0
        %761 = vadd.xlane.f32.xlu0 %v760
        %v762 = vpop.xlane.xlu0 %761
        %v763 = vsel %vm747, %v759, 0.0
        %764 = vadd.xlane.f32.xlu0 %v763
        %v765 = vpop.xlane.xlu0 %764
        %v766 = vrcp.pop %v762
        %v767 = vrcp.pop %v765
        %v768 = vmul.f32 %v757, %v766
        %v769 = vmul.f32 %v759, %v767
        %v771 = vsel %vm747, %v768, 0
        %v774 = vsel %vm747, %v769, 0
        %776 = vmatpush.msra.mxu0 0.0
        %777 = vmatpush.msra.mxu0 0.0
        %778 = vmatpush.msra.mxu0 0.0
        %779 = vmatpush.msra.mxu0 0.0
        %780 = vmatpush.msra.mxu0 0.0
        %781 = vmatpush.msra.mxu0 0.0
        %782 = vmatpush.msra.mxu0 0.0
        %783 = vmatpush.msra.mxu0 0.0
        %784 = vmatpush.msra.mxu0 0.0
        %785 = vmatpush.msra.mxu0 0.0
        %786 = vmatpush.msra.mxu0 0.0
        %787 = vmatpush.msra.mxu0 0.0
        %788 = vmatpush.msra.mxu0 0.0
        %789 = vmatpush.msra.mxu0 0.0
        %790 = vmatpush.msra.mxu0 %v709
        %791 = vmatpush.msra.mxu0 %v706
        %792 = vmatmul.f32.gmra.mxu0 %v771
        %v793 = vpop.f32.mrf.mxu0
        %v794 = vadd.f32 0.0, %v793
        %795 = vmatmul.f32.gmra.mxu0 %v774
        %v796 = vpop.f32.mrf.mxu0
        %v797 = vadd.f32 0.0, %v796
        %798 = vdwg.mxu0
        %799 = vst.msk [vmem:[#allocation2] sm:$0xff] %vm711, %v794
        %800 = vst.msk [vmem:[#allocation2 + $0x8] sm:$0xff] %vm711, %v797
        %801 = vrot.lane.b32.xlu0 %v623, 96
        %v802 = vpop.permute.xlu0 %801
        %803 = vrot.lane.b32.xlu0 %v624, 96
        %v804 = vpop.permute.xlu0 %803
        %805 = vrot.lane.b32.xlu0 %v663, 96
        %v806 = vpop.permute.xlu0 %805
        %807 = vrot.lane.b32.xlu0 %v666, 96
        %v808 = vpop.permute.xlu0 %807
        %v809 = vsel %vm711, %v802, 0
        %v811 = vsel %vm711, %v804, 0
        %v813 = vsel %vm711, %v806, 0
        %v815 = vsel %vm711, %v808, 0
        %817 = vmatpush.xpose.msra.mxu0 0.0
        %818 = vmatpush.xpose.msra.mxu0 0.0
        %819 = vmatpush.xpose.msra.mxu0 0.0
        %820 = vmatpush.xpose.msra.mxu0 0.0
        %821 = vmatpush.xpose.msra.mxu0 0.0
        %822 = vmatpush.xpose.msra.mxu0 0.0
        %823 = vmatpush.xpose.msra.mxu0 0.0
        %824 = vmatpush.xpose.msra.mxu0 0.0
        %825 = vmatpush.xpose.msra.mxu0 0.0
        %826 = vmatpush.xpose.msra.mxu0 0.0
        %827 = vmatpush.xpose.msra.mxu0 0.0
        %828 = vmatpush.xpose.msra.mxu0 0.0
        %829 = vmatpush.xpose.msra.mxu0 0.0
        %830 = vmatpush.xpose.msra.mxu0 0.0
        %831 = vmatpush.xpose.msra.mxu0 %v815
        %832 = vmatpush.xpose.msra.mxu0 %v813
        %833 = vmatmul.f32.gmra.mxu0 %v809
        %v834 = vpop.f32.mrf.mxu0
        %v835 = vadd.f32 0.0, %v834
        %836 = vmatmul.f32.gmra.mxu0 %v811
        %v837 = vpop.f32.mrf.mxu0
        %v838 = vadd.f32 0.0, %v837
        %839 = vdwg.mxu0
        %v840 = vsel %vm747, %v835, -inf
        %841 = vmax.xlane.f32.xlu0 %v840
        %v842 = vpop.xlane.xlu0 %841
        %v843 = vsel %vm747, %v838, -inf
        %844 = vmax.xlane.f32.xlu0 %v843
        %v845 = vpop.xlane.xlu0 %844
        %v846 = vsub.f32 %v835, %v842
        %v847 = vsub.f32 %v838, %v845
        %v848 = vmul.f32 %v846, 1.442695
        %v849 = vpow.pop %v848
        %v850 = vmul.f32 %v847, 1.442695
        %v851 = vpow.pop %v850
        %v852 = vsel %vm747, %v849, 0.0
        %853 = vadd.xlane.f32.xlu0 %v852
        %v854 = vpop.xlane.xlu0 %853
        %v855 = vsel %vm747, %v851, 0.0
        %856 = vadd.xlane.f32.xlu0 %v855
        %v857 = vpop.xlane.xlu0 %856
        %v858 = vrcp.pop %v854
        %v859 = vrcp.pop %v857
        %v860 = vmul.f32 %v849, %v858
        %v861 = vmul.f32 %v851, %v859
        %864 = vrot.lane.b32.xlu0 %v706, 96
        %v865 = vpop.permute.xlu0 %864
        %866 = vrot.lane.b32.xlu0 %v709, 96
        %v867 = vpop.permute.xlu0 %866
        %v871 = vsel %vm747, %v860, 0
        %v874 = vsel %vm747, %v861, 0
        %876 = vmatpush.msra.mxu0 0.0
        %877 = vmatpush.msra.mxu0 0.0
        %878 = vmatpush.msra.mxu0 0.0
        %879 = vmatpush.msra.mxu0 0.0
        %880 = vmatpush.msra.mxu0 0.0
        %881 = vmatpush.msra.mxu0 0.0
        %882 = vmatpush.msra.mxu0 0.0
        %883 = vmatpush.msra.mxu0 0.0
        %884 = vmatpush.msra.mxu0 0.0
        %885 = vmatpush.msra.mxu0 0.0
        %886 = vmatpush.msra.mxu0 0.0
        %887 = vmatpush.msra.mxu0 0.0
        %888 = vmatpush.msra.mxu0 0.0
        %889 = vmatpush.msra.mxu0 0.0
        %890 = vmatpush.msra.mxu0 %v867
        %891 = vmatpush.msra.mxu0 %v865
        %892 = vmatmul.f32.gmra.mxu0 %v871
        %v893 = vpop.f32.mrf.mxu0
        %v894 = vadd.f32 0.0, %v893
        %895 = vmatmul.f32.gmra.mxu0 %v874
        %v896 = vpop.f32.mrf.mxu0
        %v897 = vadd.f32 0.0, %v896
        %898 = vdwg.mxu0
        %901 = vrot.lane.b32.xlu0 %v894, 32
        %v902 = vpop.permute.xlu0 %901
        %903 = vrot.lane.b32.xlu0 %v897, 32
        %v904 = vpop.permute.xlu0 %903
        %vm907 = vcmask 523520
        %908 = vst.msk [vmem:[#allocation2] sm:$0xff] %vm907, %v902
        %909 = vst.msk [vmem:[#allocation2 + $0x8] sm:$0xff] %vm907, %v904
        %910 = vrot.lane.b32.xlu0 %v623, 64
        %v911 = vpop.permute.xlu0 %910
        %912 = vrot.lane.b32.xlu0 %v624, 64
        %v913 = vpop.permute.xlu0 %912
        %914 = vrot.lane.b32.xlu0 %v663, 64
        %v915 = vpop.permute.xlu0 %914
        %916 = vrot.lane.b32.xlu0 %v666, 64
        %v917 = vpop.permute.xlu0 %916
        %v918 = vsel %vm711, %v911, 0
        %v920 = vsel %vm711, %v913, 0
        %v922 = vsel %vm711, %v915, 0
        %v924 = vsel %vm711, %v917, 0
        %926 = vmatpush.xpose.msra.mxu0 0.0
        %927 = vmatpush.xpose.msra.mxu0 0.0
        %928 = vmatpush.xpose.msra.mxu0 0.0
        %929 = vmatpush.xpose.msra.mxu0 0.0
        %930 = vmatpush.xpose.msra.mxu0 0.0
        %931 = vmatpush.xpose.msra.mxu0 0.0
        %932 = vmatpush.xpose.msra.mxu0 0.0
        %933 = vmatpush.xpose.msra.mxu0 0.0
        %934 = vmatpush.xpose.msra.mxu0 0.0
        %935 = vmatpush.xpose.msra.mxu0 0.0
        %936 = vmatpush.xpose.msra.mxu0 0.0
        %937 = vmatpush.xpose.msra.mxu0 0.0
        %938 = vmatpush.xpose.msra.mxu0 0.0
        %939 = vmatpush.xpose.msra.mxu0 0.0
        %940 = vmatpush.xpose.msra.mxu0 %v924
        %941 = vmatpush.xpose.msra.mxu0 %v922
        %942 = vmatmul.f32.gmra.mxu0 %v918
        %v943 = vpop.f32.mrf.mxu0
        %v944 = vadd.f32 0.0, %v943
        %945 = vmatmul.f32.gmra.mxu0 %v920
        %v946 = vpop.f32.mrf.mxu0
        %v947 = vadd.f32 0.0, %v946
        %948 = vdwg.mxu0
        %v949 = vsel %vm747, %v944, -inf
        %950 = vmax.xlane.f32.xlu0 %v949
        %v951 = vpop.xlane.xlu0 %950
        %v952 = vsel %vm747, %v947, -inf
        %953 = vmax.xlane.f32.xlu0 %v952
        %v954 = vpop.xlane.xlu0 %953
        %v955 = vsub.f32 %v944, %v951
        %v956 = vsub.f32 %v947, %v954
        %v957 = vmul.f32 %v955, 1.442695
        %v958 = vpow.pop %v957
        %v959 = vmul.f32 %v956, 1.442695
        %v960 = vpow.pop %v959
        %v961 = vsel %vm747, %v958, 0.0
        %962 = vadd.xlane.f32.xlu0 %v961
        %v963 = vpop.xlane.xlu0 %962
        %v964 = vsel %vm747, %v960, 0.0
        %965 = vadd.xlane.f32.xlu0 %v964
        %v966 = vpop.xlane.xlu0 %965
        %v967 = vrcp.pop %v963
        %v968 = vrcp.pop %v966
        %v969 = vmul.f32 %v958, %v967
        %v970 = vmul.f32 %v960, %v968
        %971 = vrot.lane.b32.xlu0 %v706, 64
        %v972 = vpop.permute.xlu0 %971
        %973 = vrot.lane.b32.xlu0 %v709, 64
        %v974 = vpop.permute.xlu0 %973
        %v978 = vsel %vm747, %v969, 0
        %v981 = vsel %vm747, %v970, 0
        %983 = vmatpush.msra.mxu0 0.0
        %984 = vmatpush.msra.mxu0 0.0
        %985 = vmatpush.msra.mxu0 0.0
        %986 = vmatpush.msra.mxu0 0.0
        %987 = vmatpush.msra.mxu0 0.0
        %988 = vmatpush.msra.mxu0 0.0
        %989 = vmatpush.msra.mxu0 0.0
        %990 = vmatpush.msra.mxu0 0.0
        %991 = vmatpush.msra.mxu0 0.0
        %992 = vmatpush.msra.mxu0 0.0
        %993 = vmatpush.msra.mxu0 0.0
        %994 = vmatpush.msra.mxu0 0.0
        %995 = vmatpush.msra.mxu0 0.0
        %996 = vmatpush.msra.mxu0 0.0
        %997 = vmatpush.msra.mxu0 %v974
        %998 = vmatpush.msra.mxu0 %v972
        %999 = vmatmul.f32.gmra.mxu0 %v978
        %v1000 = vpop.f32.mrf.mxu0
        %v1001 = vadd.f32 0.0, %v1000
        %1002 = vmatmul.f32.gmra.mxu0 %v981
        %v1003 = vpop.f32.mrf.mxu0
        %v1004 = vadd.f32 0.0, %v1003
        %1005 = vdwg.mxu0
        %1008 = vrot.lane.b32.xlu0 %v1001, 64
        %v1009 = vpop.permute.xlu0 %1008
        %1010 = vrot.lane.b32.xlu0 %v1004, 64
        %v1011 = vpop.permute.xlu0 %1010
        %vm1014 = vcmask 785920
        %1015 = vst.msk [vmem:[#allocation2] sm:$0xff] %vm1014, %v1009
        %1016 = vst.msk [vmem:[#allocation2 + $0x8] sm:$0xff] %vm1014, %v1011
        %1017 = vrot.lane.b32.xlu0 %v623, 32
        %v1018 = vpop.permute.xlu0 %1017
        %1019 = vrot.lane.b32.xlu0 %v624, 32
        %v1020 = vpop.permute.xlu0 %1019
        %1021 = vrot.lane.b32.xlu0 %v663, 32
        %v1022 = vpop.permute.xlu0 %1021
        %1023 = vrot.lane.b32.xlu0 %v666, 32
        %v1024 = vpop.permute.xlu0 %1023
        %v1025 = vsel %vm711, %v1018, 0
        %v1027 = vsel %vm711, %v1020, 0
        %v1029 = vsel %vm711, %v1022, 0
        %v1031 = vsel %vm711, %v1024, 0
        %1033 = vmatpush.xpose.msra.mxu0 0.0
        %1034 = vmatpush.xpose.msra.mxu0 0.0
        %1035 = vmatpush.xpose.msra.mxu0 0.0
        %1036 = vmatpush.xpose.msra.mxu0 0.0
        %1037 = vmatpush.xpose.msra.mxu0 0.0
        %1038 = vmatpush.xpose.msra.mxu0 0.0
        %1039 = vmatpush.xpose.msra.mxu0 0.0
        %1040 = vmatpush.xpose.msra.mxu0 0.0
        %1041 = vmatpush.xpose.msra.mxu0 0.0
        %1042 = vmatpush.xpose.msra.mxu0 0.0
        %1043 = vmatpush.xpose.msra.mxu0 0.0
        %1044 = vmatpush.xpose.msra.mxu0 0.0
        %1045 = vmatpush.xpose.msra.mxu0 0.0
        %1046 = vmatpush.xpose.msra.mxu0 0.0
        %1047 = vmatpush.xpose.msra.mxu0 %v1031
        %1048 = vmatpush.xpose.msra.mxu0 %v1029
        %1049 = vmatmul.f32.gmra.mxu0 %v1025
        %v1050 = vpop.f32.mrf.mxu0
        %v1051 = vadd.f32 0.0, %v1050
        %1052 = vmatmul.f32.gmra.mxu0 %v1027
        %v1053 = vpop.f32.mrf.mxu0
        %v1054 = vadd.f32 0.0, %v1053
        %1055 = vdwg.mxu0
        %v1056 = vsel %vm747, %v1051, -inf
        %1057 = vmax.xlane.f32.xlu0 %v1056
        %v1058 = vpop.xlane.xlu0 %1057
        %v1059 = vsel %vm747, %v1054, -inf
        %1060 = vmax.xlane.f32.xlu0 %v1059
        %v1061 = vpop.xlane.xlu0 %1060
        %v1062 = vsub.f32 %v1051, %v1058
        %v1063 = vsub.f32 %v1054, %v1061
        %v1064 = vmul.f32 %v1062, 1.442695
        %v1065 = vpow.pop %v1064
        %v1066 = vmul.f32 %v1063, 1.442695
        %v1067 = vpow.pop %v1066
        %v1068 = vsel %vm747, %v1065, 0.0
        %1069 = vadd.xlane.f32.xlu0 %v1068
        %v1070 = vpop.xlane.xlu0 %1069
        %v1071 = vsel %vm747, %v1067, 0.0
        %1072 = vadd.xlane.f32.xlu0 %v1071
        %v1073 = vpop.xlane.xlu0 %1072
        %v1074 = vrcp.pop %v1070
        %v1075 = vrcp.pop %v1073
        %v1076 = vmul.f32 %v1065, %v1074
        %v1077 = vmul.f32 %v1067, %v1075
        %1078 = vrot.lane.b32.xlu0 %v706, 32
        %v1079 = vpop.permute.xlu0 %1078
        %1080 = vrot.lane.b32.xlu0 %v709, 32
        %v1081 = vpop.permute.xlu0 %1080
        %v1085 = vsel %vm747, %v1076, 0
        %v1088 = vsel %vm747, %v1077, 0
        %1090 = vmatpush.msra.mxu0 0.0
        %1091 = vmatpush.msra.mxu0 0.0
        %1092 = vmatpush.msra.mxu0 0.0
        %1093 = vmatpush.msra.mxu0 0.0
        %1094 = vmatpush.msra.mxu0 0.0
        %1095 = vmatpush.msra.mxu0 0.0
        %1096 = vmatpush.msra.mxu0 0.0
        %1097 = vmatpush.msra.mxu0 0.0
        %1098 = vmatpush.msra.mxu0 0.0
        %1099 = vmatpush.msra.mxu0 0.0
        %1100 = vmatpush.msra.mxu0 0.0
        %1101 = vmatpush.msra.mxu0 0.0
        %1102 = vmatpush.msra.mxu0 0.0
        %1103 = vmatpush.msra.mxu0 0.0
        %1104 = vmatpush.msra.mxu0 %v1081
        %1105 = vmatpush.msra.mxu0 %v1079
        %1106 = vmatmul.f32.gmra.mxu0 %v1085
        %v1107 = vpop.f32.mrf.mxu0
        %v1108 = vadd.f32 0.0, %v1107
        %1109 = vmatmul.f32.gmra.mxu0 %v1088
        %v1110 = vpop.f32.mrf.mxu0
        %v1111 = vadd.f32 0.0, %v1110
        %1112 = vdwg.mxu0
        %1115 = vrot.lane.b32.xlu0 %v1108, 96
        %v1116 = vpop.permute.xlu0 %1115
        %1117 = vrot.lane.b32.xlu0 %v1111, 96
        %v1118 = vpop.permute.xlu0 %1117
        %vm1121 = vcmask 1048320
        %1122 = vst.msk [vmem:[#allocation2] sm:$0xff] %vm1121, %v1116
        %1123 = vst.msk [vmem:[#allocation2 + $0x8] sm:$0xff] %vm1121, %v1118
        %v1124 = vld [vmem:[#allocation2] sm:$0xff]
        %v1125 = vld [vmem:[#allocation2 + $0x8] sm:$0xff]
        %v1126 = vld [vmem:[#allocation14] sm:$0xff]
        %v1127 = vld [vmem:[#allocation14 + $0x8] sm:$0xff]
        %v1128 = vld [vmem:[#allocation14 + $0x10] sm:$0xff]
        %v1129 = vld [vmem:[#allocation14 + $0x18] sm:$0xff]
        %v1130 = vld [vmem:[#allocation14 + $0x20] sm:$0xff]
        %v1131 = vld [vmem:[#allocation14 + $0x28] sm:$0xff]
        %v1132 = vld [vmem:[#allocation14 + $0x30] sm:$0xff]
        %v1133 = vld [vmem:[#allocation14 + $0x38] sm:$0xff]
        %v1134 = vld [vmem:[#allocation14 + $0x40] sm:$0xff]
        %v1135 = vld [vmem:[#allocation14 + $0x48] sm:$0xff]
        %v1136 = vld [vmem:[#allocation14 + $0x50] sm:$0xff]
        %v1137 = vld [vmem:[#allocation14 + $0x58] sm:$0xff]
        %v1138 = vld [vmem:[#allocation14 + $0x60] sm:$0xff]
        %v1139 = vld [vmem:[#allocation14 + $0x68] sm:$0xff]
        %v1140 = vld [vmem:[#allocation14 + $0x70] sm:$0xff]
        %v1141 = vld [vmem:[#allocation14 + $0x78] sm:$0xff]
        %v1142 = vld [vmem:[%s10] sm:$0x1]
        %v1144 = vperm.slane %v1142, 0
        %1146 = vmatpush.msra.mxu0 %v1141
        %1147 = vmatpush.msra.mxu0 %v1140
        %1148 = vmatpush.msra.mxu0 %v1139
        %1149 = vmatpush.msra.mxu0 %v1138
        %1150 = vmatpush.msra.mxu0 %v1137
        %1151 = vmatpush.msra.mxu0 %v1136
        %1152 = vmatpush.msra.mxu0 %v1135
        %1153 = vmatpush.msra.mxu0 %v1134
        %1154 = vmatpush.msra.mxu0 %v1133
        %1155 = vmatpush.msra.mxu0 %v1132
        %1156 = vmatpush.msra.mxu0 %v1131
        %1157 = vmatpush.msra.mxu0 %v1130
        %1158 = vmatpush.msra.mxu0 %v1129
        %1159 = vmatpush.msra.mxu0 %v1128
        %1160 = vmatpush.msra.mxu0 %v1127
        %1161 = vmatpush.msra.mxu0 %v1126
        %1162 = vmatmul.f32.gmra.mxu0 %v1124
        %v1163 = vpop.f32.mrf.mxu0
        %v1164 = vadd.f32 %v1144, %v1163
        %1165 = vmatmul.f32.gmra.mxu0 %v1125
        %v1166 = vpop.f32.mrf.mxu0
        %v1167 = vadd.f32 %v1144, %v1166
        %1168 = vdwg.mxu0
        %1169 = vst [vmem:[%s571] sm:$0xff] %v1164
        %1170 = vst [vmem:[%s571 + $0x8] sm:$0xff] %v1167
        %s1171 = sand.u32 %s303, 1
        %s1172 = scalar_lea.sflag [#allocation5], %s1171
        %s1173 = sand.u32 %s303, 1
        %s1174 = smul.addr %s1173, 16
        %s1175 = scalar_lea.vmem [#allocation15], %s1174
        // Predicated region
        $region93: #{tpu_custom_call.1} parent=63 // pred_check
          %p1176 = pneg %p313
        $region94: #{tpu_custom_call.1} parent=63 // pred_check_branch
          %1178 = sbr.rel (%p1176) target = $region96
        $region95: #{tpu_custom_call.1} parent=63 // pred_region
          %s1179 = smul.u32 2, %s38
          %1181 = vsyncadd %s1172, 0
          %s1182 = smul.addr %s37, 2
          %s1183 = sadd.s32 %s1179, %s1182
          %s1184 = smul.addr %s1183, 8
          %s1185 = scalar_lea.hbm %s11, %s1184
          %s1186 = sshll.u32 %s1175, 4
          %s1187 = int_to_ptr.vmem [resolvable:$true] %s1186
          %s1188 = sshll.u32 %s1185, 4
          %s1189 = int_to_ptr.hbm [resolvable:$true] %s1188
          %1194 = dma.vmem_to_hbm [thread:$0]  %s1187, 256, %s1189, %s1172, 128, 128, 8
        $region96: #{tpu_custom_call.1} parent=63 // pred_fallthru
          _
      $region64: #{tpu_custom_call.1} parent=5 // pred_fallthru
        _
      %p1195 = scmp.le.s32.totalorder 2, %s28
      // Predicated region
      $region97: #{tpu_custom_call.1} parent=5 // pred_check
        %p1196 = pneg %p1195
      $region98: #{tpu_custom_call.1} parent=5 // pred_check_branch
        %1198 = sbr.rel (%p1196) target = $region100
      $region99: #{tpu_custom_call.1} parent=5 // pred_region
        %s1199 = ssub.s32 %s28, 2
        // Predicated region
        $region101: #{tpu_custom_call.1} parent=99 // pred_check
          %p1200 = pneg %p319
        $region102: #{tpu_custom_call.1} parent=99 // pred_check_branch
          %1202 = sbr.rel (%p1200) target = $region104
        $region103: #{tpu_custom_call.1} parent=99 // pred_region
          %s1203 = sand.u32 %s304, 1
          %s1204 = scalar_lea.sflag [#allocation5], %s1203
          %s1205 = sand.u32 %s304, 1
          %s1206 = smul.addr %s1205, 16
          %s1207 = scalar_lea.vmem [#allocation15], %s1206
          %1209 = dma.done %s1204, 256
        $region104: #{tpu_custom_call.1} parent=99 // pred_fallthru
          _
      $region100: #{tpu_custom_call.1} parent=5 // pred_fallthru
        _
    $region6: #{tpu_custom_call.1} parent=1 // loop_footer
      %s32 = sadd.s32 1, %s28
    $region7: #{tpu_custom_call.1} parent=1 // loop_footer_branch
      %27 = sbr.rel target = $region3
    $region8: #{tpu_custom_call.1} parent=1 // loop_exit
      _
    %1210 = vsyncpa [#allocation4], 1
    %s1211 = scalar_lea.sflag [#allocation4], 1
    %1212 = vsyncpa %s1211, 1
    %1213 = vsyncpa [#allocation7], 1
    %s1214 = scalar_lea.sflag [#allocation7], 1
    %1215 = vsyncpa %s1214, 1
    %1216 = vsyncpa [#allocation10], 1
    %1217 = vsyncpa [#allocation13], 1
    %1218 = vsyncpa [#allocation5], 1
    %s1219 = scalar_lea.sflag [#allocation5], 1
    %1220 = vsyncpa %s1219, 1

// kernel: tpu_custom_call.1
$region0: #{tpu_custom_call.1}
  #allocation0 [shape = 'u32[]', space=smem, size = 0x4, offset = 0x4, fixed_abs, tag = 'smem constant byte address 0x4 - core index']
  #allocation1 [shape = 'u32[72,128]{1,0:T(1,128)}', space=vmem, size = 0x9000, scoped, tag = 'internal scratch']
  #allocation2 [shape = 'f32[16,128]{1,0:T(8,128)}', space=vmem, size = 0x2000, scoped, tag = 'scratch operand']
  %s0 = inlined_call_operand.hbm [shape: f32[2,16,128], index: 0, kind: input, shape index: {}]
  %s1 = inlined_call_operand.hbm [shape: f32[2,16,128], index: 1, kind: input, shape index: {}]
  %s2 = inlined_call_operand.hbm [shape: f32[2,16,128], index: 2, kind: input, shape index: {}]
  %s3 = inlined_call_operand.hbm [shape: f32[128,128], index: 3, kind: input, shape index: {}]
  %s4 = inlined_call_operand.vmem [shape: f32[1,128], index: 4, kind: input, shape index: {}]
  %s5 = inlined_call_operand.hbm [shape: f32[128,128], index: 5, kind: input, shape index: {}]
  %s6 = inlined_call_operand.vmem [shape: f32[1,128], index: 6, kind: input, shape index: {}]
  %s7 = inlined_call_operand.hbm [shape: f32[128,128], index: 7, kind: input, shape index: {}]
  %s8 = inlined_call_operand.vmem [shape: f32[1,128], index: 8, kind: input, shape index: {}]
  %s9 = inlined_call_operand.hbm [shape: f32[128,128], index: 9, kind: input, shape index: {}]
  %s10 = inlined_call_operand.vmem [shape: f32[1,128], index: 10, kind: input, shape index: {}]
  %s11 = inlined_call_operand.hbm [shape: f32[2,16,128], index: 11, kind: output, shape index: {}]
  %s12 = sld [smem:[#allocation0]]
  $region105: #{tpu_custom_call.1} parent=0
    _
  %s14 = ssub.s32 1, %s12
  %s15 = scalar_select 0, %s14, %s12
  $region1: #{tpu_custom_call.1} parent=0
    #allocation3 [shape = 'u8[16384]{0}', space=vmem, size = 0x4000, scoped, tag = 'input window, operand 0']
    #allocation4 [shape = 's32[2]{0}', space=sflag, size = 0x8, scoped, tag = 'scoped memory for tpu_custom_call.1']
    #allocation5 [shape = 's32[2]{0}', space=sflag, size = 0x8, scoped, tag = 'scoped memory for tpu_custom_call.1']
    #allocation6 [shape = 'u8[16384]{0}', space=vmem, size = 0x4000, scoped, tag = 'input window, operand 1']
    #allocation7 [shape = 's32[2]{0}', space=sflag, size = 0x8, scoped, tag = 'scoped memory for tpu_custom_call.1']
    #allocation8 [shape = 'u8[16384]{0}', space=vmem, size = 0x4000, scoped, tag = 'input window, operand 2']
    #allocation9 [shape = 'u8[65536]{0}', space=vmem, size = 0x10000, scoped, tag = 'input window, operand 3, single buffered']
    #allocation10 [shape = 's32[1]{0}', space=sflag, size = 0x4, scoped, tag = 'scoped memory for tpu_custom_call.1']
    #allocation11 [shape = 'u8[65536]{0}', space=vmem, size = 0x10000, scoped, tag = 'input window, operand 5, single buffered']
    #allocation12 [shape = 'u8[65536]{0}', space=vmem, size = 0x10000, scoped, tag = 'input window, operand 7, single buffered']
    #allocation13 [shape = 's32[1]{0}', space=sflag, size = 0x4, scoped, tag = 'scoped memory for tpu_custom_call.1']
    #allocation14 [shape = 'u8[65536]{0}', space=vmem, size = 0x10000, scoped, tag = 'input window, operand 9, single buffered']
    #allocation15 [shape = 'u8[16384]{0}', space=vmem, size = 0x4000, scoped, tag = 'output window, operand 0']
    %16 = vsyncpa [#allocation4], 0
    %s17 = scalar_lea.sflag [#allocation4], 1
    %18 = vsyncpa %s17, 0
    %19 = vsyncpa [#allocation7], 0
    %s20 = scalar_lea.sflag [#allocation7], 1
    %21 = vsyncpa %s20, 0
    %22 = vsyncpa [#allocation10], 0
    %23 = vsyncpa [#allocation13], 0
    %24 = vsyncpa [#allocation5], 0
    %s25 = scalar_lea.sflag [#allocation5], 1
    %26 = vsyncpa %s25, 0
    loop: start=0, step=1, limit=4
    $region2: #{tpu_custom_call.1} parent=1 // loop_pre_header
      _
    $region3: #{tpu_custom_call.1} parent=1 // loop_header
      %s28 = sphi 0, %s32
      %p29 = scmp.ge.s32.totalorder %s28, 4
      %s35 = sphi 0, %s47
      %s36 = sphi 0, %s43
      %s37 = sphi 0, %s35
      %s38 = sphi 0, %s36
      %s39 = sphi 0, %s37
      %s40 = sphi 0, %s38
      %s52 = sphi 0, %s54
      %s55 = sphi 0, %s52
      %s56 = sphi 0, %s55
      %s72 = sphi 0, %s56
      %s78 = sphi 0, %s80
      %s81 = sphi 0, %s78
      %s82 = sphi 0, %s81
      %s98 = sphi 0, %s82
      %s104 = sphi 0, %s106
      %s107 = sphi 0, %s104
      %s108 = sphi 0, %s107
      %s124 = sphi 0, %s108
      %s128 = sphi 0, %s128
      %s130 = sphi 0, %s128
      %s131 = sphi 0, %s130
      %s145 = sphi 0, %s131
      %s149 = sphi 0, %s149
      %s151 = sphi 0, %s149
      %s152 = sphi 0, %s151
      %s166 = sphi 0, %s152
      %s170 = sphi 0, %s170
      %s172 = sphi 0, %s170
      %s173 = sphi 0, %s172
      %s187 = sphi 0, %s173
      %s191 = sphi 0, %s191
      %s193 = sphi 0, %s191
      %s194 = sphi 0, %s193
      %s208 = sphi 0, %s194
      %s212 = sphi 0, %s212
      %s214 = sphi 0, %s212
      %s215 = sphi 0, %s214
      %s229 = sphi 0, %s215
      %s233 = sphi 0, %s233
      %s235 = sphi 0, %s233
      %s236 = sphi 0, %s235
      %s250 = sphi 0, %s236
      %s254 = sphi 0, %s254
      %s256 = sphi 0, %s254
      %s257 = sphi 0, %s256
      %s271 = sphi 0, %s257
      %s275 = sphi 0, %s275
      %s277 = sphi 0, %s275
      %s278 = sphi 0, %s277
      %s292 = sphi 0, %s278
      %s300 = sphi 0, %s302
      %s303 = sphi 0, %s300
      %s304 = sphi 0, %s303
      %s320 = sphi 0, %s304
    $region4: #{tpu_custom_call.1} parent=1 // loop_header_branch
      %31 = sbr.rel (%p29) target = $region8
    $region5: #{tpu_custom_call.1} parent=1 // loop_body
      %s33 = ssub.s32 %s28, 1
      %s34 = ssub.s32 %s28, 2
      %s41 = sadd.s32 1, %s36
      %p42 = scmp.ge.s32.totalorder %s41, 1
      %s43 = scalar_select %p42, 0, %s41
      %s44 = sadd.s32 1, %s35
      %s45 = scalar_select %p42, %s44, %s35
      %p46 = scmp.ge.s32.totalorder %s45, 2
      %s47 = scalar_select %p46, 0, %s45
      %s48 = ssub.s32 %s35, %s47
      %s49 = ssub.s32 %s36, %s43
      %s50 = sor.u32 %s48, %s49
      %p51 = scmp.eq.s32.totalorder %s50, 0
      %s53 = sadd.s32 %s52, 1
      %s54 = scalar_select %p51, %s52, %s53
      %p57 = pneg %p51
      %p58 = scmp.eq.s32.totalorder %s28, 1
      %p59 = por %p57, %p58
      %p60 = scmp.ne.s32.totalorder %s52, %s55
      %p61 = scmp.eq.s32.totalorder %s28, 0
      %p62 = por %p60, %p61
      %p63 = scmp.ne.s32.totalorder %s52, %s55
      %p64 = scmp.eq.s32.totalorder %s33, 1
      %p65 = por %p63, %p64
      %p66 = scmp.ne.s32.totalorder %s55, %s56
      %p67 = scmp.eq.s32.totalorder %s33, 0
      %p68 = por %p66, %p67
      %p69 = scmp.ne.s32.totalorder %s55, %s56
      %p70 = scmp.eq.s32.totalorder %s34, 1
      %p71 = por %p69, %p70
      %p73 = scmp.ne.s32.totalorder %s56, %s72
      %p74 = scmp.eq.s32.totalorder %s34, 0
      %p75 = por %p73, %p74
      %s76 = ssub.s32 %s35, %s47
      %p77 = scmp.eq.s32.totalorder %s76, 0
      %s79 = sadd.s32 %s78, 1
      %s80 = scalar_select %p77, %s78, %s79
      %p83 = pneg %p77
      %p84 = scmp.eq.s32.totalorder %s28, 1
      %p85 = por %p83, %p84
      %p86 = scmp.ne.s32.totalorder %s78, %s81
      %p87 = scmp.eq.s32.totalorder %s28, 0
      %p88 = por %p86, %p87
      %p89 = scmp.ne.s32.totalorder %s78, %s81
      %p90 = scmp.eq.s32.totalorder %s33, 1
      %p91 = por %p89, %p90
      %p92 = scmp.ne.s32.totalorder %s81, %s82
      %p93 = scmp.eq.s32.totalorder %s33, 0
      %p94 = por %p92, %p93
      %p95 = scmp.ne.s32.totalorder %s81, %s82
      %p96 = scmp.eq.s32.totalorder %s34, 1
      %p97 = por %p95, %p96
      %p99 = scmp.ne.s32.totalorder %s82, %s98
      %p100 = scmp.eq.s32.totalorder %s34, 0
      %p101 = por %p99, %p100
      %s102 = ssub.s32 %s35, %s47
      %p103 = scmp.eq.s32.totalorder %s102, 0
      %s105 = sadd.s32 %s104, 1
      %s106 = scalar_select %p103, %s104, %s105
      %p109 = pneg %p103
      %p110 = scmp.eq.s32.totalorder %s28, 1
      %p111 = por %p109, %p110
      %p112 = scmp.ne.s32.totalorder %s104, %s107
      %p113 = scmp.eq.s32.totalorder %s28, 0
      %p114 = por %p112, %p113
      %p115 = scmp.ne.s32.totalorder %s104, %s107
      %p116 = scmp.eq.s32.totalorder %s33, 1
      %p117 = por %p115, %p116
      %p118 = scmp.ne.s32.totalorder %s107, %s108
      %p119 = scmp.eq.s32.totalorder %s33, 0
      %p120 = por %p118, %p119
      %p121 = scmp.ne.s32.totalorder %s107, %s108
      %p122 = scmp.eq.s32.totalorder %s34, 1
      %p123 = por %p121, %p122
      %p125 = scmp.ne.s32.totalorder %s108, %s124
      %p126 = scmp.eq.s32.totalorder %s34, 0
      %p127 = por %p125, %p126
      %s129 = sadd.s32 %s128, 1
      %p132 = scmp.eq.s32.totalorder %s28, 1
      %p133 = scmp.ne.s32.totalorder %s128, %s130
      %p134 = scmp.eq.s32.totalorder %s28, 0
      %p135 = por %p133, %p134
      %p136 = scmp.ne.s32.totalorder %s128, %s130
      %p137 = scmp.eq.s32.totalorder %s33, 1
      %p138 = por %p136, %p137
      %p139 = scmp.ne.s32.totalorder %s130, %s131
      %p140 = scmp.eq.s32.totalorder %s33, 0
      %p141 = por %p139, %p140
      %p142 = scmp.ne.s32.totalorder %s130, %s131
      %p143 = scmp.eq.s32.totalorder %s34, 1
      %p144 = por %p142, %p143
      %p146 = scmp.ne.s32.totalorder %s131, %s145
      %p147 = scmp.eq.s32.totalorder %s34, 0
      %p148 = por %p146, %p147
      %s150 = sadd.s32 %s149, 1
      %p153 = scmp.eq.s32.totalorder %s28, 1
      %p154 = scmp.ne.s32.totalorder %s149, %s151
      %p155 = scmp.eq.s32.totalorder %s28, 0
      %p156 = por %p154, %p155
      %p157 = scmp.ne.s32.totalorder %s149, %s151
      %p158 = scmp.eq.s32.totalorder %s33, 1
      %p159 = por %p157, %p158
      %p160 = scmp.ne.s32.totalorder %s151, %s152
      %p161 = scmp.eq.s32.totalorder %s33, 0
      %p162 = por %p160, %p161
      %p163 = scmp.ne.s32.totalorder %s151, %s152
      %p164 = scmp.eq.s32.totalorder %s34, 1
      %p165 = por %p163, %p164
      %p167 = scmp.ne.s32.totalorder %s152, %s166
      %p168 = scmp.eq.s32.totalorder %s34, 0
      %p169 = por %p167, %p168
      %s171 = sadd.s32 %s170, 1
      %p174 = scmp.eq.s32.totalorder %s28, 1
      %p175 = scmp.ne.s32.totalorder %s170, %s172
      %p176 = scmp.eq.s32.totalorder %s28, 0
      %p177 = por %p175, %p176
      %p178 = scmp.ne.s32.totalorder %s170, %s172
      %p179 = scmp.eq.s32.totalorder %s33, 1
      %p180 = por %p178, %p179
      %p181 = scmp.ne.s32.totalorder %s172, %s173
      %p182 = scmp.eq.s32.totalorder %s33, 0
      %p183 = por %p181, %p182
      %p184 = scmp.ne.s32.totalorder %s172, %s173
      %p185 = scmp.eq.s32.totalorder %s34, 1
      %p186 = por %p184, %p185
      %p188 = scmp.ne.s32.totalorder %s173, %s187
      %p189 = scmp.eq.s32.totalorder %s34, 0
      %p190 = por %p188, %p189
      %s192 = sadd.s32 %s191, 1
      %p195 = scmp.eq.s32.totalorder %s28, 1
      %p196 = scmp.ne.s32.totalorder %s191, %s193
      %p197 = scmp.eq.s32.totalorder %s28, 0
      %p198 = por %p196, %p197
      %p199 = scmp.ne.s32.totalorder %s191, %s193
      %p200 = scmp.eq.s32.totalorder %s33, 1
      %p201 = por %p199, %p200
      %p202 = scmp.ne.s32.totalorder %s193, %s194
      %p203 = scmp.eq.s32.totalorder %s33, 0
      %p204 = por %p202, %p203
      %p205 = scmp.ne.s32.totalorder %s193, %s194
      %p206 = scmp.eq.s32.totalorder %s34, 1
      %p207 = por %p205, %p206
      %p209 = scmp.ne.s32.totalorder %s194, %s208
      %p210 = scmp.eq.s32.totalorder %s34, 0
      %p211 = por %p209, %p210
      %s213 = sadd.s32 %s212, 1
      %p216 = scmp.eq.s32.totalorder %s28, 1
      %p217 = scmp.ne.s32.totalorder %s212, %s214
      %p218 = scmp.eq.s32.totalorder %s28, 0
      %p219 = por %p217, %p218
      %p220 = scmp.ne.s32.totalorder %s212, %s214
      %p221 = scmp.eq.s32.totalorder %s33, 1
      %p222 = por %p220, %p221
      %p223 = scmp.ne.s32.totalorder %s214, %s215
      %p224 = scmp.eq.s32.totalorder %s33, 0
      %p225 = por %p223, %p224
      %p226 = scmp.ne.s32.totalorder %s214, %s215
      %p227 = scmp.eq.s32.totalorder %s34, 1
      %p228 = por %p226, %p227
      %p230 = scmp.ne.s32.totalorder %s215, %s229
      %p231 = scmp.eq.s32.totalorder %s34, 0
      %p232 = por %p230, %p231
      %s234 = sadd.s32 %s233, 1
      %p237 = scmp.eq.s32.totalorder %s28, 1
      %p238 = scmp.ne.s32.totalorder %s233, %s235
      %p239 = scmp.eq.s32.totalorder %s28, 0
      %p240 = por %p238, %p239
      %p241 = scmp.ne.s32.totalorder %s233, %s235
      %p242 = scmp.eq.s32.totalorder %s33, 1
      %p243 = por %p241, %p242
      %p244 = scmp.ne.s32.totalorder %s235, %s236
      %p245 = scmp.eq.s32.totalorder %s33, 0
      %p246 = por %p244, %p245
      %p247 = scmp.ne.s32.totalorder %s235, %s236
      %p248 = scmp.eq.s32.totalorder %s34, 1
      %p249 = por %p247, %p248
      %p251 = scmp.ne.s32.totalorder %s236, %s250
      %p252 = scmp.eq.s32.totalorder %s34, 0
      %p253 = por %p251, %p252
      %s255 = sadd.s32 %s254, 1
      %p258 = scmp.eq.s32.totalorder %s28, 1
      %p259 = scmp.ne.s32.totalorder %s254, %s256
      %p260 = scmp.eq.s32.totalorder %s28, 0
      %p261 = por %p259, %p260
      %p262 = scmp.ne.s32.totalorder %s254, %s256
      %p263 = scmp.eq.s32.totalorder %s33, 1
      %p264 = por %p262, %p263
      %p265 = scmp.ne.s32.totalorder %s256, %s257
      %p266 = scmp.eq.s32.totalorder %s33, 0
      %p267 = por %p265, %p266
      %p268 = scmp.ne.s32.totalorder %s256, %s257
      %p269 = scmp.eq.s32.totalorder %s34, 1
      %p270 = por %p268, %p269
      %p272 = scmp.ne.s32.totalorder %s257, %s271
      %p273 = scmp.eq.s32.totalorder %s34, 0
      %p274 = por %p272, %p273
      %s276 = sadd.s32 %s275, 1
      %p279 = scmp.eq.s32.totalorder %s28, 1
      %p280 = scmp.ne.s32.totalorder %s275, %s277
      %p281 = scmp.eq.s32.totalorder %s28, 0
      %p282 = por %p280, %p281
      %p283 = scmp.ne.s32.totalorder %s275, %s277
      %p284 = scmp.eq.s32.totalorder %s33, 1
      %p285 = por %p283, %p284
      %p286 = scmp.ne.s32.totalorder %s277, %s278
      %p287 = scmp.eq.s32.totalorder %s33, 0
      %p288 = por %p286, %p287
      %p289 = scmp.ne.s32.totalorder %s277, %s278
      %p290 = scmp.eq.s32.totalorder %s34, 1
      %p291 = por %p289, %p290
      %p293 = scmp.ne.s32.totalorder %s278, %s292
      %p294 = scmp.eq.s32.totalorder %s34, 0
      %p295 = por %p293, %p294
      %s296 = ssub.s32 %s35, %s47
      %s297 = ssub.s32 %s36, %s43
      %s298 = sor.u32 %s296, %s297
      %p299 = scmp.eq.s32.totalorder %s298, 0
      %s301 = sadd.s32 %s300, 1
      %s302 = scalar_select %p299, %s300, %s301
      %p305 = pneg %p299
      %p306 = scmp.eq.s32.totalorder %s28, 1
      %p307 = por %p305, %p306
      %p308 = scmp.ne.s32.totalorder %s300, %s303
      %p309 = scmp.eq.s32.totalorder %s28, 0
      %p310 = por %p308, %p309
      %p311 = scmp.ne.s32.totalorder %s300, %s303
      %p312 = scmp.eq.s32.totalorder %s33, 1
      %p313 = por %p311, %p312
      %p314 = scmp.ne.s32.totalorder %s303, %s304
      %p315 = scmp.eq.s32.totalorder %s33, 0
      %p316 = por %p314, %p315
      %p317 = scmp.ne.s32.totalorder %s303, %s304
      %p318 = scmp.eq.s32.totalorder %s34, 1
      %p319 = por %p317, %p318
      %p321 = scmp.ne.s32.totalorder %s304, %s320
      %p322 = scmp.eq.s32.totalorder %s34, 0
      %p323 = por %p321, %p322
      %p324 = scmp.le.s32.totalorder 1, %s28
      %p325 = scmp.lt.s32.totalorder %s28, 3
      %p326 = pnand %p324, %p325
      %p327 = pneg %p326
      // Predicated region
      $region9: #{tpu_custom_call.1} parent=5 // pred_check
        _
      $region10: #{tpu_custom_call.1} parent=5 // pred_check_branch
        %329 = sbr.rel (%p326) target = $region12
      $region11: #{tpu_custom_call.1} parent=5 // pred_region
        %s330 = ssub.s32 %s28, 1
        // Predicated region
        $region13: #{tpu_custom_call.1} parent=11 // pred_check
          %p331 = pneg %p141
        $region14: #{tpu_custom_call.1} parent=11 // pred_check_branch
          %333 = sbr.rel (%p331) target = $region16
        $region15: #{tpu_custom_call.1} parent=11 // pred_region
          %335 = vsyncadd [#allocation10], 0
          %s336 = sshll.u32 %s3, 4
          %s337 = int_to_ptr.hbm [resolvable:$true] %s336
          %s338 = sshll.u32 [#allocation9], 4
          %s339 = int_to_ptr.vmem [resolvable:$true] %s338
          %344 = dma.hbm_to_vmem [thread:$0]  %s337, 2048, %s339, [#allocation10], 128, 128, 8
        $region16: #{tpu_custom_call.1} parent=11 // pred_fallthru
          _
        // Predicated region
        $region17: #{tpu_custom_call.1} parent=11 // pred_check
          %p345 = pneg %p162
        $region18: #{tpu_custom_call.1} parent=11 // pred_check_branch
          %347 = sbr.rel (%p345) target = $region20
        $region19: #{tpu_custom_call.1} parent=11 // pred_region
          _
        $region20: #{tpu_custom_call.1} parent=11 // pred_fallthru
          _
        // Predicated region
        $region21: #{tpu_custom_call.1} parent=11 // pred_check
          %p348 = pneg %p183
        $region22: #{tpu_custom_call.1} parent=11 // pred_check_branch
          %350 = sbr.rel (%p348) target = $region24
        $region23: #{tpu_custom_call.1} parent=11 // pred_region
          %352 = vsyncadd [#allocation10], 0
          %s353 = sshll.u32 %s5, 4
          %s354 = int_to_ptr.hbm [resolvable:$true] %s353
          %s355 = sshll.u32 [#allocation11], 4
          %s356 = int_to_ptr.vmem [resolvable:$true] %s355
          %361 = dma.hbm_to_vmem [thread:$0]  %s354, 2048, %s356, [#allocation10], 128, 128, 8
        $region24: #{tpu_custom_call.1} parent=11 // pred_fallthru
          _
        // Predicated region
        $region25: #{tpu_custom_call.1} parent=11 // pred_check
          %p362 = pneg %p204
        $region26: #{tpu_custom_call.1} parent=11 // pred_check_branch
          %364 = sbr.rel (%p362) target = $region28
        $region27: #{tpu_custom_call.1} parent=11 // pred_region
          _
        $region28: #{tpu_custom_call.1} parent=11 // pred_fallthru
          _
        // Predicated region
        $region29: #{tpu_custom_call.1} parent=11 // pred_check
          %p365 = pneg %p225
        $region30: #{tpu_custom_call.1} parent=11 // pred_check_branch
          %367 = sbr.rel (%p365) target = $region32
        $region31: #{tpu_custom_call.1} parent=11 // pred_region
          %369 = vsyncadd [#allocation13], 0
          %s370 = sshll.u32 %s7, 4
          %s371 = int_to_ptr.hbm [resolvable:$true] %s370
          %s372 = sshll.u32 [#allocation12], 4
          %s373 = int_to_ptr.vmem [resolvable:$true] %s372
          %378 = dma.hbm_to_vmem [thread:$0]  %s371, 2048, %s373, [#allocation13], 128, 128, 8
        $region32: #{tpu_custom_call.1} parent=11 // pred_fallthru
          _
        // Predicated region
        $region33: #{tpu_custom_call.1} parent=11 // pred_check
          %p379 = pneg %p246
        $region34: #{tpu_custom_call.1} parent=11 // pred_check_branch
          %381 = sbr.rel (%p379) target = $region36
        $region35: #{tpu_custom_call.1} parent=11 // pred_region
          _
        $region36: #{tpu_custom_call.1} parent=11 // pred_fallthru
          _
        // Predicated region
        $region37: #{tpu_custom_call.1} parent=11 // pred_check
          %p382 = pneg %p267
        $region38: #{tpu_custom_call.1} parent=11 // pred_check_branch
          %384 = sbr.rel (%p382) target = $region40
        $region39: #{tpu_custom_call.1} parent=11 // pred_region
          %386 = vsyncadd [#allocation13], 0
          %s387 = sshll.u32 %s9, 4
          %s388 = int_to_ptr.hbm [resolvable:$true] %s387
          %s389 = sshll.u32 [#allocation14], 4
          %s390 = int_to_ptr.vmem [resolvable:$true] %s389
          %395 = dma.hbm_to_vmem [thread:$0]  %s388, 2048, %s390, [#allocation13], 128, 128, 8
        $region40: #{tpu_custom_call.1} parent=11 // pred_fallthru
          _
        // Predicated region
        $region41: #{tpu_custom_call.1} parent=11 // pred_check
          %p396 = pneg %p288
        $region42: #{tpu_custom_call.1} parent=11 // pred_check_branch
          %398 = sbr.rel (%p396) target = $region44
        $region43: #{tpu_custom_call.1} parent=11 // pred_region
          _
        $region44: #{tpu_custom_call.1} parent=11 // pred_fallthru
          _
      $region12: #{tpu_custom_call.1} parent=5 // pred_fallthru
        _
      %p399 = scmp.lt.s32.totalorder %s28, 2
      // Predicated region
      $region45: #{tpu_custom_call.1} parent=5 // pred_check
        %p400 = pneg %p399
      $region46: #{tpu_custom_call.1} parent=5 // pred_check_branch
        %402 = sbr.rel (%p400) target = $region48
      $region47: #{tpu_custom_call.1} parent=5 // pred_region
        // Predicated region
        $region49: #{tpu_custom_call.1} parent=47 // pred_check
          %p403 = pneg %p62
        $region50: #{tpu_custom_call.1} parent=47 // pred_check_branch
          %405 = sbr.rel (%p403) target = $region52
        $region51: #{tpu_custom_call.1} parent=47 // pred_region
          %s406 = sand.u32 %s52, 1
          %s407 = scalar_lea.sflag [#allocation4], %s406
          %s408 = sand.u32 %s52, 1
          %s409 = smul.addr %s408, 16
          %s410 = scalar_lea.vmem [#allocation3], %s409
          %s411 = smul.u32 2, %s36
          %413 = vsyncadd %s407, 0
          %s414 = smul.addr %s35, 2
          %s415 = sadd.s32 %s411, %s414
          %s416 = smul.addr %s415, 8
          %s417 = scalar_lea.hbm %s0, %s416
          %s418 = sshll.u32 %s417, 4
          %s419 = int_to_ptr.hbm [resolvable:$true] %s418
          %s420 = sshll.u32 %s410, 4
          %s421 = int_to_ptr.vmem [resolvable:$true] %s420
          %426 = dma.hbm_to_vmem [thread:$0]  %s419, 256, %s421, %s407, 128, 128, 8
        $region52: #{tpu_custom_call.1} parent=47 // pred_fallthru
          _
        // Predicated region
        $region53: #{tpu_custom_call.1} parent=47 // pred_check
          %p427 = pneg %p88
        $region54: #{tpu_custom_call.1} parent=47 // pred_check_branch
          %429 = sbr.rel (%p427) target = $region56
        $region55: #{tpu_custom_call.1} parent=47 // pred_region
          %s430 = sand.u32 %s28, 1
          %s431 = scalar_lea.sflag [#allocation7], %s430
          %s432 = sand.u32 %s78, 1
          %s433 = smul.addr %s432, 16
          %s434 = scalar_lea.vmem [#allocation6], %s433
          %436 = vsyncadd %s431, 0
          %s437 = smul.addr %s35, 2
          %s438 = smul.addr %s437, 8
          %s439 = scalar_lea.hbm %s1, %s438
          %s440 = sshll.u32 %s439, 4
          %s441 = int_to_ptr.hbm [resolvable:$true] %s440
          %s442 = sshll.u32 %s434, 4
          %s443 = int_to_ptr.vmem [resolvable:$true] %s442
          %448 = dma.hbm_to_vmem [thread:$0]  %s441, 256, %s443, %s431, 128, 128, 8
        $region56: #{tpu_custom_call.1} parent=47 // pred_fallthru
          _
        // Predicated region
        $region57: #{tpu_custom_call.1} parent=47 // pred_check
          %p449 = pneg %p114
        $region58: #{tpu_custom_call.1} parent=47 // pred_check_branch
          %451 = sbr.rel (%p449) target = $region60
        $region59: #{tpu_custom_call.1} parent=47 // pred_region
          %s452 = sand.u32 %s28, 1
          %s453 = scalar_lea.sflag [#allocation7], %s452
          %s454 = sand.u32 %s104, 1
          %s455 = smul.addr %s454, 16
          %s456 = scalar_lea.vmem [#allocation8], %s455
          %458 = vsyncadd %s453, 0
          %s459 = smul.addr %s35, 2
          %s460 = smul.addr %s459, 8
          %s461 = scalar_lea.hbm %s2, %s460
          %s462 = sshll.u32 %s461, 4
          %s463 = int_to_ptr.hbm [resolvable:$true] %s462
          %s464 = sshll.u32 %s456, 4
          %s465 = int_to_ptr.vmem [resolvable:$true] %s464
          %470 = dma.hbm_to_vmem [thread:$0]  %s463, 256, %s465, %s453, 128, 128, 8
        $region60: #{tpu_custom_call.1} parent=47 // pred_fallthru
          _
      $region48: #{tpu_custom_call.1} parent=5 // pred_fallthru
        _
      %p471 = scmp.le.s32.totalorder 1, %s28
      %p472 = scmp.lt.s32.totalorder %s28, 3
      %p473 = pnand %p471, %p472
      %p474 = pneg %p473
      // Predicated region
      $region61: #{tpu_custom_call.1} parent=5 // pred_check
        _
      $region62: #{tpu_custom_call.1} parent=5 // pred_check_branch
        %476 = sbr.rel (%p473) target = $region64
      $region63: #{tpu_custom_call.1} parent=5 // pred_region
        %s477 = ssub.s32 %s28, 1
        %s478 = sand.u32 %s55, 1
        %s479 = scalar_lea.sflag [#allocation4], %s478
        %s480 = sand.u32 %s55, 1
        %s481 = smul.addr %s480, 16
        %s482 = scalar_lea.vmem [#allocation3], %s481
        // Predicated region
        $region65: #{tpu_custom_call.1} parent=63 // pred_check
          %p483 = pneg %p68
        $region66: #{tpu_custom_call.1} parent=63 // pred_check_branch
          %485 = sbr.rel (%p483) target = $region68
        $region67: #{tpu_custom_call.1} parent=63 // pred_region
          %487 = dma.done %s479, 256
        $region68: #{tpu_custom_call.1} parent=63 // pred_fallthru
          _
        %s488 = sand.u32 %s33, 1
        %s489 = scalar_lea.sflag [#allocation7], %s488
        %s490 = sand.u32 %s81, 1
        %s491 = smul.addr %s490, 16
        %s492 = scalar_lea.vmem [#allocation6], %s491
        // Predicated region
        $region69: #{tpu_custom_call.1} parent=63 // pred_check
          %p493 = pneg %p94
        $region70: #{tpu_custom_call.1} parent=63 // pred_check_branch
          %495 = sbr.rel (%p493) target = $region72
        $region71: #{tpu_custom_call.1} parent=63 // pred_region
          %497 = dma.done %s489, 256
        $region72: #{tpu_custom_call.1} parent=63 // pred_fallthru
          _
        %s498 = sand.u32 %s33, 1
        %s499 = scalar_lea.sflag [#allocation7], %s498
        %s500 = sand.u32 %s107, 1
        %s501 = smul.addr %s500, 16
        %s502 = scalar_lea.vmem [#allocation8], %s501
        // Predicated region
        $region73: #{tpu_custom_call.1} parent=63 // pred_check
          %p503 = pneg %p120
        $region74: #{tpu_custom_call.1} parent=63 // pred_check_branch
          %505 = sbr.rel (%p503) target = $region76
        $region75: #{tpu_custom_call.1} parent=63 // pred_region
          %507 = dma.done %s499, 256
        $region76: #{tpu_custom_call.1} parent=63 // pred_fallthru
          _
        // Predicated region
        $region77: #{tpu_custom_call.1} parent=63 // pred_check
          %p508 = pneg %p141
        $region78: #{tpu_custom_call.1} parent=63 // pred_check_branch
          %510 = sbr.rel (%p508) target = $region80
        $region79: #{tpu_custom_call.1} parent=63 // pred_region
          %512 = dma.done [#allocation10], 2048
        $region80: #{tpu_custom_call.1} parent=63 // pred_fallthru
          _
        // Predicated region
        $region81: #{tpu_custom_call.1} parent=63 // pred_check
          %p513 = pneg %p183
        $region82: #{tpu_custom_call.1} parent=63 // pred_check_branch
          %515 = sbr.rel (%p513) target = $region84
        $region83: #{tpu_custom_call.1} parent=63 // pred_region
          %517 = dma.done [#allocation10], 2048
        $region84: #{tpu_custom_call.1} parent=63 // pred_fallthru
          _
        // Predicated region
        $region85: #{tpu_custom_call.1} parent=63 // pred_check
          %p518 = pneg %p225
        $region86: #{tpu_custom_call.1} parent=63 // pred_check_branch
          %520 = sbr.rel (%p518) target = $region88
        $region87: #{tpu_custom_call.1} parent=63 // pred_region
          %522 = dma.done [#allocation13], 2048
        $region88: #{tpu_custom_call.1} parent=63 // pred_fallthru
          _
        // Predicated region
        $region89: #{tpu_custom_call.1} parent=63 // pred_check
          %p523 = pneg %p267
        $region90: #{tpu_custom_call.1} parent=63 // pred_check_branch
          %525 = sbr.rel (%p523) target = $region92
        $region91: #{tpu_custom_call.1} parent=63 // pred_region
          %527 = dma.done [#allocation13], 2048
        $region92: #{tpu_custom_call.1} parent=63 // pred_fallthru
          _
        %s528 = sand.u32 %s55, 1
        %s529 = scalar_lea.sflag [#allocation4], %s528
        %s530 = sand.u32 %s55, 1
        %s531 = smul.addr %s530, 16
        %s532 = scalar_lea.vmem [#allocation3], %s531
        %p533 = pneg %p68
        %p534 = pneg %p65
        %s535 = sand.u32 %s33, 1
        %s536 = scalar_lea.sflag [#allocation7], %s535
        %s537 = sand.u32 %s81, 1
        %s538 = smul.addr %s537, 16
        %s539 = scalar_lea.vmem [#allocation6], %s538
        %p540 = pneg %p94
        %p541 = pneg %p91
        %s542 = sand.u32 %s33, 1
        %s543 = scalar_lea.sflag [#allocation7], %s542
        %s544 = sand.u32 %s107, 1
        %s545 = smul.addr %s544, 16
        %s546 = scalar_lea.vmem [#allocation8], %s545
        %p547 = pneg %p120
        %p548 = pneg %p117
        %p549 = pneg %p141
        %p550 = pneg %p138
        %p551 = pneg %p162
        %p552 = pneg %p159
        %p553 = pneg %p183
        %p554 = pneg %p180
        %p555 = pneg %p204
        %p556 = pneg %p201
        %p557 = pneg %p225
        %p558 = pneg %p222
        %p559 = pneg %p246
        %p560 = pneg %p243
        %p561 = pneg %p267
        %p562 = pneg %p264
        %p563 = pneg %p288
        %p564 = pneg %p285
        %p565 = pneg %p316
        %p566 = pneg %p313
        %s567 = sand.u32 %s303, 1
        %s568 = scalar_lea.sflag [#allocation5], %s567
        %s569 = sand.u32 %s303, 1
        %s570 = smul.addr %s569, 16
        %s571 = scalar_lea.vmem [#allocation15], %s570
        %s572 = smul.u32 2, %s38
        %s573 = smul.u32 2, %s38
        %v574 = vld [vmem:[%s482] sm:$0xff]
        %v575 = vld [vmem:[%s482 + $0x8] sm:$0xff]
        %v576 = vld [vmem:[%s492] sm:$0xff]
        %v577 = vld [vmem:[%s492 + $0x8] sm:$0xff]
        %v578 = vld [vmem:[%s502] sm:$0xff]
        %v579 = vld [vmem:[%s502 + $0x8] sm:$0xff]
        %v580 = vld [vmem:[#allocation9] sm:$0xff]
        %v581 = vld [vmem:[#allocation9 + $0x8] sm:$0xff]
        %v582 = vld [vmem:[#allocation9 + $0x10] sm:$0xff]
        %v583 = vld [vmem:[#allocation9 + $0x18] sm:$0xff]
        %v584 = vld [vmem:[#allocation9 + $0x20] sm:$0xff]
        %v585 = vld [vmem:[#allocation9 + $0x28] sm:$0xff]
        %v586 = vld [vmem:[#allocation9 + $0x30] sm:$0xff]
        %v587 = vld [vmem:[#allocation9 + $0x38] sm:$0xff]
        %v588 = vld [vmem:[#allocation9 + $0x40] sm:$0xff]
        %v589 = vld [vmem:[#allocation9 + $0x48] sm:$0xff]
        %v590 = vld [vmem:[#allocation9 + $0x50] sm:$0xff]
        %v591 = vld [vmem:[#allocation9 + $0x58] sm:$0xff]
        %v592 = vld [vmem:[#allocation9 + $0x60] sm:$0xff]
        %v593 = vld [vmem:[#allocation9 + $0x68] sm:$0xff]
        %v594 = vld [vmem:[#allocation9 + $0x70] sm:$0xff]
        %v595 = vld [vmem:[#allocation9 + $0x78] sm:$0xff]
        %v596 = vld [vmem:[%s4] sm:$0x1]
        %v598 = vperm.slane %v596, 0
        %600 = vmatpush.msra.mxu0 %v595
        %601 = vmatpush.msra.mxu0 %v594
        %602 = vmatpush.msra.mxu0 %v593
        %603 = vmatpush.msra.mxu0 %v592
        %604 = vmatpush.msra.mxu0 %v591
        %605 = vmatpush.msra.mxu0 %v590
        %606 = vmatpush.msra.mxu0 %v589
        %607 = vmatpush.msra.mxu0 %v588
        %608 = vmatpush.msra.mxu0 %v587
        %609 = vmatpush.msra.mxu0 %v586
        %610 = vmatpush.msra.mxu0 %v585
        %611 = vmatpush.msra.mxu0 %v584
        %612 = vmatpush.msra.mxu0 %v583
        %613 = vmatpush.msra.mxu0 %v582
        %614 = vmatpush.msra.mxu0 %v581
        %615 = vmatpush.msra.mxu0 %v580
        %616 = vmatmul.f32.gmra.mxu0 %v574
        %v617 = vpop.f32.mrf.mxu0
        %v618 = vadd.f32 %v598, %v617
        %619 = vmatmul.f32.gmra.mxu0 %v575
        %v620 = vpop.f32.mrf.mxu0
        %v621 = vadd.f32 %v598, %v620
        %622 = vdwg.mxu0
        %v623 = vmul.f32 %v618, 0.17677669
        %v624 = vmul.f32 %v621, 0.17677669
        %v625 = vld [vmem:[#allocation11] sm:$0xff]
        %v626 = vld [vmem:[#allocation11 + $0x8] sm:$0xff]
        %v627 = vld [vmem:[#allocation11 + $0x10] sm:$0xff]
        %v628 = vld [vmem:[#allocation11 + $0x18] sm:$0xff]
        %v629 = vld [vmem:[#allocation11 + $0x20] sm:$0xff]
        %v630 = vld [vmem:[#allocation11 + $0x28] sm:$0xff]
        %v631 = vld [vmem:[#allocation11 + $0x30] sm:$0xff]
        %v632 = vld [vmem:[#allocation11 + $0x38] sm:$0xff]
        %v633 = vld [vmem:[#allocation11 + $0x40] sm:$0xff]
        %v634 = vld [vmem:[#allocation11 + $0x48] sm:$0xff]
        %v635 = vld [vmem:[#allocation11 + $0x50] sm:$0xff]
        %v636 = vld [vmem:[#allocation11 + $0x58] sm:$0xff]
        %v637 = vld [vmem:[#allocation11 + $0x60] sm:$0xff]
        %v638 = vld [vmem:[#allocation11 + $0x68] sm:$0xff]
        %v639 = vld [vmem:[#allocation11 + $0x70] sm:$0xff]
        %v640 = vld [vmem:[#allocation11 + $0x78] sm:$0xff]
        %v641 = vld [vmem:[%s6] sm:$0x1]
        %v643 = vperm.slane %v641, 0
        %645 = vmatpush.msra.mxu0 %v640
        %646 = vmatpush.msra.mxu0 %v639
        %647 = vmatpush.msra.mxu0 %v638
        %648 = vmatpush.msra.mxu0 %v637
        %649 = vmatpush.msra.mxu0 %v636
        %650 = vmatpush.msra.mxu0 %v635
        %651 = vmatpush.msra.mxu0 %v634
        %652 = vmatpush.msra.mxu0 %v633
        %653 = vmatpush.msra.mxu0 %v632
        %654 = vmatpush.msra.mxu0 %v631
        %655 = vmatpush.msra.mxu0 %v630
        %656 = vmatpush.msra.mxu0 %v629
        %657 = vmatpush.msra.mxu0 %v628
        %658 = vmatpush.msra.mxu0 %v627
        %659 = vmatpush.msra.mxu0 %v626
        %660 = vmatpush.msra.mxu0 %v625
        %661 = vmatmul.f32.gmra.mxu0 %v576
        %v662 = vpop.f32.mrf.mxu0
        %v663 = vadd.f32 %v643, %v662
        %664 = vmatmul.f32.gmra.mxu0 %v577
        %v665 = vpop.f32.mrf.mxu0
        %v666 = vadd.f32 %v643, %v665
        %667 = vdwg.mxu0
        %v668 = vld [vmem:[#allocation12] sm:$0xff]
        %v669 = vld [vmem:[#allocation12 + $0x8] sm:$0xff]
        %v670 = vld [vmem:[#allocation12 + $0x10] sm:$0xff]
        %v671 = vld [vmem:[#allocation12 + $0x18] sm:$0xff]
        %v672 = vld [vmem:[#allocation12 + $0x20] sm:$0xff]
        %v673 = vld [vmem:[#allocation12 + $0x28] sm:$0xff]
        %v674 = vld [vmem:[#allocation12 + $0x30] sm:$0xff]
        %v675 = vld [vmem:[#allocation12 + $0x38] sm:$0xff]
        %v676 = vld [vmem:[#allocation12 + $0x40] sm:$0xff]
        %v677 = vld [vmem:[#allocation12 + $0x48] sm:$0xff]
        %v678 = vld [vmem:[#allocation12 + $0x50] sm:$0xff]
        %v679 = vld [vmem:[#allocation12 + $0x58] sm:$0xff]
        %v680 = vld [vmem:[#allocation12 + $0x60] sm:$0xff]
        %v681 = vld [vmem:[#allocation12 + $0x68] sm:$0xff]
        %v682 = vld [vmem:[#allocation12 + $0x70] sm:$0xff]
        %v683 = vld [vmem:[#allocation12 + $0x78] sm:$0xff]
        %v684 = vld [vmem:[%s8] sm:$0x1]
        %v686 = vperm.slane %v684, 0
        %688 = vmatpush.msra.mxu0 %v683
        %689 = vmatpush.msra.mxu0 %v682
        %690 = vmatpush.msra.mxu0 %v681
        %691 = vmatpush.msra.mxu0 %v680
        %692 = vmatpush.msra.mxu0 %v679
        %693 = vmatpush.msra.mxu0 %v678
        %694 = vmatpush.msra.mxu0 %v677
        %695 = vmatpush.msra.mxu0 %v676
        %696 = vmatpush.msra.mxu0 %v675
        %697 = vmatpush.msra.mxu0 %v674
        %698 = vmatpush.msra.mxu0 %v673
        %699 = vmatpush.msra.mxu0 %v672
        %700 = vmatpush.msra.mxu0 %v671
        %701 = vmatpush.msra.mxu0 %v670
        %702 = vmatpush.msra.mxu0 %v669
        %703 = vmatpush.msra.mxu0 %v668
        %704 = vmatmul.f32.gmra.mxu0 %v578
        %v705 = vpop.f32.mrf.mxu0
        %v706 = vadd.f32 %v686, %v705
        %707 = vmatmul.f32.gmra.mxu0 %v579
        %v708 = vpop.f32.mrf.mxu0
        %v709 = vadd.f32 %v686, %v708
        %710 = vdwg.mxu0
        %vm711 = vcmask 261120
        %v713 = vsel %vm711, %v623, 0
        %v716 = vsel %vm711, %v624, 0
        %v719 = vsel %vm711, %v663, 0
        %v722 = vsel %vm711, %v666, 0
        %724 = vmatpush.xpose.msra.mxu0 0.0
        %725 = vmatpush.xpose.msra.mxu0 0.0
        %726 = vmatpush.xpose.msra.mxu0 0.0
        %727 = vmatpush.xpose.msra.mxu0 0.0
        %728 = vmatpush.xpose.msra.mxu0 0.0
        %729 = vmatpush.xpose.msra.mxu0 0.0
        %730 = vmatpush.xpose.msra.mxu0 0.0
        %731 = vmatpush.xpose.msra.mxu0 0.0
        %732 = vmatpush.xpose.msra.mxu0 0.0
        %733 = vmatpush.xpose.msra.mxu0 0.0
        %734 = vmatpush.xpose.msra.mxu0 0.0
        %735 = vmatpush.xpose.msra.mxu0 0.0
        %736 = vmatpush.xpose.msra.mxu0 0.0
        %737 = vmatpush.xpose.msra.mxu0 0.0
        %738 = vmatpush.xpose.msra.mxu0 %v722
        %739 = vmatpush.xpose.msra.mxu0 %v719
        %740 = vmatmul.f32.gmra.mxu0 %v713
        %v741 = vpop.f32.mrf.mxu0
        %v742 = vadd.f32 0.0, %v741
        %743 = vmatmul.f32.gmra.mxu0 %v716
        %v744 = vpop.f32.mrf.mxu0
        %v745 = vadd.f32 0.0, %v744
        %746 = vdwg.mxu0
        %vm747 = vcmask 130048
        %v748 = vsel %vm747, %v742, -inf
        %749 = vmax.xlane.f32.xlu0 %v748
        %v750 = vpop.xlane.xlu0 %749
        %v751 = vsel %vm747, %v745, -inf
        %752 = vmax.xlane.f32.xlu0 %v751
        %v753 = vpop.xlane.xlu0 %752
        %v754 = vsub.f32 %v742, %v750
        %v755 = vsub.f32 %v745, %v753
        %v756 = vmul.f32 %v754, 1.442695
        %v757 = vpow.pop %v756
        %v758 = vmul.f32 %v755, 1.442695
        %v759 = vpow.pop %v758
        %v760 = vsel %vm747, %v757, 0.0
        %761 = vadd.xlane.f32.xlu0 %v760
        %v762 = vpop.xlane.xlu0 %761
        %v763 = vsel %vm747, %v759, 0.0
        %764 = vadd.xlane.f32.xlu0 %v763
        %v765 = vpop.xlane.xlu0 %764
        %v766 = vrcp.pop %v762
        %v767 = vrcp.pop %v765
        %v768 = vmul.f32 %v757, %v766
        %v769 = vmul.f32 %v759, %v767
        %v771 = vsel %vm747, %v768, 0
        %v774 = vsel %vm747, %v769, 0
        %776 = vmatpush.msra.mxu0 0.0
        %777 = vmatpush.msra.mxu0 0.0
        %778 = vmatpush.msra.mxu0 0.0
        %779 = vmatpush.msra.mxu0 0.0
        %780 = vmatpush.msra.mxu0 0.0
        %781 = vmatpush.msra.mxu0 0.0
        %782 = vmatpush.msra.mxu0 0.0
        %783 = vmatpush.msra.mxu0 0.0
        %784 = vmatpush.msra.mxu0 0.0
        %785 = vmatpush.msra.mxu0 0.0
        %786 = vmatpush.msra.mxu0 0.0
        %787 = vmatpush.msra.mxu0 0.0
        %788 = vmatpush.msra.mxu0 0.0
        %789 = vmatpush.msra.mxu0 0.0
        %790 = vmatpush.msra.mxu0 %v709
        %791 = vmatpush.msra.mxu0 %v706
        %792 = vmatmul.f32.gmra.mxu0 %v771
        %v793 = vpop.f32.mrf.mxu0
        %v794 = vadd.f32 0.0, %v793
        %795 = vmatmul.f32.gmra.mxu0 %v774
        %v796 = vpop.f32.mrf.mxu0
        %v797 = vadd.f32 0.0, %v796
        %798 = vdwg.mxu0
        %799 = vst.msk [vmem:[#allocation2] sm:$0xff] %vm711, %v794
        %800 = vst.msk [vmem:[#allocation2 + $0x8] sm:$0xff] %vm711, %v797
        %801 = vrot.lane.b32.xlu0 %v623, 96
        %v802 = vpop.permute.xlu0 %801
        %803 = vrot.lane.b32.xlu0 %v624, 96
        %v804 = vpop.permute.xlu0 %803
        %805 = vrot.lane.b32.xlu0 %v663, 96
        %v806 = vpop.permute.xlu0 %805
        %807 = vrot.lane.b32.xlu0 %v666, 96
        %v808 = vpop.permute.xlu0 %807
        %v809 = vsel %vm711, %v802, 0
        %v811 = vsel %vm711, %v804, 0
        %v813 = vsel %vm711, %v806, 0
        %v815 = vsel %vm711, %v808, 0
        %817 = vmatpush.xpose.msra.mxu0 0.0
        %818 = vmatpush.xpose.msra.mxu0 0.0
        %819 = vmatpush.xpose.msra.mxu0 0.0
        %820 = vmatpush.xpose.msra.mxu0 0.0
        %821 = vmatpush.xpose.msra.mxu0 0.0
        %822 = vmatpush.xpose.msra.mxu0 0.0
        %823 = vmatpush.xpose.msra.mxu0 0.0
        %824 = vmatpush.xpose.msra.mxu0 0.0
        %825 = vmatpush.xpose.msra.mxu0 0.0
        %826 = vmatpush.xpose.msra.mxu0 0.0
        %827 = vmatpush.xpose.msra.mxu0 0.0
        %828 = vmatpush.xpose.msra.mxu0 0.0
        %829 = vmatpush.xpose.msra.mxu0 0.0
        %830 = vmatpush.xpose.msra.mxu0 0.0
        %831 = vmatpush.xpose.msra.mxu0 %v815
        %832 = vmatpush.xpose.msra.mxu0 %v813
        %833 = vmatmul.f32.gmra.mxu0 %v809
        %v834 = vpop.f32.mrf.mxu0
        %v835 = vadd.f32 0.0, %v834
        %836 = vmatmul.f32.gmra.mxu0 %v811
        %v837 = vpop.f32.mrf.mxu0
        %v838 = vadd.f32 0.0, %v837
        %839 = vdwg.mxu0
        %v840 = vsel %vm747, %v835, -inf
        %841 = vmax.xlane.f32.xlu0 %v840
        %v842 = vpop.xlane.xlu0 %841
        %v843 = vsel %vm747, %v838, -inf
        %844 = vmax.xlane.f32.xlu0 %v843
        %v845 = vpop.xlane.xlu0 %844
        %v846 = vsub.f32 %v835, %v842
        %v847 = vsub.f32 %v838, %v845
        %v848 = vmul.f32 %v846, 1.442695
        %v849 = vpow.pop %v848
        %v850 = vmul.f32 %v847, 1.442695
        %v851 = vpow.pop %v850
        %v852 = vsel %vm747, %v849, 0.0
        %853 = vadd.xlane.f32.xlu0 %v852
        %v854 = vpop.xlane.xlu0 %853
        %v855 = vsel %vm747, %v851, 0.0
        %856 = vadd.xlane.f32.xlu0 %v855
        %v857 = vpop.xlane.xlu0 %856
        %v858 = vrcp.pop %v854
        %v859 = vrcp.pop %v857
        %v860 = vmul.f32 %v849, %v858
        %v861 = vmul.f32 %v851, %v859
        %864 = vrot.lane.b32.xlu0 %v706, 96
        %v865 = vpop.permute.xlu0 %864
        %866 = vrot.lane.b32.xlu0 %v709, 96
        %v867 = vpop.permute.xlu0 %866
        %v871 = vsel %vm747, %v860, 0
        %v874 = vsel %vm747, %v861, 0
        %876 = vmatpush.msra.mxu0 0.0
        %877 = vmatpush.msra.mxu0 0.0
        %878 = vmatpush.msra.mxu0 0.0
        %879 = vmatpush.msra.mxu0 0.0
        %880 = vmatpush.msra.mxu0 0.0
        %881 = vmatpush.msra.mxu0 0.0
        %882 = vmatpush.msra.mxu0 0.0
        %883 = vmatpush.msra.mxu0 0.0
        %884 = vmatpush.msra.mxu0 0.0
        %885 = vmatpush.msra.mxu0 0.0
        %886 = vmatpush.msra.mxu0 0.0
        %887 = vmatpush.msra.mxu0 0.0
        %888 = vmatpush.msra.mxu0 0.0
        %889 = vmatpush.msra.mxu0 0.0
        %890 = vmatpush.msra.mxu0 %v867
        %891 = vmatpush.msra.mxu0 %v865
        %892 = vmatmul.f32.gmra.mxu0 %v871
        %v893 = vpop.f32.mrf.mxu0
        %v894 = vadd.f32 0.0, %v893
        %895 = vmatmul.f32.gmra.mxu0 %v874
        %v896 = vpop.f32.mrf.mxu0
        %v897 = vadd.f32 0.0, %v896
        %898 = vdwg.mxu0
        %901 = vrot.lane.b32.xlu0 %v894, 32
        %v902 = vpop.permute.xlu0 %901
        %903 = vrot.lane.b32.xlu0 %v897, 32
        %v904 = vpop.permute.xlu0 %903
        %vm907 = vcmask 523520
        %908 = vst.msk [vmem:[#allocation2] sm:$0xff] %vm907, %v902
        %909 = vst.msk [vmem:[#allocation2 + $0x8] sm:$0xff] %vm907, %v904
        %910 = vrot.lane.b32.xlu0 %v623, 64
        %v911 = vpop.permute.xlu0 %910
        %912 = vrot.lane.b32.xlu0 %v624, 64
        %v913 = vpop.permute.xlu0 %912
        %914 = vrot.lane.b32.xlu0 %v663, 64
        %v915 = vpop.permute.xlu0 %914
        %916 = vrot.lane.b32.xlu0 %v666, 64
        %v917 = vpop.permute.xlu0 %916
        %v918 = vsel %vm711, %v911, 0
        %v920 = vsel %vm711, %v913, 0
        %v922 = vsel %vm711, %v915, 0
        %v924 = vsel %vm711, %v917, 0
        %926 = vmatpush.xpose.msra.mxu0 0.0
        %927 = vmatpush.xpose.msra.mxu0 0.0
        %928 = vmatpush.xpose.msra.mxu0 0.0
        %929 = vmatpush.xpose.msra.mxu0 0.0
        %930 = vmatpush.xpose.msra.mxu0 0.0
        %931 = vmatpush.xpose.msra.mxu0 0.0
        %932 = vmatpush.xpose.msra.mxu0 0.0
        %933 = vmatpush.xpose.msra.mxu0 0.0
        %934 = vmatpush.xpose.msra.mxu0 0.0
        %935 = vmatpush.xpose.msra.mxu0 0.0
        %936 = vmatpush.xpose.msra.mxu0 0.0
        %937 = vmatpush.xpose.msra.mxu0 0.0
        %938 = vmatpush.xpose.msra.mxu0 0.0
        %939 = vmatpush.xpose.msra.mxu0 0.0
        %940 = vmatpush.xpose.msra.mxu0 %v924
        %941 = vmatpush.xpose.msra.mxu0 %v922
        %942 = vmatmul.f32.gmra.mxu0 %v918
        %v943 = vpop.f32.mrf.mxu0
        %v944 = vadd.f32 0.0, %v943
        %945 = vmatmul.f32.gmra.mxu0 %v920
        %v946 = vpop.f32.mrf.mxu0
        %v947 = vadd.f32 0.0, %v946
        %948 = vdwg.mxu0
        %v949 = vsel %vm747, %v944, -inf
        %950 = vmax.xlane.f32.xlu0 %v949
        %v951 = vpop.xlane.xlu0 %950
        %v952 = vsel %vm747, %v947, -inf
        %953 = vmax.xlane.f32.xlu0 %v952
        %v954 = vpop.xlane.xlu0 %953
        %v955 = vsub.f32 %v944, %v951
        %v956 = vsub.f32 %v947, %v954
        %v957 = vmul.f32 %v955, 1.442695
        %v958 = vpow.pop %v957
        %v959 = vmul.f32 %v956, 1.442695
        %v960 = vpow.pop %v959
        %v961 = vsel %vm747, %v958, 0.0
        %962 = vadd.xlane.f32.xlu0 %v961
        %v963 = vpop.xlane.xlu0 %962
        %v964 = vsel %vm747, %v960, 0.0
        %965 = vadd.xlane.f32.xlu0 %v964
        %v966 = vpop.xlane.xlu0 %965
        %v967 = vrcp.pop %v963
        %v968 = vrcp.pop %v966
        %v969 = vmul.f32 %v958, %v967
        %v970 = vmul.f32 %v960, %v968
        %971 = vrot.lane.b32.xlu0 %v706, 64
        %v972 = vpop.permute.xlu0 %971
        %973 = vrot.lane.b32.xlu0 %v709, 64
        %v974 = vpop.permute.xlu0 %973
        %v978 = vsel %vm747, %v969, 0
        %v981 = vsel %vm747, %v970, 0
        %983 = vmatpush.msra.mxu0 0.0
        %984 = vmatpush.msra.mxu0 0.0
        %985 = vmatpush.msra.mxu0 0.0
        %986 = vmatpush.msra.mxu0 0.0
        %987 = vmatpush.msra.mxu0 0.0
        %988 = vmatpush.msra.mxu0 0.0
        %989 = vmatpush.msra.mxu0 0.0
        %990 = vmatpush.msra.mxu0 0.0
        %991 = vmatpush.msra.mxu0 0.0
        %992 = vmatpush.msra.mxu0 0.0
        %993 = vmatpush.msra.mxu0 0.0
        %994 = vmatpush.msra.mxu0 0.0
        %995 = vmatpush.msra.mxu0 0.0
        %996 = vmatpush.msra.mxu0 0.0
        %997 = vmatpush.msra.mxu0 %v974
        %998 = vmatpush.msra.mxu0 %v972
        %999 = vmatmul.f32.gmra.mxu0 %v978
        %v1000 = vpop.f32.mrf.mxu0
        %v1001 = vadd.f32 0.0, %v1000
        %1002 = vmatmul.f32.gmra.mxu0 %v981
        %v1003 = vpop.f32.mrf.mxu0
        %v1004 = vadd.f32 0.0, %v1003
        %1005 = vdwg.mxu0
        %1008 = vrot.lane.b32.xlu0 %v1001, 64
        %v1009 = vpop.permute.xlu0 %1008
        %1010 = vrot.lane.b32.xlu0 %v1004, 64
        %v1011 = vpop.permute.xlu0 %1010
        %vm1014 = vcmask 785920
        %1015 = vst.msk [vmem:[#allocation2] sm:$0xff] %vm1014, %v1009
        %1016 = vst.msk [vmem:[#allocation2 + $0x8] sm:$0xff] %vm1014, %v1011
        %1017 = vrot.lane.b32.xlu0 %v623, 32
        %v1018 = vpop.permute.xlu0 %1017
        %1019 = vrot.lane.b32.xlu0 %v624, 32
        %v1020 = vpop.permute.xlu0 %1019
        %1021 = vrot.lane.b32.xlu0 %v663, 32
        %v1022 = vpop.permute.xlu0 %1021
        %1023 = vrot.lane.b32.xlu0 %v666, 32
        %v1024 = vpop.permute.xlu0 %1023
        %v1025 = vsel %vm711, %v1018, 0
        %v1027 = vsel %vm711, %v1020, 0
        %v1029 = vsel %vm711, %v1022, 0
        %v1031 = vsel %vm711, %v1024, 0
        %1033 = vmatpush.xpose.msra.mxu0 0.0
        %1034 = vmatpush.xpose.msra.mxu0 0.0
        %1035 = vmatpush.xpose.msra.mxu0 0.0
        %1036 = vmatpush.xpose.msra.mxu0 0.0
        %1037 = vmatpush.xpose.msra.mxu0 0.0
        %1038 = vmatpush.xpose.msra.mxu0 0.0
        %1039 = vmatpush.xpose.msra.mxu0 0.0
        %1040 = vmatpush.xpose.msra.mxu0 0.0
        %1041 = vmatpush.xpose.msra.mxu0 0.0
        %1042 = vmatpush.xpose.msra.mxu0 0.0
        %1043 = vmatpush.xpose.msra.mxu0 0.0
        %1044 = vmatpush.xpose.msra.mxu0 0.0
        %1045 = vmatpush.xpose.msra.mxu0 0.0
        %1046 = vmatpush.xpose.msra.mxu0 0.0
        %1047 = vmatpush.xpose.msra.mxu0 %v1031
        %1048 = vmatpush.xpose.msra.mxu0 %v1029
        %1049 = vmatmul.f32.gmra.mxu0 %v1025
        %v1050 = vpop.f32.mrf.mxu0
        %v1051 = vadd.f32 0.0, %v1050
        %1052 = vmatmul.f32.gmra.mxu0 %v1027
        %v1053 = vpop.f32.mrf.mxu0
        %v1054 = vadd.f32 0.0, %v1053
        %1055 = vdwg.mxu0
        %v1056 = vsel %vm747, %v1051, -inf
        %1057 = vmax.xlane.f32.xlu0 %v1056
        %v1058 = vpop.xlane.xlu0 %1057
        %v1059 = vsel %vm747, %v1054, -inf
        %1060 = vmax.xlane.f32.xlu0 %v1059
        %v1061 = vpop.xlane.xlu0 %1060
        %v1062 = vsub.f32 %v1051, %v1058
        %v1063 = vsub.f32 %v1054, %v1061
        %v1064 = vmul.f32 %v1062, 1.442695
        %v1065 = vpow.pop %v1064
        %v1066 = vmul.f32 %v1063, 1.442695
        %v1067 = vpow.pop %v1066
        %v1068 = vsel %vm747, %v1065, 0.0
        %1069 = vadd.xlane.f32.xlu0 %v1068
        %v1070 = vpop.xlane.xlu0 %1069
        %v1071 = vsel %vm747, %v1067, 0.0
        %1072 = vadd.xlane.f32.xlu0 %v1071
        %v1073 = vpop.xlane.xlu0 %1072
        %v1074 = vrcp.pop %v1070
        %v1075 = vrcp.pop %v1073
        %v1076 = vmul.f32 %v1065, %v1074
        %v1077 = vmul.f32 %v1067, %v1075
        %1078 = vrot.lane.b32.xlu0 %v706, 32
        %v1079 = vpop.permute.xlu0 %1078
        %1080 = vrot.lane.b32.xlu0 %v709, 32
        %v1081 = vpop.permute.xlu0 %1080
        %v1085 = vsel %vm747, %v1076, 0
        %v1088 = vsel %vm747, %v1077, 0
        %1090 = vmatpush.msra.mxu0 0.0
        %1091 = vmatpush.msra.mxu0 0.0
        %1092 = vmatpush.msra.mxu0 0.0
        %1093 = vmatpush.msra.mxu0 0.0
        %1094 = vmatpush.msra.mxu0 0.0
        %1095 = vmatpush.msra.mxu0 0.0
        %1096 = vmatpush.msra.mxu0 0.0
        %1097 = vmatpush.msra.mxu0 0.0
        %1098 = vmatpush.msra.mxu0 0.0
        %1099 = vmatpush.msra.mxu0 0.0
        %1100 = vmatpush.msra.mxu0 0.0
        %1101 = vmatpush.msra.mxu0 0.0
        %1102 = vmatpush.msra.mxu0 0.0
        %1103 = vmatpush.msra.mxu0 0.0
        %1104 = vmatpush.msra.mxu0 %v1081
        %1105 = vmatpush.msra.mxu0 %v1079
        %1106 = vmatmul.f32.gmra.mxu0 %v1085
        %v1107 = vpop.f32.mrf.mxu0
        %v1108 = vadd.f32 0.0, %v1107
        %1109 = vmatmul.f32.gmra.mxu0 %v1088
        %v1110 = vpop.f32.mrf.mxu0
        %v1111 = vadd.f32 0.0, %v1110
        %1112 = vdwg.mxu0
        %1115 = vrot.lane.b32.xlu0 %v1108, 96
        %v1116 = vpop.permute.xlu0 %1115
        %1117 = vrot.lane.b32.xlu0 %v1111, 96
        %v1118 = vpop.permute.xlu0 %1117
        %vm1121 = vcmask 1048320
        %1122 = vst.msk [vmem:[#allocation2] sm:$0xff] %vm1121, %v1116
        %1123 = vst.msk [vmem:[#allocation2 + $0x8] sm:$0xff] %vm1121, %v1118
        %v1124 = vld [vmem:[#allocation2] sm:$0xff]
        %v1125 = vld [vmem:[#allocation2 + $0x8] sm:$0xff]
        %v1126 = vld [vmem:[#allocation14] sm:$0xff]
        %v1127 = vld [vmem:[#allocation14 + $0x8] sm:$0xff]
        %v1128 = vld [vmem:[#allocation14 + $0x10] sm:$0xff]
        %v1129 = vld [vmem:[#allocation14 + $0x18] sm:$0xff]
        %v1130 = vld [vmem:[#allocation14 + $0x20] sm:$0xff]
        %v1131 = vld [vmem:[#allocation14 + $0x28] sm:$0xff]
        %v1132 = vld [vmem:[#allocation14 + $0x30] sm:$0xff]
        %v1133 = vld [vmem:[#allocation14 + $0x38] sm:$0xff]
        %v1134 = vld [vmem:[#allocation14 + $0x40] sm:$0xff]
        %v1135 = vld [vmem:[#allocation14 + $0x48] sm:$0xff]
        %v1136 = vld [vmem:[#allocation14 + $0x50] sm:$0xff]
        %v1137 = vld [vmem:[#allocation14 + $0x58] sm:$0xff]
        %v1138 = vld [vmem:[#allocation14 + $0x60] sm:$0xff]
        %v1139 = vld [vmem:[#allocation14 + $0x68] sm:$0xff]
        %v1140 = vld [vmem:[#allocation14 + $0x70] sm:$0xff]
        %v1141 = vld [vmem:[#allocation14 + $0x78] sm:$0xff]
        %v1142 = vld [vmem:[%s10] sm:$0x1]
        %v1144 = vperm.slane %v1142, 0
        %1146 = vmatpush.msra.mxu0 %v1141
        %1147 = vmatpush.msra.mxu0 %v1140
        %1148 = vmatpush.msra.mxu0 %v1139
        %1149 = vmatpush.msra.mxu0 %v1138
        %1150 = vmatpush.msra.mxu0 %v1137
        %1151 = vmatpush.msra.mxu0 %v1136
        %1152 = vmatpush.msra.mxu0 %v1135
        %1153 = vmatpush.msra.mxu0 %v1134
        %1154 = vmatpush.msra.mxu0 %v1133
        %1155 = vmatpush.msra.mxu0 %v1132
        %1156 = vmatpush.msra.mxu0 %v1131
        %1157 = vmatpush.msra.mxu0 %v1130
        %1158 = vmatpush.msra.mxu0 %v1129
        %1159 = vmatpush.msra.mxu0 %v1128
        %1160 = vmatpush.msra.mxu0 %v1127
        %1161 = vmatpush.msra.mxu0 %v1126
        %1162 = vmatmul.f32.gmra.mxu0 %v1124
        %v1163 = vpop.f32.mrf.mxu0
        %v1164 = vadd.f32 %v1144, %v1163
        %1165 = vmatmul.f32.gmra.mxu0 %v1125
        %v1166 = vpop.f32.mrf.mxu0
        %v1167 = vadd.f32 %v1144, %v1166
        %1168 = vdwg.mxu0
        %1169 = vst [vmem:[%s571] sm:$0xff] %v1164
        %1170 = vst [vmem:[%s571 + $0x8] sm:$0xff] %v1167
        %s1171 = sand.u32 %s303, 1
        %s1172 = scalar_lea.sflag [#allocation5], %s1171
        %s1173 = sand.u32 %s303, 1
        %s1174 = smul.addr %s1173, 16
        %s1175 = scalar_lea.vmem [#allocation15], %s1174
        // Predicated region
        $region93: #{tpu_custom_call.1} parent=63 // pred_check
          %p1176 = pneg %p313
        $region94: #{tpu_custom_call.1} parent=63 // pred_check_branch
          %1178 = sbr.rel (%p1176) target = $region96
        $region95: #{tpu_custom_call.1} parent=63 // pred_region
          %s1179 = smul.u32 2, %s38
          %1181 = vsyncadd %s1172, 0
          %s1182 = smul.addr %s37, 2
          %s1183 = sadd.s32 %s1179, %s1182
          %s1184 = smul.addr %s1183, 8
          %s1185 = scalar_lea.hbm %s11, %s1184
          %s1186 = sshll.u32 %s1175, 4
          %s1187 = int_to_ptr.vmem [resolvable:$true] %s1186
          %s1188 = sshll.u32 %s1185, 4
          %s1189 = int_to_ptr.hbm [resolvable:$true] %s1188
          %1194 = dma.vmem_to_hbm [thread:$0]  %s1187, 256, %s1189, %s1172, 128, 128, 8
        $region96: #{tpu_custom_call.1} parent=63 // pred_fallthru
          _
      $region64: #{tpu_custom_call.1} parent=5 // pred_fallthru
        _
      %p1195 = scmp.le.s32.totalorder 2, %s28
      // Predicated region
      $region97: #{tpu_custom_call.1} parent=5 // pred_check
        %p1196 = pneg %p1195
      $region98: #{tpu_custom_call.1} parent=5 // pred_check_branch
        %1198 = sbr.rel (%p1196) target = $region100
      $region99: #{tpu_custom_call.1} parent=5 // pred_region
        %s1199 = ssub.s32 %s28, 2
        // Predicated region
        $region101: #{tpu_custom_call.1} parent=99 // pred_check
          %p1200 = pneg %p319
        $region102: #{tpu_custom_call.1} parent=99 // pred_check_branch
          %1202 = sbr.rel (%p1200) target = $region104
        $region103: #{tpu_custom_call.1} parent=99 // pred_region
          %s1203 = sand.u32 %s304, 1
          %s1204 = scalar_lea.sflag [#allocation5], %s1203
          %s1205 = sand.u32 %s304, 1
          %s1206 = smul.addr %s1205, 16
          %s1207 = scalar_lea.vmem [#allocation15], %s1206
          %1209 = dma.done %s1204, 256
        $region104: #{tpu_custom_call.1} parent=99 // pred_fallthru
          _
      $region100: #{tpu_custom_call.1} parent=5 // pred_fallthru
        _
    $region6: #{tpu_custom_call.1} parent=1 // loop_footer
      %s32 = sadd.s32 1, %s28
    $region7: #{tpu_custom_call.1} parent=1 // loop_footer_branch
      %27 = sbr.rel target = $region3
    $region8: #{tpu_custom_call.1} parent=1 // loop_exit
      _
    %1210 = vsyncpa [#allocation4], 1
    %s1211 = scalar_lea.sflag [#allocation4], 1
    %1212 = vsyncpa %s1211, 1
    %1213 = vsyncpa [#allocation7], 1
    %s1214 = scalar_lea.sflag [#allocation7], 1
    %1215 = vsyncpa %s1214, 1
    %1216 = vsyncpa [#allocation10], 1
    %1217 = vsyncpa [#allocation13], 1
    %1218 = vsyncpa [#allocation5], 1
    %s1219 = scalar_lea.sflag [#allocation5], 1
    %1220 = vsyncpa %s1219, 1

</llo_original>
